<compile_context>
chip_gen: v7x
topology: tpu7x:2x2x1
jax: 0.10.0
libtpu: 0.0.40
codegen_flags: <defaults>
</compile_context>

<pallas_src>
import functools

import jax
import jax.numpy as jnp
from jax import lax
from jax.experimental import pallas as pl
from jax.experimental.pallas import tpu as pltpu

EPS = 1e-5  # torch.nn.LayerNorm default eps
F32 = jnp.float32


# ----------------------------- in-kernel helpers -----------------------------

def _ln(x, g, b):
    mu = jnp.mean(x, axis=-1, keepdims=True)
    var = jnp.mean(jnp.square(x - mu), axis=-1, keepdims=True)
    return (x - mu) * lax.rsqrt(var + EPS) * g + b


def _gelu_exact(g):
    # torch.nn.functional.gelu default (exact erf form).
    return 0.5 * g * (1.0 + lax.erf(g * 0.7071067811865475))


def _mh_attention(xn, ctxn, bt, heads, scale, get_wq, get_wk, get_wv, get_wo, bo):
    """Multi-head attention on a flattened [bt*n, dim] layout.

    get_w*(h) return per-head weight tiles via free leading-axis ref indexing
    ([Din, d] / [d, Dout]); no lane slices of computed arrays.  The per-head output
    projection is folded straight into the accumulator (seeded with the out bias).
    """
    m = xn.shape[0]
    nq = m // bt
    nk = ctxn.shape[0] // bt
    out = jnp.broadcast_to(bo, (m, bo.shape[-1])).astype(F32)   # out bias, hoisted
    for h in range(heads):                                      # static tiny loop
        q = jnp.dot(xn, get_wq(h), preferred_element_type=F32)    # [m, d]
        k = jnp.dot(ctxn, get_wk(h), preferred_element_type=F32)  # [mk, d]
        v = jnp.dot(ctxn, get_wv(h), preferred_element_type=F32)  # [mk, d]
        d = q.shape[-1]
        # lane dim unchanged; Nq/Nk are sublane multiples -> layout-free reshapes
        q3 = q.reshape(bt, nq, d)
        k3 = k.reshape(bt, nk, d)
        v3 = v.reshape(bt, nk, d)
        sim = jnp.einsum('bqd,bkd->bqk', q3, k3,
                         preferred_element_type=F32) * scale      # [bt, nq, nk]
        sim = sim - jnp.max(sim, axis=-1, keepdims=True)
        p = jnp.exp(sim)
        attn = p / jnp.sum(p, axis=-1, keepdims=True)
        oh = jnp.einsum('bqk,bkd->bqd', attn, v3,
                        preferred_element_type=F32)               # [bt, nq, d]
        out = out + jnp.dot(oh.reshape(m, d), get_wo(h),
                            preferred_element_type=F32)           # fold out-proj
    return out


def _feedforward(xn, w1, b1, w2, b2, hid):
    # Fused GEGLU up-projection: one [D, 2*hid] matmul + one bias add, then split
    # value/gate halves at the 128-aligned lane offset `hid` (free).
    y = jnp.dot(xn, w1, preferred_element_type=F32) + b1
    a = y[:, :hid]
    g = y[:, hid:]
    return jnp.dot(a * _gelu_exact(g), w2, preferred_element_type=F32) + b2


# ------------------------------- fused kernel --------------------------------

def _codebook_attn_kernel(x_ref, cb_ref, rows_d_ref, rows_c_ref, rows_h_ref,
                          cwq_ref, cwkv_ref, cwo_ref, cw1_ref, cw2_ref,
                          swqkv_ref, swo_ref, sw1_ref, sw2_ref, o_ref,
                          *, depth, cross_heads, latent_heads,
                          cross_scale, self_scale):
    bt, nq, d_lat = x_ref.shape
    _, nk, d_cb = cb_ref.shape
    hid = rows_h_ref.shape[-1] // 2
    m = bt * nq

    def row(ref, i):                     # [1, W] row from a packed bias slab
        return ref[pl.ds(i, 1)]

    x = x_ref[...].reshape(m, d_lat).astype(F32)        # [Bt*Nq, D]
    cb = cb_ref[...].reshape(bt * nk, d_cb).astype(F32)  # [Bt*Nk, Dc]

    # ---- cross-attention block (PreNorm on x and context) + residual ----
    xn = _ln(x, row(rows_d_ref, 0), row(rows_d_ref, 1))
    cbn = _ln(cb, row(rows_c_ref, 0), row(rows_c_ref, 1))
    hc = cross_heads
    x = _mh_attention(
        xn, cbn, bt, hc, cross_scale,
        get_wq=lambda h: cwq_ref[h],
        get_wk=lambda h: cwkv_ref[h],
        get_wv=lambda h: cwkv_ref[hc + h],
        get_wo=lambda h: cwo_ref[h],
        bo=row(rows_d_ref, 2)) + x

    # ---- cross feed-forward + residual ----
    xn = _ln(x, row(rows_d_ref, 3), row(rows_d_ref, 4))
    x = _feedforward(xn, cw1_ref[...], row(rows_h_ref, 0),
                     cw2_ref[...], row(rows_d_ref, 5), hid) + x

    # ---- self-attention blocks ----
    hs = latent_heads
    for l in range(depth):               # static loop; depth is tiny
        base = 6 + 6 * l
        qkv0 = l * 3 * hs
        xn = _ln(x, row(rows_d_ref, base + 0), row(rows_d_ref, base + 1))
        x = _mh_attention(
            xn, xn, bt, hs, self_scale,
            get_wq=lambda h, o=qkv0: swqkv_ref[o + h],
            get_wk=lambda h, o=qkv0: swqkv_ref[o + hs + h],
            get_wv=lambda h, o=qkv0: swqkv_ref[o + 2 * hs + h],
            get_wo=lambda h, o=l * hs: swo_ref[o + h],
            bo=row(rows_d_ref, base + 2)) + x
        xn = _ln(x, row(rows_d_ref, base + 3), row(rows_d_ref, base + 4))
        x = _feedforward(xn, sw1_ref[l], row(rows_h_ref, 1 + l),
                         sw2_ref[l], row(rows_d_ref, base + 5), hid) + x

    o_ref[...] = x.reshape(bt, nq, d_lat).astype(o_ref.dtype)


# ----------------------------- parameter packing ------------------------------

def _split_heads_cols(w, heads):
    # [din, heads*d] -> [heads, din, d]   (head-major column blocks)
    din, hd = w.shape
    d = hd // heads
    return jnp.stack([w[:, h * d:(h + 1) * d] for h in range(heads)], axis=0)


def _split_heads_rows(w, heads):
    # [heads*d, dout] -> [heads, d, dout]
    hd, dout = w.shape
    d = hd // heads
    return jnp.stack([w[h * d:(h + 1) * d, :] for h in range(heads)], axis=0)


def pack_params(params, *, cross_heads, latent_heads):
    """Packs the ~(17 + 15*depth) logical tensors into 12 tensors (review item 4)."""
    ca, cf = params['cross_attn'], params['cross_ff']
    rows_d = [params['cross_attn_ln_x']['g'], params['cross_attn_ln_x']['b'],
              ca['bo'],
              params['cross_ff_ln']['g'], params['cross_ff_ln']['b'],
              cf['b2']]
    rows_c = [params['cross_attn_ln_ctx']['g'], params['cross_attn_ln_ctx']['b']]
    rows_h = [cf['b1']]

    cwq = _split_heads_cols(ca['wq'], cross_heads)                 # [Hc, D, dc]
    cwkv = jnp.concatenate([_split_heads_cols(ca['wk'], cross_heads),
                            _split_heads_cols(ca['wv'], cross_heads)], axis=0)
    cwo = _split_heads_rows(ca['wo'], cross_heads)                 # [Hc, dc, D]

    swqkv, swo, sw1, sw2 = [], [], [], []
    for blk in params['self']:
        a, f = blk['attn'], blk['ff']
        rows_d += [blk['attn_ln']['g'], blk['attn_ln']['b'], a['bo'],
                   blk['ff_ln']['g'], blk['ff_ln']['b'], f['b2']]
        rows_h.append(f['b1'])
        swqkv.append(jnp.concatenate([_split_heads_cols(a['wq'], latent_heads),
                                      _split_heads_cols(a['wk'], latent_heads),
                                      _split_heads_cols(a['wv'], latent_heads)], axis=0))
        swo.append(_split_heads_rows(a['wo'], latent_heads))
        sw1.append(f['w1'])
        sw2.append(f['w2'])

    return dict(
        rows_d=jnp.stack(rows_d, axis=0),       # [6+6*depth, D]
        rows_c=jnp.stack(rows_c, axis=0),       # [2, Dc]
        rows_h=jnp.stack(rows_h, axis=0),       # [1+depth, 2*hid]
        cwq=cwq, cwkv=cwkv, cwo=cwo,
        cw1=cf['w1'], cw2=cf['w2'],
        swqkv=jnp.concatenate(swqkv, axis=0),   # [depth*3*H, D, d]
        swo=jnp.concatenate(swo, axis=0),       # [depth*H, d, D]
        sw1=jnp.stack(sw1, axis=0),             # [depth, D, 2*hid]
        sw2=jnp.stack(sw2, axis=0),             # [depth, hid, D]
    )


# ------------------------------- host wrapper ---------------------------------

def _pick_batch_tile(batch, target=8):
    # Largest divisor of `batch` <= target that still leaves >= 2 grid steps
    # (keeps both v7x TensorCores busy via the "parallel" grid axis).
    best = 1
    for bt in range(1, min(batch, target) + 1):
        if batch % bt == 0 and (batch // bt >= 2 or batch == 1):
            best = bt
    return best


def codebook_attention_forward(params, x, codebook, *, cross_heads, cross_dim_head,
                               latent_heads, latent_dim_head, batch_tile=None):
    B, Nq, D = x.shape
    _, Nk, Dc = codebook.shape
    depth = len(params['self'])
    assert depth >= 1

    packed = pack_params(params, cross_heads=cross_heads, latent_heads=latent_heads)
    bt = batch_tile if batch_tile is not None else _pick_batch_tile(B)
    assert B % bt == 0

    order = ('rows_d', 'rows_c', 'rows_h', 'cwq', 'cwkv', 'cwo', 'cw1', 'cw2',
             'swqkv', 'swo', 'sw1', 'sw2')
    ptensors = [packed[k] for k in order]

    def _const_spec(t):
        # Full-block, grid-invariant packed weight (DMA'd once, reused every step).
        return pl.BlockSpec(t.shape, lambda i, nd=t.ndim: (0,) * nd)

    in_specs = ([pl.BlockSpec((bt, Nq, D), lambda i: (i, 0, 0)),
                 pl.BlockSpec((bt, Nk, Dc), lambda i: (i, 0, 0))]
                + [_const_spec(t) for t in ptensors])

    kernel = functools.partial(
        _codebook_attn_kernel, depth=depth,
        cross_heads=cross_heads, latent_heads=latent_heads,
        cross_scale=cross_dim_head ** -0.5, self_scale=latent_dim_head ** -0.5)

    # TODO(synk): at much larger N/D the per-step whole-sequence block would need
    # M/K tiling against v7x's 64 MiB VMEM; unnecessary at these shapes.
    return pl.pallas_call(
        kernel,
        out_shape=jax.ShapeDtypeStruct((B, Nq, D), x.dtype),
        grid=(B // bt,),
        in_specs=in_specs,
        out_specs=pl.BlockSpec((bt, Nq, D), lambda i: (i, 0, 0)),
        compiler_params=pltpu.CompilerParams(
            dimension_semantics=("parallel",),
            vmem_limit_bytes=32 * 1024 * 1024),
    )(x, codebook, *ptensors)


# ------------------------------ parameter init --------------------------------

def init_params(key, *, codebook_dim, latent_dim, latent_heads, latent_dim_head,
                cross_heads, cross_dim_head, depth):
    keys = iter(jax.random.split(key, 512))

    def nrm(shape, scale=0.05):
        return scale * jax.random.normal(next(keys), shape, F32)

    def ln(d):
        return {'g': 1.0 + 0.1 * jax.random.normal(next(keys), (d,), F32),
                'b': 0.1 * jax.random.normal(next(keys), (d,), F32)}

    def attn(qdim, cdim, inner):
        # torch's to_kv is stored pre-split into wk / wv (column halves of [Dc, 2*inner]).
        return {'wq': nrm((qdim, inner)),
                'wk': nrm((cdim, inner)),
                'wv': nrm((cdim, inner)),
                'wo': nrm((inner, qdim)),
                'bo': nrm((qdim,))}

    def ff(d):
        hid = d * 4
        # torch's Linear(d, 2*hid): first `hid` columns = GEGLU value, last = gates.
        return {'w1': nrm((d, 2 * hid)), 'b1': nrm((2 * hid,)),
                'w2': nrm((hid, d)), 'b2': nrm((d,))}

    inner_c = cross_heads * cross_dim_head
    inner_s = latent_heads * latent_dim_head
    # NOTE: self.latents of the torch module is never used in forward(); not materialized.
    return {
        'cross_attn_ln_x': ln(latent_dim),
        'cross_attn_ln_ctx': ln(codebook_dim),
        'cross_attn': attn(latent_dim, codebook_dim, inner_c),
        'cross_ff_ln': ln(latent_dim),
        'cross_ff': ff(latent_dim),
        'self': [{'attn_ln': ln(latent_dim),
                  'attn': attn(latent_dim, latent_dim, inner_s),
                  'ff_ln': ln(latent_dim),
                  'ff': ff(latent_dim)} for _ in range(depth)],
    }


# ----------------------------- pure-JAX reference ------------------------------

def forward_ref(params, x, codebook, *, cross_heads, cross_dim_head,
                latent_heads, latent_dim_head):
    def lnr(t, p):
        m = t.mean(-1, keepdims=True)
        v = ((t - m) ** 2).mean(-1, keepdims=True)
        return (t - m) / jnp.sqrt(v + EPS) * p['g'] + p['b']

    def split_heads(t, heads):
        B, N, HD = t.shape
        d = HD // heads
        return t.reshape(B, N, heads, d).transpose(0, 2, 1, 3).reshape(B * heads, N, d)

    def merge_heads(t, batch, heads):
        BH, N, d = t.shape
        return t.reshape(batch, heads, N, d).transpose(0, 2, 1, 3).reshape(batch, N, heads * d)

    def attnr(xq, ctx, p, heads, scale):
        B = xq.shape[0]
        q = xq @ p['wq']; k = ctx @ p['wk']; v = ctx @ p['wv']
        qh, kh, vh = (split_heads(t, heads) for t in (q, k, v))
        sim = jnp.einsum('bid,bjd->bij', qh, kh) * scale
        attn = jax.nn.softmax(sim, axis=-1)
        oh = jnp.einsum('bij,bjd->bid', attn, vh)
        return merge_heads(oh, B, heads) @ p['wo'] + p['bo']

    def ffr(t, p):
        hid = p['w2'].shape[0]
        y = t @ p['w1'] + p['b1']
        a, g = y[..., :hid], y[..., hid:]
        return (a * jax.nn.gelu(g, approximate=False)) @ p['w2'] + p['b2']

    cross_scale = cross_dim_head ** -0.5
    self_scale = latent_dim_head ** -0.5
    x = attnr(lnr(x, params['cross_attn_ln_x']),
              lnr(codebook, params['cross_attn_ln_ctx']),
              params['cross_attn'], cross_heads, cross_scale) + x
    x = ffr(lnr(x, params['cross_ff_ln']), params['cross_ff']) + x
    for blk in params['self']:
        xn = lnr(x, blk['attn_ln'])
        x = attnr(xn, xn, blk['attn'], latent_heads, self_scale) + x
        x = ffr(lnr(x, blk['ff_ln']), blk['ff']) + x
    return x


# ------------------------------------ main -------------------------------------

if __name__ == "__main__":
    b = 4                    # batch_tile=2 -> grid=(2,): >=2 parallel steps (v7x)
    num_latents = 8          # k (query sequence length of `input`)
    latent_dim = 32
    codebook_len = 16        # n
    codebook_dim = 48
    depth = 1
    latent_heads = 4
    latent_dim_head = 8
    cross_heads = 1
    cross_dim_head = 16

    key = jax.random.PRNGKey(0)
    kp, kx, kc = jax.random.split(key, 3)

    params = init_params(kp, codebook_dim=codebook_dim, latent_dim=latent_dim,
                         latent_heads=latent_heads, latent_dim_head=latent_dim_head,
                         cross_heads=cross_heads, cross_dim_head=cross_dim_head,
                         depth=depth)

    x_in = jax.random.normal(kx, (b, num_latents, latent_dim), F32)
    codebook = jax.random.normal(kc, (b, codebook_len, codebook_dim), F32)

    fwd = jax.jit(functools.partial(
        codebook_attention_forward,
        cross_heads=cross_heads, cross_dim_head=cross_dim_head,
        latent_heads=latent_heads, latent_dim_head=latent_dim_head))

    out = jax.block_until_ready(fwd(params, x_in, codebook))

    ref = jax.block_until_ready(
        forward_ref(params, x_in, codebook,
                    cross_heads=cross_heads, cross_dim_head=cross_dim_head,
                    latent_heads=latent_heads, latent_dim_head=latent_dim_head))

    assert out.shape == (b, num_latents, latent_dim)
    max_err = float(jnp.max(jnp.abs(out - ref)))
    if max_err > 2e-4:
        raise AssertionError(f"Pallas output mismatch vs reference, max|diff|={max_err}")

    print("KERNEL_OK")
</pallas_src>

<mosaic_0001>
module attributes {stable_mosaic.version = 11 : i64} {
  func.func @_codebook_attn_kernel(%arg0: i32, %arg1: memref<2x8x32xf32, #tpu.memory_space<vmem>>, %arg2: memref<2x16x48xf32, #tpu.memory_space<vmem>>, %arg3: memref<12x32xf32, #tpu.memory_space<vmem>>, %arg4: memref<2x48xf32, #tpu.memory_space<vmem>>, %arg5: memref<2x256xf32, #tpu.memory_space<vmem>>, %arg6: memref<1x32x16xf32, #tpu.memory_space<vmem>>, %arg7: memref<2x48x16xf32, #tpu.memory_space<vmem>>, %arg8: memref<1x16x32xf32, #tpu.memory_space<vmem>>, %arg9: memref<32x256xf32, #tpu.memory_space<vmem>>, %arg10: memref<128x32xf32, #tpu.memory_space<vmem>>, %arg11: memref<12x32x8xf32, #tpu.memory_space<vmem>>, %arg12: memref<4x8x32xf32, #tpu.memory_space<vmem>>, %arg13: memref<1x32x256xf32, #tpu.memory_space<vmem>>, %arg14: memref<1x128x32xf32, #tpu.memory_space<vmem>>, %arg15: memref<2x8x32xf32, #tpu.memory_space<vmem>>) attributes {dimension_semantics = [#tpu.dimension_semantics<parallel>], iteration_bounds = array<i64: 2>, scalar_prefetch = 0 : i64, scratch_operands = 0 : i64, tpu.core_type = #tpu.core_type<tc>, window_params = [{transform_indices = @transform_0, window_bounds = array<i64: 2, 8, 32>}, {transform_indices = @transform_1, window_bounds = array<i64: 2, 16, 48>}, {pipeline_mode = #tpu.pipeline_mode<synchronous>, transform_indices = @transform_2, window_bounds = array<i64: 12, 32>}, {pipeline_mode = #tpu.pipeline_mode<synchronous>, transform_indices = @transform_3, window_bounds = array<i64: 2, 48>}, {pipeline_mode = #tpu.pipeline_mode<synchronous>, transform_indices = @transform_4, window_bounds = array<i64: 2, 256>}, {pipeline_mode = #tpu.pipeline_mode<synchronous>, transform_indices = @transform_5, window_bounds = array<i64: 1, 32, 16>}, {pipeline_mode = #tpu.pipeline_mode<synchronous>, transform_indices = @transform_6, window_bounds = array<i64: 2, 48, 16>}, {pipeline_mode = #tpu.pipeline_mode<synchronous>, transform_indices = @transform_7, window_bounds = array<i64: 1, 16, 32>}, {pipeline_mode = #tpu.pipeline_mode<synchronous>, transform_indices = @transform_8, window_bounds = array<i64: 32, 256>}, {pipeline_mode = #tpu.pipeline_mode<synchronous>, transform_indices = @transform_9, window_bounds = array<i64: 128, 32>}, {pipeline_mode = #tpu.pipeline_mode<synchronous>, transform_indices = @transform_10, window_bounds = array<i64: 12, 32, 8>}, {pipeline_mode = #tpu.pipeline_mode<synchronous>, transform_indices = @transform_11, window_bounds = array<i64: 4, 8, 32>}, {pipeline_mode = #tpu.pipeline_mode<synchronous>, transform_indices = @transform_12, window_bounds = array<i64: 1, 32, 256>}, {pipeline_mode = #tpu.pipeline_mode<synchronous>, transform_indices = @transform_13, window_bounds = array<i64: 1, 128, 32>}, {transform_indices = @transform_14, window_bounds = array<i64: 2, 8, 32>}]} {
    %c0 = arith.constant 0 : index
    %c0_0 = arith.constant 0 : index
    %c0_1 = arith.constant 0 : index
    %0 = vector.load %arg1[%c0, %c0_0, %c0_1] : memref<2x8x32xf32, #tpu.memory_space<vmem>>, vector<2x8x32xf32>
    %1 = vector.shape_cast %0 : vector<2x8x32xf32> to vector<16x32xf32>
    %c0_2 = arith.constant 0 : index
    %c0_3 = arith.constant 0 : index
    %c0_4 = arith.constant 0 : index
    %2 = vector.load %arg2[%c0_2, %c0_3, %c0_4] : memref<2x16x48xf32, #tpu.memory_space<vmem>>, vector<2x16x48xf32>
    %3 = vector.shape_cast %2 : vector<2x16x48xf32> to vector<32x48xf32>
    %c0_5 = arith.constant 0 : index
    %c0_6 = arith.constant 0 : index
    %4 = vector.load %arg3[%c0_5, %c0_6] : memref<12x32xf32, #tpu.memory_space<vmem>>, vector<1x32xf32>
    %c1 = arith.constant 1 : index
    %c0_7 = arith.constant 0 : index
    %5 = vector.load %arg3[%c1, %c0_7] : memref<12x32xf32, #tpu.memory_space<vmem>>, vector<1x32xf32>
    %cst = arith.constant dense<0.000000e+00> : vector<16xf32>
    %6 = vector.multi_reduction <add>, %1, %cst [1] : vector<16x32xf32> to vector<16xf32>
    %7 = vector.shape_cast %6 : vector<16xf32> to vector<16x1xf32>
    %cst_8 = arith.constant 3.200000e+01 : f32
    %8 = vector.broadcast %cst_8 : f32 to vector<16x1xf32>
    %9 = arith.divf %7, %8 : vector<16x1xf32>
    %10 = vector.broadcast %9 : vector<16x1xf32> to vector<16x32xf32>
    %11 = arith.subf %1, %10 : vector<16x32xf32>
    %12 = arith.mulf %11, %11 : vector<16x32xf32>
    %cst_9 = arith.constant dense<0.000000e+00> : vector<16xf32>
    %13 = vector.multi_reduction <add>, %12, %cst_9 [1] : vector<16x32xf32> to vector<16xf32>
    %14 = vector.shape_cast %13 : vector<16xf32> to vector<16x1xf32>
    %cst_10 = arith.constant 3.200000e+01 : f32
    %15 = vector.broadcast %cst_10 : f32 to vector<16x1xf32>
    %16 = arith.divf %14, %15 : vector<16x1xf32>
    %17 = vector.broadcast %9 : vector<16x1xf32> to vector<16x32xf32>
    %18 = arith.subf %1, %17 : vector<16x32xf32>
    %cst_11 = arith.constant 9.99999974E-6 : f32
    %19 = vector.broadcast %cst_11 : f32 to vector<16x1xf32>
    %20 = arith.addf %16, %19 : vector<16x1xf32>
    %21 = math.rsqrt %20 : vector<16x1xf32>
    %22 = vector.broadcast %21 : vector<16x1xf32> to vector<16x32xf32>
    %23 = arith.mulf %18, %22 : vector<16x32xf32>
    %24 = vector.broadcast %4 : vector<1x32xf32> to vector<16x32xf32>
    %25 = arith.mulf %23, %24 : vector<16x32xf32>
    %26 = vector.broadcast %5 : vector<1x32xf32> to vector<16x32xf32>
    %27 = arith.addf %25, %26 : vector<16x32xf32>
    %c0_12 = arith.constant 0 : index
    %c0_13 = arith.constant 0 : index
    %28 = vector.load %arg4[%c0_12, %c0_13] : memref<2x48xf32, #tpu.memory_space<vmem>>, vector<1x48xf32>
    %c1_14 = arith.constant 1 : index
    %c0_15 = arith.constant 0 : index
    %29 = vector.load %arg4[%c1_14, %c0_15] : memref<2x48xf32, #tpu.memory_space<vmem>>, vector<1x48xf32>
    %cst_16 = arith.constant dense<0.000000e+00> : vector<32xf32>
    %30 = vector.multi_reduction <add>, %3, %cst_16 [1] : vector<32x48xf32> to vector<32xf32>
    %31 = vector.shape_cast %30 : vector<32xf32> to vector<32x1xf32>
    %cst_17 = arith.constant 4.800000e+01 : f32
    %32 = vector.broadcast %cst_17 : f32 to vector<32x1xf32>
    %33 = arith.divf %31, %32 : vector<32x1xf32>
    %34 = vector.broadcast %33 : vector<32x1xf32> to vector<32x48xf32>
    %35 = arith.subf %3, %34 : vector<32x48xf32>
    %36 = arith.mulf %35, %35 : vector<32x48xf32>
    %cst_18 = arith.constant dense<0.000000e+00> : vector<32xf32>
    %37 = vector.multi_reduction <add>, %36, %cst_18 [1] : vector<32x48xf32> to vector<32xf32>
    %38 = vector.shape_cast %37 : vector<32xf32> to vector<32x1xf32>
    %cst_19 = arith.constant 4.800000e+01 : f32
    %39 = vector.broadcast %cst_19 : f32 to vector<32x1xf32>
    %40 = arith.divf %38, %39 : vector<32x1xf32>
    %41 = vector.broadcast %33 : vector<32x1xf32> to vector<32x48xf32>
    %42 = arith.subf %3, %41 : vector<32x48xf32>
    %cst_20 = arith.constant 9.99999974E-6 : f32
    %43 = vector.broadcast %cst_20 : f32 to vector<32x1xf32>
    %44 = arith.addf %40, %43 : vector<32x1xf32>
    %45 = math.rsqrt %44 : vector<32x1xf32>
    %46 = vector.broadcast %45 : vector<32x1xf32> to vector<32x48xf32>
    %47 = arith.mulf %42, %46 : vector<32x48xf32>
    %48 = vector.broadcast %28 : vector<1x48xf32> to vector<32x48xf32>
    %49 = arith.mulf %47, %48 : vector<32x48xf32>
    %50 = vector.broadcast %29 : vector<1x48xf32> to vector<32x48xf32>
    %51 = arith.addf %49, %50 : vector<32x48xf32>
    %c2 = arith.constant 2 : index
    %c0_21 = arith.constant 0 : index
    %52 = vector.load %arg3[%c2, %c0_21] : memref<12x32xf32, #tpu.memory_space<vmem>>, vector<1x32xf32>
    %53 = vector.shape_cast %52 : vector<1x32xf32> to vector<1x32xf32>
    %54 = vector.broadcast %53 : vector<1x32xf32> to vector<16x32xf32>
    %c0_22 = arith.constant 0 : index
    %c0_23 = arith.constant 0 : index
    %c0_24 = arith.constant 0 : index
    %55 = vector.load %arg6[%c0_22, %c0_23, %c0_24] : memref<1x32x16xf32, #tpu.memory_space<vmem>>, vector<1x32x16xf32>
    %56 = vector.shape_cast %55 : vector<1x32x16xf32> to vector<32x16xf32>
    %cst_25 = arith.constant dense<0.000000e+00> : vector<16x16xf32>
    %57 = tpu.matmul %27, %56, %cst_25 {dimension_numbers = #tpu.dot_dimension_numbers<[1], [0], [0], [1], [0, 0, 1, 1], [], []>} : vector<16x32xf32>, vector<32x16xf32>, vector<16x16xf32> -> vector<16x16xf32>
    %c0_26 = arith.constant 0 : index
    %c0_27 = arith.constant 0 : index
    %c0_28 = arith.constant 0 : index
    %58 = vector.load %arg7[%c0_26, %c0_27, %c0_28] : memref<2x48x16xf32, #tpu.memory_space<vmem>>, vector<1x48x16xf32>
    %59 = vector.shape_cast %58 : vector<1x48x16xf32> to vector<48x16xf32>
    %cst_29 = arith.constant dense<0.000000e+00> : vector<32x16xf32>
    %60 = tpu.matmul %51, %59, %cst_29 {dimension_numbers = #tpu.dot_dimension_numbers<[1], [0], [0], [1], [0, 0, 1, 1], [], []>} : vector<32x48xf32>, vector<48x16xf32>, vector<32x16xf32> -> vector<32x16xf32>
    %c1_30 = arith.constant 1 : index
    %c0_31 = arith.constant 0 : index
    %c0_32 = arith.constant 0 : index
    %61 = vector.load %arg7[%c1_30, %c0_31, %c0_32] : memref<2x48x16xf32, #tpu.memory_space<vmem>>, vector<1x48x16xf32>
    %62 = vector.shape_cast %61 : vector<1x48x16xf32> to vector<48x16xf32>
    %cst_33 = arith.constant dense<0.000000e+00> : vector<32x16xf32>
    %63 = tpu.matmul %51, %62, %cst_33 {dimension_numbers = #tpu.dot_dimension_numbers<[1], [0], [0], [1], [0, 0, 1, 1], [], []>} : vector<32x48xf32>, vector<48x16xf32>, vector<32x16xf32> -> vector<32x16xf32>
    %64 = vector.shape_cast %57 : vector<16x16xf32> to vector<2x8x16xf32>
    %65 = vector.shape_cast %60 : vector<32x16xf32> to vector<2x16x16xf32>
    %66 = vector.shape_cast %63 : vector<32x16xf32> to vector<2x16x16xf32>
    "tpu.trace_start"() <{level = 10 : i32, message = "bqd,bkd->bqk"}> : () -> ()
    %cst_34 = arith.constant dense<0.000000e+00> : vector<2x8x16xf32>
    %67 = tpu.matmul %64, %65, %cst_34 {dimension_numbers = #tpu.dot_dimension_numbers<[2], [2], [1], [1], [0, 0, 0, 1, 1, 1], [0], [0]>} : vector<2x8x16xf32>, vector<2x16x16xf32>, vector<2x8x16xf32> -> vector<2x8x16xf32>
    "tpu.trace_stop"() : () -> ()
    %cst_35 = arith.constant 2.500000e-01 : f32
    %68 = vector.broadcast %cst_35 : f32 to vector<2x8x16xf32>
    %69 = arith.mulf %67, %68 : vector<2x8x16xf32>
    %cst_36 = arith.constant dense<0xFF800000> : vector<2x8xf32>
    %70 = vector.multi_reduction <maximumf>, %69, %cst_36 [2] : vector<2x8x16xf32> to vector<2x8xf32>
    %71 = vector.shape_cast %70 : vector<2x8xf32> to vector<2x8x1xf32>
    %72 = vector.broadcast %71 : vector<2x8x1xf32> to vector<2x8x16xf32>
    %73 = arith.subf %69, %72 : vector<2x8x16xf32>
    %74 = math.exp %73 : vector<2x8x16xf32>
    %cst_37 = arith.constant dense<0.000000e+00> : vector<2x8xf32>
    %75 = vector.multi_reduction <add>, %74, %cst_37 [2] : vector<2x8x16xf32> to vector<2x8xf32>
    %76 = vector.shape_cast %75 : vector<2x8xf32> to vector<2x8x1xf32>
    %77 = vector.broadcast %76 : vector<2x8x1xf32> to vector<2x8x16xf32>
    %78 = arith.divf %74, %77 : vector<2x8x16xf32>
    "tpu.trace_start"() <{level = 10 : i32, message = "bqk,bkd->bqd"}> : () -> ()
    %cst_38 = arith.constant dense<0.000000e+00> : vector<2x8x16xf32>
    %79 = tpu.matmul %78, %66, %cst_38 {dimension_numbers = #tpu.dot_dimension_numbers<[2], [1], [1], [2], [0, 0, 0, 1, 1, 2], [0], [0]>} : vector<2x8x16xf32>, vector<2x16x16xf32>, vector<2x8x16xf32> -> vector<2x8x16xf32>
    "tpu.trace_stop"() : () -> ()
    %80 = vector.shape_cast %79 : vector<2x8x16xf32> to vector<16x16xf32>
    %c0_39 = arith.constant 0 : index
    %c0_40 = arith.constant 0 : index
    %c0_41 = arith.constant 0 : index
    %81 = vector.load %arg8[%c0_39, %c0_40, %c0_41] : memref<1x16x32xf32, #tpu.memory_space<vmem>>, vector<1x16x32xf32>
    %82 = vector.shape_cast %81 : vector<1x16x32xf32> to vector<16x32xf32>
    %cst_42 = arith.constant dense<0.000000e+00> : vector<16x32xf32>
    %83 = tpu.matmul %80, %82, %cst_42 {dimension_numbers = #tpu.dot_dimension_numbers<[1], [0], [0], [1], [0, 0, 1, 1], [], []>} : vector<16x16xf32>, vector<16x32xf32>, vector<16x32xf32> -> vector<16x32xf32>
    %84 = arith.addf %54, %83 : vector<16x32xf32>
    %85 = arith.addf %84, %1 : vector<16x32xf32>
    %c3 = arith.constant 3 : index
    %c0_43 = arith.constant 0 : index
    %86 = vector.load %arg3[%c3, %c0_43] : memref<12x32xf32, #tpu.memory_space<vmem>>, vector<1x32xf32>
    %c4 = arith.constant 4 : index
    %c0_44 = arith.constant 0 : index
    %87 = vector.load %arg3[%c4, %c0_44] : memref<12x32xf32, #tpu.memory_space<vmem>>, vector<1x32xf32>
    %cst_45 = arith.constant dense<0.000000e+00> : vector<16xf32>
    %88 = vector.multi_reduction <add>, %85, %cst_45 [1] : vector<16x32xf32> to vector<16xf32>
    %89 = vector.shape_cast %88 : vector<16xf32> to vector<16x1xf32>
    %cst_46 = arith.constant 3.200000e+01 : f32
    %90 = vector.broadcast %cst_46 : f32 to vector<16x1xf32>
    %91 = arith.divf %89, %90 : vector<16x1xf32>
    %92 = vector.broadcast %91 : vector<16x1xf32> to vector<16x32xf32>
    %93 = arith.subf %85, %92 : vector<16x32xf32>
    %94 = arith.mulf %93, %93 : vector<16x32xf32>
    %cst_47 = arith.constant dense<0.000000e+00> : vector<16xf32>
    %95 = vector.multi_reduction <add>, %94, %cst_47 [1] : vector<16x32xf32> to vector<16xf32>
    %96 = vector.shape_cast %95 : vector<16xf32> to vector<16x1xf32>
    %cst_48 = arith.constant 3.200000e+01 : f32
    %97 = vector.broadcast %cst_48 : f32 to vector<16x1xf32>
    %98 = arith.divf %96, %97 : vector<16x1xf32>
    %99 = vector.broadcast %91 : vector<16x1xf32> to vector<16x32xf32>
    %100 = arith.subf %85, %99 : vector<16x32xf32>
    %cst_49 = arith.constant 9.99999974E-6 : f32
    %101 = vector.broadcast %cst_49 : f32 to vector<16x1xf32>
    %102 = arith.addf %98, %101 : vector<16x1xf32>
    %103 = math.rsqrt %102 : vector<16x1xf32>
    %104 = vector.broadcast %103 : vector<16x1xf32> to vector<16x32xf32>
    %105 = arith.mulf %100, %104 : vector<16x32xf32>
    %106 = vector.broadcast %86 : vector<1x32xf32> to vector<16x32xf32>
    %107 = arith.mulf %105, %106 : vector<16x32xf32>
    %108 = vector.broadcast %87 : vector<1x32xf32> to vector<16x32xf32>
    %109 = arith.addf %107, %108 : vector<16x32xf32>
    %c0_50 = arith.constant 0 : index
    %c0_51 = arith.constant 0 : index
    %110 = vector.load %arg9[%c0_50, %c0_51] : memref<32x256xf32, #tpu.memory_space<vmem>>, vector<32x256xf32>
    %c0_52 = arith.constant 0 : index
    %c0_53 = arith.constant 0 : index
    %111 = vector.load %arg5[%c0_52, %c0_53] : memref<2x256xf32, #tpu.memory_space<vmem>>, vector<1x256xf32>
    %c0_54 = arith.constant 0 : index
    %c0_55 = arith.constant 0 : index
    %112 = vector.load %arg10[%c0_54, %c0_55] : memref<128x32xf32, #tpu.memory_space<vmem>>, vector<128x32xf32>
    %c5 = arith.constant 5 : index
    %c0_56 = arith.constant 0 : index
    %113 = vector.load %arg3[%c5, %c0_56] : memref<12x32xf32, #tpu.memory_space<vmem>>, vector<1x32xf32>
    %cst_57 = arith.constant dense<0.000000e+00> : vector<16x256xf32>
    %114 = tpu.matmul %109, %110, %cst_57 {dimension_numbers = #tpu.dot_dimension_numbers<[1], [0], [0], [1], [0, 0, 1, 1], [], []>} : vector<16x32xf32>, vector<32x256xf32>, vector<16x256xf32> -> vector<16x256xf32>
    %115 = vector.broadcast %111 : vector<1x256xf32> to vector<16x256xf32>
    %116 = arith.addf %114, %115 : vector<16x256xf32>
    %117 = vector.extract_strided_slice %116 {offsets = [0, 0], sizes = [16, 128], strides = [1, 1]} : vector<16x256xf32> to vector<16x128xf32>
    %118 = vector.extract_strided_slice %116 {offsets = [0, 128], sizes = [16, 128], strides = [1, 1]} : vector<16x256xf32> to vector<16x128xf32>
    %cst_58 = arith.constant 5.000000e-01 : f32
    %119 = vector.broadcast %cst_58 : f32 to vector<16x128xf32>
    %120 = arith.mulf %119, %118 : vector<16x128xf32>
    %cst_59 = arith.constant 0.707106769 : f32
    %121 = vector.broadcast %cst_59 : f32 to vector<16x128xf32>
    %122 = arith.mulf %118, %121 : vector<16x128xf32>
    %123 = math.erf %122 : vector<16x128xf32>
    %cst_60 = arith.constant 1.000000e+00 : f32
    %124 = vector.broadcast %cst_60 : f32 to vector<16x128xf32>
    %125 = arith.addf %124, %123 : vector<16x128xf32>
    %126 = arith.mulf %120, %125 : vector<16x128xf32>
    %127 = arith.mulf %117, %126 : vector<16x128xf32>
    %cst_61 = arith.constant dense<0.000000e+00> : vector<16x32xf32>
    %128 = tpu.matmul %127, %112, %cst_61 {dimension_numbers = #tpu.dot_dimension_numbers<[1], [0], [0], [1], [0, 0, 1, 1], [], []>} : vector<16x128xf32>, vector<128x32xf32>, vector<16x32xf32> -> vector<16x32xf32>
    %129 = vector.broadcast %113 : vector<1x32xf32> to vector<16x32xf32>
    %130 = arith.addf %128, %129 : vector<16x32xf32>
    %131 = arith.addf %130, %85 : vector<16x32xf32>
    %c6 = arith.constant 6 : index
    %c0_62 = arith.constant 0 : index
    %132 = vector.load %arg3[%c6, %c0_62] : memref<12x32xf32, #tpu.memory_space<vmem>>, vector<1x32xf32>
    %c7 = arith.constant 7 : index
    %c0_63 = arith.constant 0 : index
    %133 = vector.load %arg3[%c7, %c0_63] : memref<12x32xf32, #tpu.memory_space<vmem>>, vector<1x32xf32>
    %cst_64 = arith.constant dense<0.000000e+00> : vector<16xf32>
    %134 = vector.multi_reduction <add>, %131, %cst_64 [1] : vector<16x32xf32> to vector<16xf32>
    %135 = vector.shape_cast %134 : vector<16xf32> to vector<16x1xf32>
    %cst_65 = arith.constant 3.200000e+01 : f32
    %136 = vector.broadcast %cst_65 : f32 to vector<16x1xf32>
    %137 = arith.divf %135, %136 : vector<16x1xf32>
    %138 = vector.broadcast %137 : vector<16x1xf32> to vector<16x32xf32>
    %139 = arith.subf %131, %138 : vector<16x32xf32>
    %140 = arith.mulf %139, %139 : vector<16x32xf32>
    %cst_66 = arith.constant dense<0.000000e+00> : vector<16xf32>
    %141 = vector.multi_reduction <add>, %140, %cst_66 [1] : vector<16x32xf32> to vector<16xf32>
    %142 = vector.shape_cast %141 : vector<16xf32> to vector<16x1xf32>
    %cst_67 = arith.constant 3.200000e+01 : f32
    %143 = vector.broadcast %cst_67 : f32 to vector<16x1xf32>
    %144 = arith.divf %142, %143 : vector<16x1xf32>
    %145 = vector.broadcast %137 : vector<16x1xf32> to vector<16x32xf32>
    %146 = arith.subf %131, %145 : vector<16x32xf32>
    %cst_68 = arith.constant 9.99999974E-6 : f32
    %147 = vector.broadcast %cst_68 : f32 to vector<16x1xf32>
    %148 = arith.addf %144, %147 : vector<16x1xf32>
    %149 = math.rsqrt %148 : vector<16x1xf32>
    %150 = vector.broadcast %149 : vector<16x1xf32> to vector<16x32xf32>
    %151 = arith.mulf %146, %150 : vector<16x32xf32>
    %152 = vector.broadcast %132 : vector<1x32xf32> to vector<16x32xf32>
    %153 = arith.mulf %151, %152 : vector<16x32xf32>
    %154 = vector.broadcast %133 : vector<1x32xf32> to vector<16x32xf32>
    %155 = arith.addf %153, %154 : vector<16x32xf32>
    %c8 = arith.constant 8 : index
    %c0_69 = arith.constant 0 : index
    %156 = vector.load %arg3[%c8, %c0_69] : memref<12x32xf32, #tpu.memory_space<vmem>>, vector<1x32xf32>
    %157 = vector.shape_cast %156 : vector<1x32xf32> to vector<1x32xf32>
    %158 = vector.broadcast %157 : vector<1x32xf32> to vector<16x32xf32>
    %c0_70 = arith.constant 0 : index
    %c0_71 = arith.constant 0 : index
    %c0_72 = arith.constant 0 : index
    %159 = vector.load %arg11[%c0_70, %c0_71, %c0_72] : memref<12x32x8xf32, #tpu.memory_space<vmem>>, vector<1x32x8xf32>
    %160 = vector.shape_cast %159 : vector<1x32x8xf32> to vector<32x8xf32>
    %cst_73 = arith.constant dense<0.000000e+00> : vector<16x8xf32>
    %161 = tpu.matmul %155, %160, %cst_73 {dimension_numbers = #tpu.dot_dimension_numbers<[1], [0], [0], [1], [0, 0, 1, 1], [], []>} : vector<16x32xf32>, vector<32x8xf32>, vector<16x8xf32> -> vector<16x8xf32>
    %c4_74 = arith.constant 4 : index
    %c0_75 = arith.constant 0 : index
    %c0_76 = arith.constant 0 : index
    %162 = vector.load %arg11[%c4_74, %c0_75, %c0_76] : memref<12x32x8xf32, #tpu.memory_space<vmem>>, vector<1x32x8xf32>
    %163 = vector.shape_cast %162 : vector<1x32x8xf32> to vector<32x8xf32>
    %cst_77 = arith.constant dense<0.000000e+00> : vector<16x8xf32>
    %164 = tpu.matmul %155, %163, %cst_77 {dimension_numbers = #tpu.dot_dimension_numbers<[1], [0], [0], [1], [0, 0, 1, 1], [], []>} : vector<16x32xf32>, vector<32x8xf32>, vector<16x8xf32> -> vector<16x8xf32>
    %c8_78 = arith.constant 8 : index
    %c0_79 = arith.constant 0 : index
    %c0_80 = arith.constant 0 : index
    %165 = vector.load %arg11[%c8_78, %c0_79, %c0_80] : memref<12x32x8xf32, #tpu.memory_space<vmem>>, vector<1x32x8xf32>
    %166 = vector.shape_cast %165 : vector<1x32x8xf32> to vector<32x8xf32>
    %cst_81 = arith.constant dense<0.000000e+00> : vector<16x8xf32>
    %167 = tpu.matmul %155, %166, %cst_81 {dimension_numbers = #tpu.dot_dimension_numbers<[1], [0], [0], [1], [0, 0, 1, 1], [], []>} : vector<16x32xf32>, vector<32x8xf32>, vector<16x8xf32> -> vector<16x8xf32>
    %168 = vector.shape_cast %161 : vector<16x8xf32> to vector<2x8x8xf32>
    %169 = vector.shape_cast %164 : vector<16x8xf32> to vector<2x8x8xf32>
    %170 = vector.shape_cast %167 : vector<16x8xf32> to vector<2x8x8xf32>
    "tpu.trace_start"() <{level = 10 : i32, message = "bqd,bkd->bqk"}> : () -> ()
    %cst_82 = arith.constant dense<0.000000e+00> : vector<2x8x8xf32>
    %171 = tpu.matmul %168, %169, %cst_82 {dimension_numbers = #tpu.dot_dimension_numbers<[2], [2], [1], [1], [0, 0, 0, 1, 1, 1], [0], [0]>} : vector<2x8x8xf32>, vector<2x8x8xf32>, vector<2x8x8xf32> -> vector<2x8x8xf32>
    "tpu.trace_stop"() : () -> ()
    %cst_83 = arith.constant 0.353553385 : f32
    %172 = vector.broadcast %cst_83 : f32 to vector<2x8x8xf32>
    %173 = arith.mulf %171, %172 : vector<2x8x8xf32>
    %cst_84 = arith.constant dense<0xFF800000> : vector<2x8xf32>
    %174 = vector.multi_reduction <maximumf>, %173, %cst_84 [2] : vector<2x8x8xf32> to vector<2x8xf32>
    %175 = vector.shape_cast %174 : vector<2x8xf32> to vector<2x8x1xf32>
    %176 = vector.broadcast %175 : vector<2x8x1xf32> to vector<2x8x8xf32>
    %177 = arith.subf %173, %176 : vector<2x8x8xf32>
    %178 = math.exp %177 : vector<2x8x8xf32>
    %cst_85 = arith.constant dense<0.000000e+00> : vector<2x8xf32>
    %179 = vector.multi_reduction <add>, %178, %cst_85 [2] : vector<2x8x8xf32> to vector<2x8xf32>
    %180 = vector.shape_cast %179 : vector<2x8xf32> to vector<2x8x1xf32>
    %181 = vector.broadcast %180 : vector<2x8x1xf32> to vector<2x8x8xf32>
    %182 = arith.divf %178, %181 : vector<2x8x8xf32>
    "tpu.trace_start"() <{level = 10 : i32, message = "bqk,bkd->bqd"}> : () -> ()
    %cst_86 = arith.constant dense<0.000000e+00> : vector<2x8x8xf32>
    %183 = tpu.matmul %182, %170, %cst_86 {dimension_numbers = #tpu.dot_dimension_numbers<[2], [1], [1], [2], [0, 0, 0, 1, 1, 2], [0], [0]>} : vector<2x8x8xf32>, vector<2x8x8xf32>, vector<2x8x8xf32> -> vector<2x8x8xf32>
    "tpu.trace_stop"() : () -> ()
    %184 = vector.shape_cast %183 : vector<2x8x8xf32> to vector<16x8xf32>
    %c0_87 = arith.constant 0 : index
    %c0_88 = arith.constant 0 : index
    %c0_89 = arith.constant 0 : index
    %185 = vector.load %arg12[%c0_87, %c0_88, %c0_89] : memref<4x8x32xf32, #tpu.memory_space<vmem>>, vector<1x8x32xf32>
    %186 = vector.shape_cast %185 : vector<1x8x32xf32> to vector<8x32xf32>
    %cst_90 = arith.constant dense<0.000000e+00> : vector<16x32xf32>
    %187 = tpu.matmul %184, %186, %cst_90 {dimension_numbers = #tpu.dot_dimension_numbers<[1], [0], [0], [1], [0, 0, 1, 1], [], []>} : vector<16x8xf32>, vector<8x32xf32>, vector<16x32xf32> -> vector<16x32xf32>
    %188 = arith.addf %158, %187 : vector<16x32xf32>
    %c1_91 = arith.constant 1 : index
    %c0_92 = arith.constant 0 : index
    %c0_93 = arith.constant 0 : index
    %189 = vector.load %arg11[%c1_91, %c0_92, %c0_93] : memref<12x32x8xf32, #tpu.memory_space<vmem>>, vector<1x32x8xf32>
    %190 = vector.shape_cast %189 : vector<1x32x8xf32> to vector<32x8xf32>
    %cst_94 = arith.constant dense<0.000000e+00> : vector<16x8xf32>
    %191 = tpu.matmul %155, %190, %cst_94 {dimension_numbers = #tpu.dot_dimension_numbers<[1], [0], [0], [1], [0, 0, 1, 1], [], []>} : vector<16x32xf32>, vector<32x8xf32>, vector<16x8xf32> -> vector<16x8xf32>
    %c5_95 = arith.constant 5 : index
    %c0_96 = arith.constant 0 : index
    %c0_97 = arith.constant 0 : index
    %192 = vector.load %arg11[%c5_95, %c0_96, %c0_97] : memref<12x32x8xf32, #tpu.memory_space<vmem>>, vector<1x32x8xf32>
    %193 = vector.shape_cast %192 : vector<1x32x8xf32> to vector<32x8xf32>
    %cst_98 = arith.constant dense<0.000000e+00> : vector<16x8xf32>
    %194 = tpu.matmul %155, %193, %cst_98 {dimension_numbers = #tpu.dot_dimension_numbers<[1], [0], [0], [1], [0, 0, 1, 1], [], []>} : vector<16x32xf32>, vector<32x8xf32>, vector<16x8xf32> -> vector<16x8xf32>
    %c9 = arith.constant 9 : index
    %c0_99 = arith.constant 0 : index
    %c0_100 = arith.constant 0 : index
    %195 = vector.load %arg11[%c9, %c0_99, %c0_100] : memref<12x32x8xf32, #tpu.memory_space<vmem>>, vector<1x32x8xf32>
    %196 = vector.shape_cast %195 : vector<1x32x8xf32> to vector<32x8xf32>
    %cst_101 = arith.constant dense<0.000000e+00> : vector<16x8xf32>
    %197 = tpu.matmul %155, %196, %cst_101 {dimension_numbers = #tpu.dot_dimension_numbers<[1], [0], [0], [1], [0, 0, 1, 1], [], []>} : vector<16x32xf32>, vector<32x8xf32>, vector<16x8xf32> -> vector<16x8xf32>
    %198 = vector.shape_cast %191 : vector<16x8xf32> to vector<2x8x8xf32>
    %199 = vector.shape_cast %194 : vector<16x8xf32> to vector<2x8x8xf32>
    %200 = vector.shape_cast %197 : vector<16x8xf32> to vector<2x8x8xf32>
    "tpu.trace_start"() <{level = 10 : i32, message = "bqd,bkd->bqk"}> : () -> ()
    %cst_102 = arith.constant dense<0.000000e+00> : vector<2x8x8xf32>
    %201 = tpu.matmul %198, %199, %cst_102 {dimension_numbers = #tpu.dot_dimension_numbers<[2], [2], [1], [1], [0, 0, 0, 1, 1, 1], [0], [0]>} : vector<2x8x8xf32>, vector<2x8x8xf32>, vector<2x8x8xf32> -> vector<2x8x8xf32>
    "tpu.trace_stop"() : () -> ()
    %cst_103 = arith.constant 0.353553385 : f32
    %202 = vector.broadcast %cst_103 : f32 to vector<2x8x8xf32>
    %203 = arith.mulf %201, %202 : vector<2x8x8xf32>
    %cst_104 = arith.constant dense<0xFF800000> : vector<2x8xf32>
    %204 = vector.multi_reduction <maximumf>, %203, %cst_104 [2] : vector<2x8x8xf32> to vector<2x8xf32>
    %205 = vector.shape_cast %204 : vector<2x8xf32> to vector<2x8x1xf32>
    %206 = vector.broadcast %205 : vector<2x8x1xf32> to vector<2x8x8xf32>
    %207 = arith.subf %203, %206 : vector<2x8x8xf32>
    %208 = math.exp %207 : vector<2x8x8xf32>
    %cst_105 = arith.constant dense<0.000000e+00> : vector<2x8xf32>
    %209 = vector.multi_reduction <add>, %208, %cst_105 [2] : vector<2x8x8xf32> to vector<2x8xf32>
    %210 = vector.shape_cast %209 : vector<2x8xf32> to vector<2x8x1xf32>
    %211 = vector.broadcast %210 : vector<2x8x1xf32> to vector<2x8x8xf32>
    %212 = arith.divf %208, %211 : vector<2x8x8xf32>
    "tpu.trace_start"() <{level = 10 : i32, message = "bqk,bkd->bqd"}> : () -> ()
    %cst_106 = arith.constant dense<0.000000e+00> : vector<2x8x8xf32>
    %213 = tpu.matmul %212, %200, %cst_106 {dimension_numbers = #tpu.dot_dimension_numbers<[2], [1], [1], [2], [0, 0, 0, 1, 1, 2], [0], [0]>} : vector<2x8x8xf32>, vector<2x8x8xf32>, vector<2x8x8xf32> -> vector<2x8x8xf32>
    "tpu.trace_stop"() : () -> ()
    %214 = vector.shape_cast %213 : vector<2x8x8xf32> to vector<16x8xf32>
    %c1_107 = arith.constant 1 : index
    %c0_108 = arith.constant 0 : index
    %c0_109 = arith.constant 0 : index
    %215 = vector.load %arg12[%c1_107, %c0_108, %c0_109] : memref<4x8x32xf32, #tpu.memory_space<vmem>>, vector<1x8x32xf32>
    %216 = vector.shape_cast %215 : vector<1x8x32xf32> to vector<8x32xf32>
    %cst_110 = arith.constant dense<0.000000e+00> : vector<16x32xf32>
    %217 = tpu.matmul %214, %216, %cst_110 {dimension_numbers = #tpu.dot_dimension_numbers<[1], [0], [0], [1], [0, 0, 1, 1], [], []>} : vector<16x8xf32>, vector<8x32xf32>, vector<16x32xf32> -> vector<16x32xf32>
    %218 = arith.addf %188, %217 : vector<16x32xf32>
    %c2_111 = arith.constant 2 : index
    %c0_112 = arith.constant 0 : index
    %c0_113 = arith.constant 0 : index
    %219 = vector.load %arg11[%c2_111, %c0_112, %c0_113] : memref<12x32x8xf32, #tpu.memory_space<vmem>>, vector<1x32x8xf32>
    %220 = vector.shape_cast %219 : vector<1x32x8xf32> to vector<32x8xf32>
    %cst_114 = arith.constant dense<0.000000e+00> : vector<16x8xf32>
    %221 = tpu.matmul %155, %220, %cst_114 {dimension_numbers = #tpu.dot_dimension_numbers<[1], [0], [0], [1], [0, 0, 1, 1], [], []>} : vector<16x32xf32>, vector<32x8xf32>, vector<16x8xf32> -> vector<16x8xf32>
    %c6_115 = arith.constant 6 : index
    %c0_116 = arith.constant 0 : index
    %c0_117 = arith.constant 0 : index
    %222 = vector.load %arg11[%c6_115, %c0_116, %c0_117] : memref<12x32x8xf32, #tpu.memory_space<vmem>>, vector<1x32x8xf32>
    %223 = vector.shape_cast %222 : vector<1x32x8xf32> to vector<32x8xf32>
    %cst_118 = arith.constant dense<0.000000e+00> : vector<16x8xf32>
    %224 = tpu.matmul %155, %223, %cst_118 {dimension_numbers = #tpu.dot_dimension_numbers<[1], [0], [0], [1], [0, 0, 1, 1], [], []>} : vector<16x32xf32>, vector<32x8xf32>, vector<16x8xf32> -> vector<16x8xf32>
    %c10 = arith.constant 10 : index
    %c0_119 = arith.constant 0 : index
    %c0_120 = arith.constant 0 : index
    %225 = vector.load %arg11[%c10, %c0_119, %c0_120] : memref<12x32x8xf32, #tpu.memory_space<vmem>>, vector<1x32x8xf32>
    %226 = vector.shape_cast %225 : vector<1x32x8xf32> to vector<32x8xf32>
    %cst_121 = arith.constant dense<0.000000e+00> : vector<16x8xf32>
    %227 = tpu.matmul %155, %226, %cst_121 {dimension_numbers = #tpu.dot_dimension_numbers<[1], [0], [0], [1], [0, 0, 1, 1], [], []>} : vector<16x32xf32>, vector<32x8xf32>, vector<16x8xf32> -> vector<16x8xf32>
    %228 = vector.shape_cast %221 : vector<16x8xf32> to vector<2x8x8xf32>
    %229 = vector.shape_cast %224 : vector<16x8xf32> to vector<2x8x8xf32>
    %230 = vector.shape_cast %227 : vector<16x8xf32> to vector<2x8x8xf32>
    "tpu.trace_start"() <{level = 10 : i32, message = "bqd,bkd->bqk"}> : () -> ()
    %cst_122 = arith.constant dense<0.000000e+00> : vector<2x8x8xf32>
    %231 = tpu.matmul %228, %229, %cst_122 {dimension_numbers = #tpu.dot_dimension_numbers<[2], [2], [1], [1], [0, 0, 0, 1, 1, 1], [0], [0]>} : vector<2x8x8xf32>, vector<2x8x8xf32>, vector<2x8x8xf32> -> vector<2x8x8xf32>
    "tpu.trace_stop"() : () -> ()
    %cst_123 = arith.constant 0.353553385 : f32
    %232 = vector.broadcast %cst_123 : f32 to vector<2x8x8xf32>
    %233 = arith.mulf %231, %232 : vector<2x8x8xf32>
    %cst_124 = arith.constant dense<0xFF800000> : vector<2x8xf32>
    %234 = vector.multi_reduction <maximumf>, %233, %cst_124 [2] : vector<2x8x8xf32> to vector<2x8xf32>
    %235 = vector.shape_cast %234 : vector<2x8xf32> to vector<2x8x1xf32>
    %236 = vector.broadcast %235 : vector<2x8x1xf32> to vector<2x8x8xf32>
    %237 = arith.subf %233, %236 : vector<2x8x8xf32>
    %238 = math.exp %237 : vector<2x8x8xf32>
    %cst_125 = arith.constant dense<0.000000e+00> : vector<2x8xf32>
    %239 = vector.multi_reduction <add>, %238, %cst_125 [2] : vector<2x8x8xf32> to vector<2x8xf32>
    %240 = vector.shape_cast %239 : vector<2x8xf32> to vector<2x8x1xf32>
    %241 = vector.broadcast %240 : vector<2x8x1xf32> to vector<2x8x8xf32>
    %242 = arith.divf %238, %241 : vector<2x8x8xf32>
    "tpu.trace_start"() <{level = 10 : i32, message = "bqk,bkd->bqd"}> : () -> ()
    %cst_126 = arith.constant dense<0.000000e+00> : vector<2x8x8xf32>
    %243 = tpu.matmul %242, %230, %cst_126 {dimension_numbers = #tpu.dot_dimension_numbers<[2], [1], [1], [2], [0, 0, 0, 1, 1, 2], [0], [0]>} : vector<2x8x8xf32>, vector<2x8x8xf32>, vector<2x8x8xf32> -> vector<2x8x8xf32>
    "tpu.trace_stop"() : () -> ()
    %244 = vector.shape_cast %243 : vector<2x8x8xf32> to vector<16x8xf32>
    %c2_127 = arith.constant 2 : index
    %c0_128 = arith.constant 0 : index
    %c0_129 = arith.constant 0 : index
    %245 = vector.load %arg12[%c2_127, %c0_128, %c0_129] : memref<4x8x32xf32, #tpu.memory_space<vmem>>, vector<1x8x32xf32>
    %246 = vector.shape_cast %245 : vector<1x8x32xf32> to vector<8x32xf32>
    %cst_130 = arith.constant dense<0.000000e+00> : vector<16x32xf32>
    %247 = tpu.matmul %244, %246, %cst_130 {dimension_numbers = #tpu.dot_dimension_numbers<[1], [0], [0], [1], [0, 0, 1, 1], [], []>} : vector<16x8xf32>, vector<8x32xf32>, vector<16x32xf32> -> vector<16x32xf32>
    %248 = arith.addf %218, %247 : vector<16x32xf32>
    %c3_131 = arith.constant 3 : index
    %c0_132 = arith.constant 0 : index
    %c0_133 = arith.constant 0 : index
    %249 = vector.load %arg11[%c3_131, %c0_132, %c0_133] : memref<12x32x8xf32, #tpu.memory_space<vmem>>, vector<1x32x8xf32>
    %250 = vector.shape_cast %249 : vector<1x32x8xf32> to vector<32x8xf32>
    %cst_134 = arith.constant dense<0.000000e+00> : vector<16x8xf32>
    %251 = tpu.matmul %155, %250, %cst_134 {dimension_numbers = #tpu.dot_dimension_numbers<[1], [0], [0], [1], [0, 0, 1, 1], [], []>} : vector<16x32xf32>, vector<32x8xf32>, vector<16x8xf32> -> vector<16x8xf32>
    %c7_135 = arith.constant 7 : index
    %c0_136 = arith.constant 0 : index
    %c0_137 = arith.constant 0 : index
    %252 = vector.load %arg11[%c7_135, %c0_136, %c0_137] : memref<12x32x8xf32, #tpu.memory_space<vmem>>, vector<1x32x8xf32>
    %253 = vector.shape_cast %252 : vector<1x32x8xf32> to vector<32x8xf32>
    %cst_138 = arith.constant dense<0.000000e+00> : vector<16x8xf32>
    %254 = tpu.matmul %155, %253, %cst_138 {dimension_numbers = #tpu.dot_dimension_numbers<[1], [0], [0], [1], [0, 0, 1, 1], [], []>} : vector<16x32xf32>, vector<32x8xf32>, vector<16x8xf32> -> vector<16x8xf32>
    %c11 = arith.constant 11 : index
    %c0_139 = arith.constant 0 : index
    %c0_140 = arith.constant 0 : index
    %255 = vector.load %arg11[%c11, %c0_139, %c0_140] : memref<12x32x8xf32, #tpu.memory_space<vmem>>, vector<1x32x8xf32>
    %256 = vector.shape_cast %255 : vector<1x32x8xf32> to vector<32x8xf32>
    %cst_141 = arith.constant dense<0.000000e+00> : vector<16x8xf32>
    %257 = tpu.matmul %155, %256, %cst_141 {dimension_numbers = #tpu.dot_dimension_numbers<[1], [0], [0], [1], [0, 0, 1, 1], [], []>} : vector<16x32xf32>, vector<32x8xf32>, vector<16x8xf32> -> vector<16x8xf32>
    %258 = vector.shape_cast %251 : vector<16x8xf32> to vector<2x8x8xf32>
    %259 = vector.shape_cast %254 : vector<16x8xf32> to vector<2x8x8xf32>
    %260 = vector.shape_cast %257 : vector<16x8xf32> to vector<2x8x8xf32>
    "tpu.trace_start"() <{level = 10 : i32, message = "bqd,bkd->bqk"}> : () -> ()
    %cst_142 = arith.constant dense<0.000000e+00> : vector<2x8x8xf32>
    %261 = tpu.matmul %258, %259, %cst_142 {dimension_numbers = #tpu.dot_dimension_numbers<[2], [2], [1], [1], [0, 0, 0, 1, 1, 1], [0], [0]>} : vector<2x8x8xf32>, vector<2x8x8xf32>, vector<2x8x8xf32> -> vector<2x8x8xf32>
    "tpu.trace_stop"() : () -> ()
    %cst_143 = arith.constant 0.353553385 : f32
    %262 = vector.broadcast %cst_143 : f32 to vector<2x8x8xf32>
    %263 = arith.mulf %261, %262 : vector<2x8x8xf32>
    %cst_144 = arith.constant dense<0xFF800000> : vector<2x8xf32>
    %264 = vector.multi_reduction <maximumf>, %263, %cst_144 [2] : vector<2x8x8xf32> to vector<2x8xf32>
    %265 = vector.shape_cast %264 : vector<2x8xf32> to vector<2x8x1xf32>
    %266 = vector.broadcast %265 : vector<2x8x1xf32> to vector<2x8x8xf32>
    %267 = arith.subf %263, %266 : vector<2x8x8xf32>
    %268 = math.exp %267 : vector<2x8x8xf32>
    %cst_145 = arith.constant dense<0.000000e+00> : vector<2x8xf32>
    %269 = vector.multi_reduction <add>, %268, %cst_145 [2] : vector<2x8x8xf32> to vector<2x8xf32>
    %270 = vector.shape_cast %269 : vector<2x8xf32> to vector<2x8x1xf32>
    %271 = vector.broadcast %270 : vector<2x8x1xf32> to vector<2x8x8xf32>
    %272 = arith.divf %268, %271 : vector<2x8x8xf32>
    "tpu.trace_start"() <{level = 10 : i32, message = "bqk,bkd->bqd"}> : () -> ()
    %cst_146 = arith.constant dense<0.000000e+00> : vector<2x8x8xf32>
    %273 = tpu.matmul %272, %260, %cst_146 {dimension_numbers = #tpu.dot_dimension_numbers<[2], [1], [1], [2], [0, 0, 0, 1, 1, 2], [0], [0]>} : vector<2x8x8xf32>, vector<2x8x8xf32>, vector<2x8x8xf32> -> vector<2x8x8xf32>
    "tpu.trace_stop"() : () -> ()
    %274 = vector.shape_cast %273 : vector<2x8x8xf32> to vector<16x8xf32>
    %c3_147 = arith.constant 3 : index
    %c0_148 = arith.constant 0 : index
    %c0_149 = arith.constant 0 : index
    %275 = vector.load %arg12[%c3_147, %c0_148, %c0_149] : memref<4x8x32xf32, #tpu.memory_space<vmem>>, vector<1x8x32xf32>
    %276 = vector.shape_cast %275 : vector<1x8x32xf32> to vector<8x32xf32>
    %cst_150 = arith.constant dense<0.000000e+00> : vector<16x32xf32>
    %277 = tpu.matmul %274, %276, %cst_150 {dimension_numbers = #tpu.dot_dimension_numbers<[1], [0], [0], [1], [0, 0, 1, 1], [], []>} : vector<16x8xf32>, vector<8x32xf32>, vector<16x32xf32> -> vector<16x32xf32>
    %278 = arith.addf %248, %277 : vector<16x32xf32>
    %279 = arith.addf %278, %131 : vector<16x32xf32>
    %c9_151 = arith.constant 9 : index
    %c0_152 = arith.constant 0 : index
    %280 = vector.load %arg3[%c9_151, %c0_152] : memref<12x32xf32, #tpu.memory_space<vmem>>, vector<1x32xf32>
    %c10_153 = arith.constant 10 : index
    %c0_154 = arith.constant 0 : index
    %281 = vector.load %arg3[%c10_153, %c0_154] : memref<12x32xf32, #tpu.memory_space<vmem>>, vector<1x32xf32>
    %cst_155 = arith.constant dense<0.000000e+00> : vector<16xf32>
    %282 = vector.multi_reduction <add>, %279, %cst_155 [1] : vector<16x32xf32> to vector<16xf32>
    %283 = vector.shape_cast %282 : vector<16xf32> to vector<16x1xf32>
    %cst_156 = arith.constant 3.200000e+01 : f32
    %284 = vector.broadcast %cst_156 : f32 to vector<16x1xf32>
    %285 = arith.divf %283, %284 : vector<16x1xf32>
    %286 = vector.broadcast %285 : vector<16x1xf32> to vector<16x32xf32>
    %287 = arith.subf %279, %286 : vector<16x32xf32>
    %288 = arith.mulf %287, %287 : vector<16x32xf32>
    %cst_157 = arith.constant dense<0.000000e+00> : vector<16xf32>
    %289 = vector.multi_reduction <add>, %288, %cst_157 [1] : vector<16x32xf32> to vector<16xf32>
    %290 = vector.shape_cast %289 : vector<16xf32> to vector<16x1xf32>
    %cst_158 = arith.constant 3.200000e+01 : f32
    %291 = vector.broadcast %cst_158 : f32 to vector<16x1xf32>
    %292 = arith.divf %290, %291 : vector<16x1xf32>
    %293 = vector.broadcast %285 : vector<16x1xf32> to vector<16x32xf32>
    %294 = arith.subf %279, %293 : vector<16x32xf32>
    %cst_159 = arith.constant 9.99999974E-6 : f32
    %295 = vector.broadcast %cst_159 : f32 to vector<16x1xf32>
    %296 = arith.addf %292, %295 : vector<16x1xf32>
    %297 = math.rsqrt %296 : vector<16x1xf32>
    %298 = vector.broadcast %297 : vector<16x1xf32> to vector<16x32xf32>
    %299 = arith.mulf %294, %298 : vector<16x32xf32>
    %300 = vector.broadcast %280 : vector<1x32xf32> to vector<16x32xf32>
    %301 = arith.mulf %299, %300 : vector<16x32xf32>
    %302 = vector.broadcast %281 : vector<1x32xf32> to vector<16x32xf32>
    %303 = arith.addf %301, %302 : vector<16x32xf32>
    %c0_160 = arith.constant 0 : index
    %c0_161 = arith.constant 0 : index
    %c0_162 = arith.constant 0 : index
    %304 = vector.load %arg13[%c0_160, %c0_161, %c0_162] : memref<1x32x256xf32, #tpu.memory_space<vmem>>, vector<1x32x256xf32>
    %305 = vector.shape_cast %304 : vector<1x32x256xf32> to vector<32x256xf32>
    %c1_163 = arith.constant 1 : index
    %c0_164 = arith.constant 0 : index
    %306 = vector.load %arg5[%c1_163, %c0_164] : memref<2x256xf32, #tpu.memory_space<vmem>>, vector<1x256xf32>
    %c0_165 = arith.constant 0 : index
    %c0_166 = arith.constant 0 : index
    %c0_167 = arith.constant 0 : index
    %307 = vector.load %arg14[%c0_165, %c0_166, %c0_167] : memref<1x128x32xf32, #tpu.memory_space<vmem>>, vector<1x128x32xf32>
    %308 = vector.shape_cast %307 : vector<1x128x32xf32> to vector<128x32xf32>
    %c11_168 = arith.constant 11 : index
    %c0_169 = arith.constant 0 : index
    %309 = vector.load %arg3[%c11_168, %c0_169] : memref<12x32xf32, #tpu.memory_space<vmem>>, vector<1x32xf32>
    %cst_170 = arith.constant dense<0.000000e+00> : vector<16x256xf32>
    %310 = tpu.matmul %303, %305, %cst_170 {dimension_numbers = #tpu.dot_dimension_numbers<[1], [0], [0], [1], [0, 0, 1, 1], [], []>} : vector<16x32xf32>, vector<32x256xf32>, vector<16x256xf32> -> vector<16x256xf32>
    %311 = vector.broadcast %306 : vector<1x256xf32> to vector<16x256xf32>
    %312 = arith.addf %310, %311 : vector<16x256xf32>
    %313 = vector.extract_strided_slice %312 {offsets = [0, 0], sizes = [16, 128], strides = [1, 1]} : vector<16x256xf32> to vector<16x128xf32>
    %314 = vector.extract_strided_slice %312 {offsets = [0, 128], sizes = [16, 128], strides = [1, 1]} : vector<16x256xf32> to vector<16x128xf32>
    %cst_171 = arith.constant 5.000000e-01 : f32
    %315 = vector.broadcast %cst_171 : f32 to vector<16x128xf32>
    %316 = arith.mulf %315, %314 : vector<16x128xf32>
    %cst_172 = arith.constant 0.707106769 : f32
    %317 = vector.broadcast %cst_172 : f32 to vector<16x128xf32>
    %318 = arith.mulf %314, %317 : vector<16x128xf32>
    %319 = math.erf %318 : vector<16x128xf32>
    %cst_173 = arith.constant 1.000000e+00 : f32
    %320 = vector.broadcast %cst_173 : f32 to vector<16x128xf32>
    %321 = arith.addf %320, %319 : vector<16x128xf32>
    %322 = arith.mulf %316, %321 : vector<16x128xf32>
    %323 = arith.mulf %313, %322 : vector<16x128xf32>
    %cst_174 = arith.constant dense<0.000000e+00> : vector<16x32xf32>
    %324 = tpu.matmul %323, %308, %cst_174 {dimension_numbers = #tpu.dot_dimension_numbers<[1], [0], [0], [1], [0, 0, 1, 1], [], []>} : vector<16x128xf32>, vector<128x32xf32>, vector<16x32xf32> -> vector<16x32xf32>
    %325 = vector.broadcast %309 : vector<1x32xf32> to vector<16x32xf32>
    %326 = arith.addf %324, %325 : vector<16x32xf32>
    %327 = arith.addf %326, %279 : vector<16x32xf32>
    %328 = vector.shape_cast %327 : vector<16x32xf32> to vector<2x8x32xf32>
    %c0_175 = arith.constant 0 : index
    %c0_176 = arith.constant 0 : index
    %c0_177 = arith.constant 0 : index
    %329 = vector.load %arg15[%c0_175, %c0_176, %c0_177] : memref<2x8x32xf32, #tpu.memory_space<vmem>>, vector<2x8x32xf32>
    tpu.vector_store %arg15[%c0_175, %c0_176, %c0_177], %328 {strides = array<i32>} : memref<2x8x32xf32, #tpu.memory_space<vmem>>, vector<2x8x32xf32>,
    return
  }
  func.func @transform_0(%arg0: i32) -> (i32, i32, i32) {
    %c0_i32 = arith.constant 0 : i32
    %c0_i32_0 = arith.constant 0 : i32
    %c0_i32_1 = arith.constant 0 : i32
    return %arg0, %c0_i32, %c0_i32_0 : i32, i32, i32
  }
  func.func @transform_1(%arg0: i32) -> (i32, i32, i32) {
    %c0_i32 = arith.constant 0 : i32
    %c0_i32_0 = arith.constant 0 : i32
    %c0_i32_1 = arith.constant 0 : i32
    return %arg0, %c0_i32, %c0_i32_0 : i32, i32, i32
  }
  func.func @transform_2(%arg0: i32) -> (i32, i32) {
    %c0_i32 = arith.constant 0 : i32
    %c0_i32_0 = arith.constant 0 : i32
    %c0_i32_1 = arith.constant 0 : i32
    return %c0_i32, %c0_i32_0 : i32, i32
  }
  func.func @transform_3(%arg0: i32) -> (i32, i32) {
    %c0_i32 = arith.constant 0 : i32
    %c0_i32_0 = arith.constant 0 : i32
    %c0_i32_1 = arith.constant 0 : i32
    return %c0_i32, %c0_i32_0 : i32, i32
  }
  func.func @transform_4(%arg0: i32) -> (i32, i32) {
    %c0_i32 = arith.constant 0 : i32
    %c0_i32_0 = arith.constant 0 : i32
    %c0_i32_1 = arith.constant 0 : i32
    return %c0_i32, %c0_i32_0 : i32, i32
  }
  func.func @transform_5(%arg0: i32) -> (i32, i32, i32) {
    %c0_i32 = arith.constant 0 : i32
    %c0_i32_0 = arith.constant 0 : i32
    %c0_i32_1 = arith.constant 0 : i32
    %c0_i32_2 = arith.constant 0 : i32
    return %c0_i32, %c0_i32_0, %c0_i32_1 : i32, i32, i32
  }
  func.func @transform_6(%arg0: i32) -> (i32, i32, i32) {
    %c0_i32 = arith.constant 0 : i32
    %c0_i32_0 = arith.constant 0 : i32
    %c0_i32_1 = arith.constant 0 : i32
    %c0_i32_2 = arith.constant 0 : i32
    return %c0_i32, %c0_i32_0, %c0_i32_1 : i32, i32, i32
  }
  func.func @transform_7(%arg0: i32) -> (i32, i32, i32) {
    %c0_i32 = arith.constant 0 : i32
    %c0_i32_0 = arith.constant 0 : i32
    %c0_i32_1 = arith.constant 0 : i32
    %c0_i32_2 = arith.constant 0 : i32
    return %c0_i32, %c0_i32_0, %c0_i32_1 : i32, i32, i32
  }
  func.func @transform_8(%arg0: i32) -> (i32, i32) {
    %c0_i32 = arith.constant 0 : i32
    %c0_i32_0 = arith.constant 0 : i32
    %c0_i32_1 = arith.constant 0 : i32
    return %c0_i32, %c0_i32_0 : i32, i32
  }
  func.func @transform_9(%arg0: i32) -> (i32, i32) {
    %c0_i32 = arith.constant 0 : i32
    %c0_i32_0 = arith.constant 0 : i32
    %c0_i32_1 = arith.constant 0 : i32
    return %c0_i32, %c0_i32_0 : i32, i32
  }
  func.func @transform_10(%arg0: i32) -> (i32, i32, i32) {
    %c0_i32 = arith.constant 0 : i32
    %c0_i32_0 = arith.constant 0 : i32
    %c0_i32_1 = arith.constant 0 : i32
    %c0_i32_2 = arith.constant 0 : i32
    return %c0_i32, %c0_i32_0, %c0_i32_1 : i32, i32, i32
  }
  func.func @transform_11(%arg0: i32) -> (i32, i32, i32) {
    %c0_i32 = arith.constant 0 : i32
    %c0_i32_0 = arith.constant 0 : i32
    %c0_i32_1 = arith.constant 0 : i32
    %c0_i32_2 = arith.constant 0 : i32
    return %c0_i32, %c0_i32_0, %c0_i32_1 : i32, i32, i32
  }
  func.func @transform_12(%arg0: i32) -> (i32, i32, i32) {
    %c0_i32 = arith.constant 0 : i32
    %c0_i32_0 = arith.constant 0 : i32
    %c0_i32_1 = arith.constant 0 : i32
    %c0_i32_2 = arith.constant 0 : i32
    return %c0_i32, %c0_i32_0, %c0_i32_1 : i32, i32, i32
  }
  func.func @transform_13(%arg0: i32) -> (i32, i32, i32) {
    %c0_i32 = arith.constant 0 : i32
    %c0_i32_0 = arith.constant 0 : i32
    %c0_i32_1 = arith.constant 0 : i32
    %c0_i32_2 = arith.constant 0 : i32
    return %c0_i32, %c0_i32_0, %c0_i32_1 : i32, i32, i32
  }
  func.func @transform_14(%arg0: i32) -> (i32, i32, i32) {
    %c0_i32 = arith.constant 0 : i32
    %c0_i32_0 = arith.constant 0 : i32
    %c0_i32_1 = arith.constant 0 : i32
    return %arg0, %c0_i32, %c0_i32_0 : i32, i32, i32
  }
}

</mosaic_0001>

<llo_original>
// kernel: codebook_attention_forward.1
$region0: #{codebook_attention_forward.1}
  #allocation0 [shape = 'u32[]', space=smem, size = 0x4, offset = 0x4, fixed_abs, tag = 'smem constant byte address 0x4 - core index']
  #allocation1 [shape = 'u32[144,128]{1,0:T(1,128)}', space=vmem, size = 0x12000, scoped, tag = 'internal scratch']
  %s0 = inlined_call_operand.vmem [shape: f32[4,8,32], index: 0, kind: input, shape index: {}]
  %s1 = inlined_call_operand.vmem [shape: f32[4,16,48], index: 1, kind: input, shape index: {}]
  %s2 = inlined_call_operand.vmem [shape: f32[12,32], index: 2, kind: input, shape index: {}]
  %s3 = inlined_call_operand.vmem [shape: f32[2,48], index: 3, kind: input, shape index: {}]
  %s4 = inlined_call_operand.vmem [shape: f32[2,256], index: 4, kind: input, shape index: {}]
  %s5 = inlined_call_operand.vmem [shape: f32[1,32,16], index: 5, kind: input, shape index: {}]
  %s6 = inlined_call_operand.vmem [shape: f32[2,48,16], index: 6, kind: input, shape index: {}]
  %s7 = inlined_call_operand.vmem [shape: f32[1,16,32], index: 7, kind: input, shape index: {}]
  %s8 = inlined_call_operand.vmem [shape: f32[32,256], index: 8, kind: input, shape index: {}]
  %s9 = inlined_call_operand.vmem [shape: f32[128,32], index: 9, kind: input, shape index: {}]
  %s10 = inlined_call_operand.vmem [shape: f32[12,32,8], index: 10, kind: input, shape index: {}]
  %s11 = inlined_call_operand.vmem [shape: f32[4,8,32], index: 11, kind: input, shape index: {}]
  %s12 = inlined_call_operand.vmem [shape: f32[1,32,256], index: 12, kind: input, shape index: {}]
  %s13 = inlined_call_operand.vmem [shape: f32[1,128,32], index: 13, kind: input, shape index: {}]
  %s14 = inlined_call_operand.hbm [shape: f32[4,8,32], index: 14, kind: output, shape index: {}]
  %s15 = sld [smem:[#allocation0]]
  $region89: #{codebook_attention_forward.1} parent=0
    _
  %s17 = ssub.s32 1, %s15
  %s18 = scalar_select 0, %s17, %s15
  $region1: #{codebook_attention_forward.1} parent=0
    #allocation2 [shape = 'u8[16384]{0}', space=vmem, size = 0x4000, scoped, tag = 'output window, operand 0']
    #allocation3 [shape = 's32[2]{0}', space=sflag, size = 0x8, scoped, tag = 'scoped memory for codebook_attention_forward.1']
    %19 = vsyncpa [#allocation3], 0
    %s20 = scalar_lea.sflag [#allocation3], 1
    %21 = vsyncpa %s20, 0
    loop: start=0, step=1, limit=4
    $region2: #{codebook_attention_forward.1} parent=1 // loop_pre_header
      _
    $region3: #{codebook_attention_forward.1} parent=1 // loop_header
      %s23 = sphi 0, %s27
      %p24 = scmp.ge.s32.totalorder %s23, 4
      %s33 = sphi 0, %s35
      %s36 = sphi 0, %s33
      %s37 = sphi 0, %s36
      %s53 = sphi 0, %s37
      %s59 = sphi 0, %s61
      %s62 = sphi 0, %s59
      %s63 = sphi 0, %s62
      %s79 = sphi 0, %s63
      %s83 = sphi 0, %s83
      %s85 = sphi 0, %s83
      %s86 = sphi 0, %s85
      %s100 = sphi 0, %s86
      %s104 = sphi 0, %s104
      %s106 = sphi 0, %s104
      %s107 = sphi 0, %s106
      %s121 = sphi 0, %s107
      %s125 = sphi 0, %s125
      %s127 = sphi 0, %s125
      %s128 = sphi 0, %s127
      %s142 = sphi 0, %s128
      %s146 = sphi 0, %s146
      %s148 = sphi 0, %s146
      %s149 = sphi 0, %s148
      %s163 = sphi 0, %s149
      %s167 = sphi 0, %s167
      %s169 = sphi 0, %s167
      %s170 = sphi 0, %s169
      %s184 = sphi 0, %s170
      %s188 = sphi 0, %s188
      %s190 = sphi 0, %s188
      %s191 = sphi 0, %s190
      %s205 = sphi 0, %s191
      %s209 = sphi 0, %s209
      %s211 = sphi 0, %s209
      %s212 = sphi 0, %s211
      %s226 = sphi 0, %s212
      %s230 = sphi 0, %s230
      %s232 = sphi 0, %s230
      %s233 = sphi 0, %s232
      %s247 = sphi 0, %s233
      %s251 = sphi 0, %s251
      %s253 = sphi 0, %s251
      %s254 = sphi 0, %s253
      %s268 = sphi 0, %s254
      %s272 = sphi 0, %s272
      %s274 = sphi 0, %s272
      %s275 = sphi 0, %s274
      %s289 = sphi 0, %s275
      %s293 = sphi 0, %s293
      %s295 = sphi 0, %s293
      %s296 = sphi 0, %s295
      %s310 = sphi 0, %s296
      %s314 = sphi 0, %s314
      %s316 = sphi 0, %s314
      %s317 = sphi 0, %s316
      %s331 = sphi 0, %s317
      %s337 = sphi 0, %s339
      %s340 = sphi 0, %s337
      %s341 = sphi 0, %s340
      %s357 = sphi 0, %s341
    $region4: #{codebook_attention_forward.1} parent=1 // loop_header_branch
      %26 = sbr.rel (%p24) target = $region8
    $region5: #{codebook_attention_forward.1} parent=1 // loop_body
      %s28 = ssub.s32 %s23, 1
      %s29 = ssub.s32 %s23, 2
      %s30 = sadd.s32 %s23, 1
      %s31 = ssub.s32 %s23, %s30
      %p32 = scmp.eq.s32.totalorder %s31, 0
      %s34 = sadd.s32 %s33, 1
      %s35 = scalar_select %p32, %s33, %s34
      %p38 = pneg %p32
      %p39 = scmp.eq.s32.totalorder %s23, 1
      %p40 = por %p38, %p39
      %p41 = scmp.ne.s32.totalorder %s33, %s36
      %p42 = scmp.eq.s32.totalorder %s23, 0
      %p43 = por %p41, %p42
      %p44 = scmp.ne.s32.totalorder %s33, %s36
      %p45 = scmp.eq.s32.totalorder %s28, 1
      %p46 = por %p44, %p45
      %p47 = scmp.ne.s32.totalorder %s36, %s37
      %p48 = scmp.eq.s32.totalorder %s28, 0
      %p49 = por %p47, %p48
      %p50 = scmp.ne.s32.totalorder %s36, %s37
      %p51 = scmp.eq.s32.totalorder %s29, 1
      %p52 = por %p50, %p51
      %p54 = scmp.ne.s32.totalorder %s37, %s53
      %p55 = scmp.eq.s32.totalorder %s29, 0
      %p56 = por %p54, %p55
      %s57 = ssub.s32 %s23, %s30
      %p58 = scmp.eq.s32.totalorder %s57, 0
      %s60 = sadd.s32 %s59, 1
      %s61 = scalar_select %p58, %s59, %s60
      %p64 = pneg %p58
      %p65 = scmp.eq.s32.totalorder %s23, 1
      %p66 = por %p64, %p65
      %p67 = scmp.ne.s32.totalorder %s59, %s62
      %p68 = scmp.eq.s32.totalorder %s23, 0
      %p69 = por %p67, %p68
      %p70 = scmp.ne.s32.totalorder %s59, %s62
      %p71 = scmp.eq.s32.totalorder %s28, 1
      %p72 = por %p70, %p71
      %p73 = scmp.ne.s32.totalorder %s62, %s63
      %p74 = scmp.eq.s32.totalorder %s28, 0
      %p75 = por %p73, %p74
      %p76 = scmp.ne.s32.totalorder %s62, %s63
      %p77 = scmp.eq.s32.totalorder %s29, 1
      %p78 = por %p76, %p77
      %p80 = scmp.ne.s32.totalorder %s63, %s79
      %p81 = scmp.eq.s32.totalorder %s29, 0
      %p82 = por %p80, %p81
      %s84 = sadd.s32 %s83, 1
      %p87 = scmp.eq.s32.totalorder %s23, 1
      %p88 = scmp.ne.s32.totalorder %s83, %s85
      %p89 = scmp.eq.s32.totalorder %s23, 0
      %p90 = por %p88, %p89
      %p91 = scmp.ne.s32.totalorder %s83, %s85
      %p92 = scmp.eq.s32.totalorder %s28, 1
      %p93 = por %p91, %p92
      %p94 = scmp.ne.s32.totalorder %s85, %s86
      %p95 = scmp.eq.s32.totalorder %s28, 0
      %p96 = por %p94, %p95
      %p97 = scmp.ne.s32.totalorder %s85, %s86
      %p98 = scmp.eq.s32.totalorder %s29, 1
      %p99 = por %p97, %p98
      %p101 = scmp.ne.s32.totalorder %s86, %s100
      %p102 = scmp.eq.s32.totalorder %s29, 0
      %p103 = por %p101, %p102
      %s105 = sadd.s32 %s104, 1
      %p108 = scmp.eq.s32.totalorder %s23, 1
      %p109 = scmp.ne.s32.totalorder %s104, %s106
      %p110 = scmp.eq.s32.totalorder %s23, 0
      %p111 = por %p109, %p110
      %p112 = scmp.ne.s32.totalorder %s104, %s106
      %p113 = scmp.eq.s32.totalorder %s28, 1
      %p114 = por %p112, %p113
      %p115 = scmp.ne.s32.totalorder %s106, %s107
      %p116 = scmp.eq.s32.totalorder %s28, 0
      %p117 = por %p115, %p116
      %p118 = scmp.ne.s32.totalorder %s106, %s107
      %p119 = scmp.eq.s32.totalorder %s29, 1
      %p120 = por %p118, %p119
      %p122 = scmp.ne.s32.totalorder %s107, %s121
      %p123 = scmp.eq.s32.totalorder %s29, 0
      %p124 = por %p122, %p123
      %s126 = sadd.s32 %s125, 1
      %p129 = scmp.eq.s32.totalorder %s23, 1
      %p130 = scmp.ne.s32.totalorder %s125, %s127
      %p131 = scmp.eq.s32.totalorder %s23, 0
      %p132 = por %p130, %p131
      %p133 = scmp.ne.s32.totalorder %s125, %s127
      %p134 = scmp.eq.s32.totalorder %s28, 1
      %p135 = por %p133, %p134
      %p136 = scmp.ne.s32.totalorder %s127, %s128
      %p137 = scmp.eq.s32.totalorder %s28, 0
      %p138 = por %p136, %p137
      %p139 = scmp.ne.s32.totalorder %s127, %s128
      %p140 = scmp.eq.s32.totalorder %s29, 1
      %p141 = por %p139, %p140
      %p143 = scmp.ne.s32.totalorder %s128, %s142
      %p144 = scmp.eq.s32.totalorder %s29, 0
      %p145 = por %p143, %p144
      %s147 = sadd.s32 %s146, 1
      %p150 = scmp.eq.s32.totalorder %s23, 1
      %p151 = scmp.ne.s32.totalorder %s146, %s148
      %p152 = scmp.eq.s32.totalorder %s23, 0
      %p153 = por %p151, %p152
      %p154 = scmp.ne.s32.totalorder %s146, %s148
      %p155 = scmp.eq.s32.totalorder %s28, 1
      %p156 = por %p154, %p155
      %p157 = scmp.ne.s32.totalorder %s148, %s149
      %p158 = scmp.eq.s32.totalorder %s28, 0
      %p159 = por %p157, %p158
      %p160 = scmp.ne.s32.totalorder %s148, %s149
      %p161 = scmp.eq.s32.totalorder %s29, 1
      %p162 = por %p160, %p161
      %p164 = scmp.ne.s32.totalorder %s149, %s163
      %p165 = scmp.eq.s32.totalorder %s29, 0
      %p166 = por %p164, %p165
      %s168 = sadd.s32 %s167, 1
      %p171 = scmp.eq.s32.totalorder %s23, 1
      %p172 = scmp.ne.s32.totalorder %s167, %s169
      %p173 = scmp.eq.s32.totalorder %s23, 0
      %p174 = por %p172, %p173
      %p175 = scmp.ne.s32.totalorder %s167, %s169
      %p176 = scmp.eq.s32.totalorder %s28, 1
      %p177 = por %p175, %p176
      %p178 = scmp.ne.s32.totalorder %s169, %s170
      %p179 = scmp.eq.s32.totalorder %s28, 0
      %p180 = por %p178, %p179
      %p181 = scmp.ne.s32.totalorder %s169, %s170
      %p182 = scmp.eq.s32.totalorder %s29, 1
      %p183 = por %p181, %p182
      %p185 = scmp.ne.s32.totalorder %s170, %s184
      %p186 = scmp.eq.s32.totalorder %s29, 0
      %p187 = por %p185, %p186
      %s189 = sadd.s32 %s188, 1
      %p192 = scmp.eq.s32.totalorder %s23, 1
      %p193 = scmp.ne.s32.totalorder %s188, %s190
      %p194 = scmp.eq.s32.totalorder %s23, 0
      %p195 = por %p193, %p194
      %p196 = scmp.ne.s32.totalorder %s188, %s190
      %p197 = scmp.eq.s32.totalorder %s28, 1
      %p198 = por %p196, %p197
      %p199 = scmp.ne.s32.totalorder %s190, %s191
      %p200 = scmp.eq.s32.totalorder %s28, 0
      %p201 = por %p199, %p200
      %p202 = scmp.ne.s32.totalorder %s190, %s191
      %p203 = scmp.eq.s32.totalorder %s29, 1
      %p204 = por %p202, %p203
      %p206 = scmp.ne.s32.totalorder %s191, %s205
      %p207 = scmp.eq.s32.totalorder %s29, 0
      %p208 = por %p206, %p207
      %s210 = sadd.s32 %s209, 1
      %p213 = scmp.eq.s32.totalorder %s23, 1
      %p214 = scmp.ne.s32.totalorder %s209, %s211
      %p215 = scmp.eq.s32.totalorder %s23, 0
      %p216 = por %p214, %p215
      %p217 = scmp.ne.s32.totalorder %s209, %s211
      %p218 = scmp.eq.s32.totalorder %s28, 1
      %p219 = por %p217, %p218
      %p220 = scmp.ne.s32.totalorder %s211, %s212
      %p221 = scmp.eq.s32.totalorder %s28, 0
      %p222 = por %p220, %p221
      %p223 = scmp.ne.s32.totalorder %s211, %s212
      %p224 = scmp.eq.s32.totalorder %s29, 1
      %p225 = por %p223, %p224
      %p227 = scmp.ne.s32.totalorder %s212, %s226
      %p228 = scmp.eq.s32.totalorder %s29, 0
      %p229 = por %p227, %p228
      %s231 = sadd.s32 %s230, 1
      %p234 = scmp.eq.s32.totalorder %s23, 1
      %p235 = scmp.ne.s32.totalorder %s230, %s232
      %p236 = scmp.eq.s32.totalorder %s23, 0
      %p237 = por %p235, %p236
      %p238 = scmp.ne.s32.totalorder %s230, %s232
      %p239 = scmp.eq.s32.totalorder %s28, 1
      %p240 = por %p238, %p239
      %p241 = scmp.ne.s32.totalorder %s232, %s233
      %p242 = scmp.eq.s32.totalorder %s28, 0
      %p243 = por %p241, %p242
      %p244 = scmp.ne.s32.totalorder %s232, %s233
      %p245 = scmp.eq.s32.totalorder %s29, 1
      %p246 = por %p244, %p245
      %p248 = scmp.ne.s32.totalorder %s233, %s247
      %p249 = scmp.eq.s32.totalorder %s29, 0
      %p250 = por %p248, %p249
      %s252 = sadd.s32 %s251, 1
      %p255 = scmp.eq.s32.totalorder %s23, 1
      %p256 = scmp.ne.s32.totalorder %s251, %s253
      %p257 = scmp.eq.s32.totalorder %s23, 0
      %p258 = por %p256, %p257
      %p259 = scmp.ne.s32.totalorder %s251, %s253
      %p260 = scmp.eq.s32.totalorder %s28, 1
      %p261 = por %p259, %p260
      %p262 = scmp.ne.s32.totalorder %s253, %s254
      %p263 = scmp.eq.s32.totalorder %s28, 0
      %p264 = por %p262, %p263
      %p265 = scmp.ne.s32.totalorder %s253, %s254
      %p266 = scmp.eq.s32.totalorder %s29, 1
      %p267 = por %p265, %p266
      %p269 = scmp.ne.s32.totalorder %s254, %s268
      %p270 = scmp.eq.s32.totalorder %s29, 0
      %p271 = por %p269, %p270
      %s273 = sadd.s32 %s272, 1
      %p276 = scmp.eq.s32.totalorder %s23, 1
      %p277 = scmp.ne.s32.totalorder %s272, %s274
      %p278 = scmp.eq.s32.totalorder %s23, 0
      %p279 = por %p277, %p278
      %p280 = scmp.ne.s32.totalorder %s272, %s274
      %p281 = scmp.eq.s32.totalorder %s28, 1
      %p282 = por %p280, %p281
      %p283 = scmp.ne.s32.totalorder %s274, %s275
      %p284 = scmp.eq.s32.totalorder %s28, 0
      %p285 = por %p283, %p284
      %p286 = scmp.ne.s32.totalorder %s274, %s275
      %p287 = scmp.eq.s32.totalorder %s29, 1
      %p288 = por %p286, %p287
      %p290 = scmp.ne.s32.totalorder %s275, %s289
      %p291 = scmp.eq.s32.totalorder %s29, 0
      %p292 = por %p290, %p291
      %s294 = sadd.s32 %s293, 1
      %p297 = scmp.eq.s32.totalorder %s23, 1
      %p298 = scmp.ne.s32.totalorder %s293, %s295
      %p299 = scmp.eq.s32.totalorder %s23, 0
      %p300 = por %p298, %p299
      %p301 = scmp.ne.s32.totalorder %s293, %s295
      %p302 = scmp.eq.s32.totalorder %s28, 1
      %p303 = por %p301, %p302
      %p304 = scmp.ne.s32.totalorder %s295, %s296
      %p305 = scmp.eq.s32.totalorder %s28, 0
      %p306 = por %p304, %p305
      %p307 = scmp.ne.s32.totalorder %s295, %s296
      %p308 = scmp.eq.s32.totalorder %s29, 1
      %p309 = por %p307, %p308
      %p311 = scmp.ne.s32.totalorder %s296, %s310
      %p312 = scmp.eq.s32.totalorder %s29, 0
      %p313 = por %p311, %p312
      %s315 = sadd.s32 %s314, 1
      %p318 = scmp.eq.s32.totalorder %s23, 1
      %p319 = scmp.ne.s32.totalorder %s314, %s316
      %p320 = scmp.eq.s32.totalorder %s23, 0
      %p321 = por %p319, %p320
      %p322 = scmp.ne.s32.totalorder %s314, %s316
      %p323 = scmp.eq.s32.totalorder %s28, 1
      %p324 = por %p322, %p323
      %p325 = scmp.ne.s32.totalorder %s316, %s317
      %p326 = scmp.eq.s32.totalorder %s28, 0
      %p327 = por %p325, %p326
      %p328 = scmp.ne.s32.totalorder %s316, %s317
      %p329 = scmp.eq.s32.totalorder %s29, 1
      %p330 = por %p328, %p329
      %p332 = scmp.ne.s32.totalorder %s317, %s331
      %p333 = scmp.eq.s32.totalorder %s29, 0
      %p334 = por %p332, %p333
      %s335 = ssub.s32 %s23, %s30
      %p336 = scmp.eq.s32.totalorder %s335, 0
      %s338 = sadd.s32 %s337, 1
      %s339 = scalar_select %p336, %s337, %s338
      %p342 = pneg %p336
      %p343 = scmp.eq.s32.totalorder %s23, 1
      %p344 = por %p342, %p343
      %p345 = scmp.ne.s32.totalorder %s337, %s340
      %p346 = scmp.eq.s32.totalorder %s23, 0
      %p347 = por %p345, %p346
      %p348 = scmp.ne.s32.totalorder %s337, %s340
      %p349 = scmp.eq.s32.totalorder %s28, 1
      %p350 = por %p348, %p349
      %p351 = scmp.ne.s32.totalorder %s340, %s341
      %p352 = scmp.eq.s32.totalorder %s28, 0
      %p353 = por %p351, %p352
      %p354 = scmp.ne.s32.totalorder %s340, %s341
      %p355 = scmp.eq.s32.totalorder %s29, 1
      %p356 = por %p354, %p355
      %p358 = scmp.ne.s32.totalorder %s341, %s357
      %p359 = scmp.eq.s32.totalorder %s29, 0
      %p360 = por %p358, %p359
      %p361 = scmp.le.s32.totalorder 1, %s23
      %p362 = scmp.lt.s32.totalorder %s23, 3
      %p363 = pnand %p361, %p362
      %p364 = pneg %p363
      // Predicated region
      $region9: #{codebook_attention_forward.1} parent=5 // pred_check
        _
      $region10: #{codebook_attention_forward.1} parent=5 // pred_check_branch
        %366 = sbr.rel (%p363) target = $region12
      $region11: #{codebook_attention_forward.1} parent=5 // pred_region
        %s367 = ssub.s32 %s23, 1
        // Predicated region
        $region13: #{codebook_attention_forward.1} parent=11 // pred_check
          %p368 = pneg %p96
        $region14: #{codebook_attention_forward.1} parent=11 // pred_check_branch
          %370 = sbr.rel (%p368) target = $region16
        $region15: #{codebook_attention_forward.1} parent=11 // pred_region
          _
        $region16: #{codebook_attention_forward.1} parent=11 // pred_fallthru
          _
        // Predicated region
        $region17: #{codebook_attention_forward.1} parent=11 // pred_check
          %p371 = pneg %p117
        $region18: #{codebook_attention_forward.1} parent=11 // pred_check_branch
          %373 = sbr.rel (%p371) target = $region20
        $region19: #{codebook_attention_forward.1} parent=11 // pred_region
          _
        $region20: #{codebook_attention_forward.1} parent=11 // pred_fallthru
          _
        // Predicated region
        $region21: #{codebook_attention_forward.1} parent=11 // pred_check
          %p374 = pneg %p138
        $region22: #{codebook_attention_forward.1} parent=11 // pred_check_branch
          %376 = sbr.rel (%p374) target = $region24
        $region23: #{codebook_attention_forward.1} parent=11 // pred_region
          _
        $region24: #{codebook_attention_forward.1} parent=11 // pred_fallthru
          _
        // Predicated region
        $region25: #{codebook_attention_forward.1} parent=11 // pred_check
          %p377 = pneg %p159
        $region26: #{codebook_attention_forward.1} parent=11 // pred_check_branch
          %379 = sbr.rel (%p377) target = $region28
        $region27: #{codebook_attention_forward.1} parent=11 // pred_region
          _
        $region28: #{codebook_attention_forward.1} parent=11 // pred_fallthru
          _
        // Predicated region
        $region29: #{codebook_attention_forward.1} parent=11 // pred_check
          %p380 = pneg %p180
        $region30: #{codebook_attention_forward.1} parent=11 // pred_check_branch
          %382 = sbr.rel (%p380) target = $region32
        $region31: #{codebook_attention_forward.1} parent=11 // pred_region
          _
        $region32: #{codebook_attention_forward.1} parent=11 // pred_fallthru
          _
        // Predicated region
        $region33: #{codebook_attention_forward.1} parent=11 // pred_check
          %p383 = pneg %p201
        $region34: #{codebook_attention_forward.1} parent=11 // pred_check_branch
          %385 = sbr.rel (%p383) target = $region36
        $region35: #{codebook_attention_forward.1} parent=11 // pred_region
          _
        $region36: #{codebook_attention_forward.1} parent=11 // pred_fallthru
          _
        // Predicated region
        $region37: #{codebook_attention_forward.1} parent=11 // pred_check
          %p386 = pneg %p222
        $region38: #{codebook_attention_forward.1} parent=11 // pred_check_branch
          %388 = sbr.rel (%p386) target = $region40
        $region39: #{codebook_attention_forward.1} parent=11 // pred_region
          _
        $region40: #{codebook_attention_forward.1} parent=11 // pred_fallthru
          _
        // Predicated region
        $region41: #{codebook_attention_forward.1} parent=11 // pred_check
          %p389 = pneg %p243
        $region42: #{codebook_attention_forward.1} parent=11 // pred_check_branch
          %391 = sbr.rel (%p389) target = $region44
        $region43: #{codebook_attention_forward.1} parent=11 // pred_region
          _
        $region44: #{codebook_attention_forward.1} parent=11 // pred_fallthru
          _
        // Predicated region
        $region45: #{codebook_attention_forward.1} parent=11 // pred_check
          %p392 = pneg %p264
        $region46: #{codebook_attention_forward.1} parent=11 // pred_check_branch
          %394 = sbr.rel (%p392) target = $region48
        $region47: #{codebook_attention_forward.1} parent=11 // pred_region
          _
        $region48: #{codebook_attention_forward.1} parent=11 // pred_fallthru
          _
        // Predicated region
        $region49: #{codebook_attention_forward.1} parent=11 // pred_check
          %p395 = pneg %p285
        $region50: #{codebook_attention_forward.1} parent=11 // pred_check_branch
          %397 = sbr.rel (%p395) target = $region52
        $region51: #{codebook_attention_forward.1} parent=11 // pred_region
          _
        $region52: #{codebook_attention_forward.1} parent=11 // pred_fallthru
          _
        // Predicated region
        $region53: #{codebook_attention_forward.1} parent=11 // pred_check
          %p398 = pneg %p306
        $region54: #{codebook_attention_forward.1} parent=11 // pred_check_branch
          %400 = sbr.rel (%p398) target = $region56
        $region55: #{codebook_attention_forward.1} parent=11 // pred_region
          _
        $region56: #{codebook_attention_forward.1} parent=11 // pred_fallthru
          _
        // Predicated region
        $region57: #{codebook_attention_forward.1} parent=11 // pred_check
          %p401 = pneg %p327
        $region58: #{codebook_attention_forward.1} parent=11 // pred_check_branch
          %403 = sbr.rel (%p401) target = $region60
        $region59: #{codebook_attention_forward.1} parent=11 // pred_region
          _
        $region60: #{codebook_attention_forward.1} parent=11 // pred_fallthru
          _
      $region12: #{codebook_attention_forward.1} parent=5 // pred_fallthru
        _
      %p404 = scmp.lt.s32.totalorder %s23, 2
      // Predicated region
      $region61: #{codebook_attention_forward.1} parent=5 // pred_check
        %p405 = pneg %p404
      $region62: #{codebook_attention_forward.1} parent=5 // pred_check_branch
        %407 = sbr.rel (%p405) target = $region64
      $region63: #{codebook_attention_forward.1} parent=5 // pred_region
        // Predicated region
        $region65: #{codebook_attention_forward.1} parent=63 // pred_check
          %p408 = pneg %p43
        $region66: #{codebook_attention_forward.1} parent=63 // pred_check_branch
          %410 = sbr.rel (%p408) target = $region68
        $region67: #{codebook_attention_forward.1} parent=63 // pred_region
          %s411 = smul.u32 2, %s23
          %p412 = scmp.lt.s32.totalorder %s411, 3
          %s413 = scalar_select %p412, %s411, 3
          %s414 = smul.addr %s413, 8
          %s415 = scalar_lea.vmem %s0, %s414
          %s416 = smul.u32 2, %s23
        $region68: #{codebook_attention_forward.1} parent=63 // pred_fallthru
          _
        // Predicated region
        $region69: #{codebook_attention_forward.1} parent=63 // pred_check
          %p417 = pneg %p69
        $region70: #{codebook_attention_forward.1} parent=63 // pred_check_branch
          %419 = sbr.rel (%p417) target = $region72
        $region71: #{codebook_attention_forward.1} parent=63 // pred_region
          %s420 = smul.u32 2, %s23
          %p421 = scmp.lt.s32.totalorder %s420, 3
          %s422 = scalar_select %p421, %s420, 3
          %s423 = smul.addr %s422, 2
          %s424 = smul.addr %s423, 8
          %s425 = scalar_lea.vmem %s1, %s424
          %s426 = smul.u32 2, %s23
        $region72: #{codebook_attention_forward.1} parent=63 // pred_fallthru
          _
      $region64: #{codebook_attention_forward.1} parent=5 // pred_fallthru
        _
      %p427 = scmp.le.s32.totalorder 1, %s23
      %p428 = scmp.lt.s32.totalorder %s23, 3
      %p429 = pnand %p427, %p428
      %p430 = pneg %p429
      // Predicated region
      $region73: #{codebook_attention_forward.1} parent=5 // pred_check
        _
      $region74: #{codebook_attention_forward.1} parent=5 // pred_check_branch
        %432 = sbr.rel (%p429) target = $region76
      $region75: #{codebook_attention_forward.1} parent=5 // pred_region
        %s433 = ssub.s32 %s23, 1
        %s434 = smul.u32 2, %s28
        %p435 = scmp.lt.s32.totalorder %s434, 3
        %s436 = scalar_select %p435, %s434, 3
        %s437 = smul.addr %s436, 8
        %s438 = scalar_lea.vmem %s0, %s437
        %p439 = pneg %p49
        %p440 = pneg %p46
        %s441 = smul.u32 2, %s28
        %p442 = scmp.lt.s32.totalorder %s441, 3
        %s443 = scalar_select %p442, %s441, 3
        %s444 = smul.addr %s443, 2
        %s445 = smul.addr %s444, 8
        %s446 = scalar_lea.vmem %s1, %s445
        %p447 = pneg %p75
        %p448 = pneg %p72
        %p449 = pneg %p96
        %p450 = pneg %p93
        %p451 = pneg %p117
        %p452 = pneg %p114
        %p453 = pneg %p138
        %p454 = pneg %p135
        %p455 = pneg %p159
        %p456 = pneg %p156
        %p457 = pneg %p180
        %p458 = pneg %p177
        %p459 = pneg %p201
        %p460 = pneg %p198
        %p461 = pneg %p222
        %p462 = pneg %p219
        %p463 = pneg %p243
        %p464 = pneg %p240
        %p465 = pneg %p264
        %p466 = pneg %p261
        %p467 = pneg %p285
        %p468 = pneg %p282
        %p469 = pneg %p306
        %p470 = pneg %p303
        %p471 = pneg %p327
        %p472 = pneg %p324
        %p473 = pneg %p353
        %p474 = pneg %p350
        %s475 = sand.u32 %s340, 1
        %s476 = scalar_lea.sflag [#allocation3], %s475
        %s477 = sand.u32 %s340, 1
        %s478 = smul.addr %s477, 16
        %s479 = scalar_lea.vmem [#allocation2], %s478
        %s480 = smul.u32 2, %s28
        %p481 = scmp.lt.s32.totalorder %s480, 3
        %s482 = scalar_select %p481, %s480, 3
        %s483 = smul.addr %s482, 8
        %s484 = scalar_lea.vmem %s0, %s483
        %s485 = smul.u32 2, %s28
        %s486 = smul.u32 2, %s28
        %p487 = scmp.lt.s32.totalorder %s486, 3
        %s488 = scalar_select %p487, %s486, 3
        %s489 = smul.addr %s488, 2
        %s490 = smul.addr %s489, 8
        %s491 = scalar_lea.vmem %s1, %s490
        %s492 = smul.u32 2, %s28
        %s493 = smul.u32 2, %s28
        %v494 = vld [vmem:[%s484] sm:$0xff]
        %v495 = vld [vmem:[%s484 + $0x8] sm:$0xff]
        %v496 = vld [vmem:[%s491] sm:$0xff]
        %v497 = vld [vmem:[%s491 + $0x8] sm:$0xff]
        %v498 = vld [vmem:[%s491 + $0x10] sm:$0xff]
        %v499 = vld [vmem:[%s491 + $0x18] sm:$0xff]
        %v500 = vld [vmem:[%s2] sm:$0x1]
        %v501 = vld [vmem:[%s2 + $0x1] sm:$0x1]
        %vm502 = vcmask 261120
        %v503 = vsel %vm502, %v494, 0.0
        %504 = vadd.xlane.f32.xlu0 %v503
        %v505 = vpop.xlane.xlu0 %504
        %v506 = vsel %vm502, %v495, 0.0
        %507 = vadd.xlane.f32.xlu0 %v506
        %v508 = vpop.xlane.xlu0 %507
        %v509 = vrcp.pop 32.0
        %v510 = vmul.f32 %v505, %v509
        %v511 = vmul.f32 %v508, %v509
        %v512 = vsub.f32 %v494, %v510
        %v513 = vsub.f32 %v495, %v511
        %v514 = vmul.f32 %v512, %v512
        %v515 = vmul.f32 %v513, %v513
        %v516 = vsel %vm502, %v514, 0.0
        %517 = vadd.xlane.f32.xlu0 %v516
        %v518 = vpop.xlane.xlu0 %517
        %v519 = vsel %vm502, %v515, 0.0
        %520 = vadd.xlane.f32.xlu0 %v519
        %v521 = vpop.xlane.xlu0 %520
        %v522 = vmul.f32 %v518, %v509
        %v523 = vmul.f32 %v521, %v509
        %v524 = vadd.f32 %v522, 1e-05
        %v525 = vadd.f32 %v523, 1e-05
        %v526 = vrsqrt.pop %v524
        %v527 = vrsqrt.pop %v525
        %v528 = vmul.f32 %v512, %v526
        %v529 = vmul.f32 %v513, %v527
        %v530 = vlaneseq
        %v531 = vshrl.u32 %v530, 7
        %v532 = vsub.s32 0, %v531
        %v533 = vrot.slane %v500, %v532
        %v534 = vmul.f32 %v528, %v533
        %v535 = vmul.f32 %v529, %v533
        %v536 = vlaneseq
        %v537 = vshrl.u32 %v536, 7
        %v538 = vsub.s32 0, %v537
        %v539 = vrot.slane %v501, %v538
        %v540 = vadd.f32 %v534, %v539
        %v541 = vadd.f32 %v535, %v539
        %v542 = vld [vmem:[%s3] sm:$0x1]
        %v543 = vld [vmem:[%s3 + $0x1] sm:$0x1]
        %vm544 = vcmask 392192
        %v545 = vsel %vm544, %v496, 0.0
        %546 = vadd.xlane.f32.xlu0 %v545
        %v547 = vpop.xlane.xlu0 %546
        %v548 = vsel %vm544, %v497, 0.0
        %549 = vadd.xlane.f32.xlu0 %v548
        %v550 = vpop.xlane.xlu0 %549
        %v551 = vsel %vm544, %v498, 0.0
        %552 = vadd.xlane.f32.xlu0 %v551
        %v553 = vpop.xlane.xlu0 %552
        %v554 = vsel %vm544, %v499, 0.0
        %555 = vadd.xlane.f32.xlu0 %v554
        %v556 = vpop.xlane.xlu0 %555
        %v557 = vrcp.pop 48.0
        %v558 = vmul.f32 %v547, %v557
        %v559 = vmul.f32 %v550, %v557
        %v560 = vmul.f32 %v553, %v557
        %v561 = vmul.f32 %v556, %v557
        %v562 = vsub.f32 %v496, %v558
        %v563 = vsub.f32 %v497, %v559
        %v564 = vsub.f32 %v498, %v560
        %v565 = vsub.f32 %v499, %v561
        %v566 = vmul.f32 %v562, %v562
        %v567 = vmul.f32 %v563, %v563
        %v568 = vmul.f32 %v564, %v564
        %v569 = vmul.f32 %v565, %v565
        %v570 = vsel %vm544, %v566, 0.0
        %571 = vadd.xlane.f32.xlu0 %v570
        %v572 = vpop.xlane.xlu0 %571
        %v573 = vsel %vm544, %v567, 0.0
        %574 = vadd.xlane.f32.xlu0 %v573
        %v575 = vpop.xlane.xlu0 %574
        %v576 = vsel %vm544, %v568, 0.0
        %577 = vadd.xlane.f32.xlu0 %v576
        %v578 = vpop.xlane.xlu0 %577
        %v579 = vsel %vm544, %v569, 0.0
        %580 = vadd.xlane.f32.xlu0 %v579
        %v581 = vpop.xlane.xlu0 %580
        %v582 = vmul.f32 %v572, %v557
        %v583 = vmul.f32 %v575, %v557
        %v584 = vmul.f32 %v578, %v557
        %v585 = vmul.f32 %v581, %v557
        %v586 = vadd.f32 %v582, 1e-05
        %v587 = vadd.f32 %v583, 1e-05
        %v588 = vadd.f32 %v584, 1e-05
        %v589 = vadd.f32 %v585, 1e-05
        %v590 = vrsqrt.pop %v586
        %v591 = vrsqrt.pop %v587
        %v592 = vrsqrt.pop %v588
        %v593 = vrsqrt.pop %v589
        %v594 = vmul.f32 %v562, %v590
        %v595 = vmul.f32 %v563, %v591
        %v596 = vmul.f32 %v564, %v592
        %v597 = vmul.f32 %v565, %v593
        %v598 = vlaneseq
        %v599 = vshrl.u32 %v598, 7
        %v600 = vsub.s32 0, %v599
        %v601 = vrot.slane %v542, %v600
        %v602 = vmul.f32 %v594, %v601
        %v603 = vmul.f32 %v595, %v601
        %v604 = vmul.f32 %v596, %v601
        %v605 = vmul.f32 %v597, %v601
        %v606 = vlaneseq
        %v607 = vshrl.u32 %v606, 7
        %v608 = vsub.s32 0, %v607
        %v609 = vrot.slane %v543, %v608
        %v610 = vadd.f32 %v602, %v609
        %v611 = vadd.f32 %v603, %v609
        %v612 = vadd.f32 %v604, %v609
        %v613 = vadd.f32 %v605, %v609
        %v614 = vld [vmem:[%s2 + $0x2] sm:$0x1]
        %v615 = vlaneseq
        %v616 = vshrl.u32 %v615, 7
        %v617 = vsub.s32 0, %v616
        %v618 = vrot.slane %v614, %v617
        %v619 = vld [vmem:[%s5] sm:$0xff]
        %v620 = vld [vmem:[%s5 + $0x8] sm:$0xff]
        %v621 = vld [vmem:[%s5 + $0x10] sm:$0xff]
        %v622 = vld [vmem:[%s5 + $0x18] sm:$0xff]
        %v624 = vsel %vm502, %v540, 0
        %v627 = vsel %vm502, %v541, 0
        %629 = vmatprep.subr.mxu0 0.0
        %630 = vmatpush1.msra.mxu0 %v619
        %631 = vmatprep.subr.mxu0 0.0
        %632 = vmatpush1.msra.mxu0 %v620
        %633 = vmatprep.subr.mxu0 0.0
        %634 = vmatpush1.msra.mxu0 %v621
        %635 = vmatprep.subr.mxu0 0.0
        %636 = vmatpush1.msra.mxu0 %v622
        %637 = vmatprep.subr.mxu0 0.0
        %638 = vmatpush1.msra.mxu0 0.0
        %639 = vmatprep.subr.mxu0 0.0
        %640 = vmatpush1.msra.mxu0 0.0
        %641 = vmatprep.subr.mxu0 0.0
        %642 = vmatpush1.msra.mxu0 0.0
        %643 = vmatprep.subr.mxu0 0.0
        %644 = vmatpush1.msra.mxu0 0.0
        %645 = vmatprep.subr.mxu0 0.0
        %646 = vmatpush1.msra.mxu0 0.0
        %647 = vmatprep.subr.mxu0 0.0
        %648 = vmatpush1.msra.mxu0 0.0
        %649 = vmatprep.subr.mxu0 0.0
        %650 = vmatpush1.msra.mxu0 0.0
        %651 = vmatprep.subr.mxu0 0.0
        %652 = vmatpush1.msra.mxu0 0.0
        %653 = vmatprep.subr.mxu0 0.0
        %654 = vmatpush1.msra.mxu0 0.0
        %655 = vmatprep.subr.mxu0 0.0
        %656 = vmatpush1.msra.mxu0 0.0
        %657 = vmatprep.subr.mxu0 0.0
        %658 = vmatpush1.msra.mxu0 0.0
        %659 = vmatprep.subr.mxu0 0.0
        %660 = vmatpush1.msra.mxu0 0.0
        %661 = vmatprep.subr.mxu0 0.0
        %662 = vmatpush1.msra.mxu0 0.0
        %663 = vmatprep.subr.mxu0 0.0
        %664 = vmatpush1.msra.mxu0 0.0
        %665 = vmatprep.subr.mxu0 0.0
        %666 = vmatpush1.msra.mxu0 0.0
        %667 = vmatprep.subr.mxu0 0.0
        %668 = vmatpush1.msra.mxu0 0.0
        %669 = vmatprep.subr.mxu0 0.0
        %670 = vmatpush1.msra.mxu0 0.0
        %671 = vmatprep.subr.mxu0 0.0
        %672 = vmatpush1.msra.mxu0 0.0
        %673 = vmatprep.subr.mxu0 0.0
        %674 = vmatpush1.msra.mxu0 0.0
        %675 = vmatprep.subr.mxu0 0.0
        %676 = vmatpush1.msra.mxu0 0.0
        %677 = vmatprep.subr.mxu0 0.0
        %678 = vmatpush1.msra.mxu0 0.0
        %679 = vmatprep.subr.mxu0 0.0
        %680 = vmatpush1.msra.mxu0 0.0
        %681 = vmatprep.subr.mxu0 0.0
        %682 = vmatpush1.msra.mxu0 0.0
        %683 = vmatprep.subr.mxu0 0.0
        %684 = vmatpush1.msra.mxu0 0.0
        %685 = vmatprep.subr.mxu0 0.0
        %686 = vmatpush1.msra.mxu0 0.0
        %687 = vmatprep.subr.mxu0 0.0
        %688 = vmatpush1.msra.mxu0 0.0
        %689 = vmatprep.subr.mxu0 0.0
        %690 = vmatpush1.msra.mxu0 0.0
        %691 = vmatprep.subr.mxu0 0.0
        %692 = vmatpush1.msra.mxu0 0.0
        %693 = vmatprep.mubr.f32.mxu0 0.0
        %694 = vmatmul.mubr.f32.gmra.mrb[0].mxu0 %v624
        %v695 = vpop.f32.mrb[0].mxu0
        %v696 = vadd.f32 0.0, %v695
        %v697 = vpop.f32.mrb[0].mxu0
        %698 = vmatprep.mubr.f32.mxu0 0.0
        %699 = vmatmul.mubr.f32.gmra.mrb[0].mxu0 %v627
        %v700 = vpop.f32.mrb[0].mxu0
        %v701 = vadd.f32 0.0, %v700
        %v702 = vpop.f32.mrb[0].mxu0
        %703 = vdwg.mxu0
        %v704 = vld [vmem:[%s6] sm:$0xff]
        %v705 = vld [vmem:[%s6 + $0x8] sm:$0xff]
        %v706 = vld [vmem:[%s6 + $0x10] sm:$0xff]
        %v707 = vld [vmem:[%s6 + $0x18] sm:$0xff]
        %v708 = vld [vmem:[%s6 + $0x20] sm:$0xff]
        %v709 = vld [vmem:[%s6 + $0x28] sm:$0xff]
        %v711 = vsel %vm544, %v610, 0
        %v714 = vsel %vm544, %v611, 0
        %v717 = vsel %vm544, %v612, 0
        %v720 = vsel %vm544, %v613, 0
        %722 = vmatprep.subr.mxu0 0.0
        %723 = vmatpush1.msra.mxu0 %v704
        %724 = vmatprep.subr.mxu0 0.0
        %725 = vmatpush1.msra.mxu0 %v705
        %726 = vmatprep.subr.mxu0 0.0
        %727 = vmatpush1.msra.mxu0 %v706
        %728 = vmatprep.subr.mxu0 0.0
        %729 = vmatpush1.msra.mxu0 %v707
        %730 = vmatprep.subr.mxu0 0.0
        %731 = vmatpush1.msra.mxu0 %v708
        %732 = vmatprep.subr.mxu0 0.0
        %733 = vmatpush1.msra.mxu0 %v709
        %734 = vmatprep.subr.mxu0 0.0
        %735 = vmatpush1.msra.mxu0 0.0
        %736 = vmatprep.subr.mxu0 0.0
        %737 = vmatpush1.msra.mxu0 0.0
        %738 = vmatprep.subr.mxu0 0.0
        %739 = vmatpush1.msra.mxu0 0.0
        %740 = vmatprep.subr.mxu0 0.0
        %741 = vmatpush1.msra.mxu0 0.0
        %742 = vmatprep.subr.mxu0 0.0
        %743 = vmatpush1.msra.mxu0 0.0
        %744 = vmatprep.subr.mxu0 0.0
        %745 = vmatpush1.msra.mxu0 0.0
        %746 = vmatprep.subr.mxu0 0.0
        %747 = vmatpush1.msra.mxu0 0.0
        %748 = vmatprep.subr.mxu0 0.0
        %749 = vmatpush1.msra.mxu0 0.0
        %750 = vmatprep.subr.mxu0 0.0
        %751 = vmatpush1.msra.mxu0 0.0
        %752 = vmatprep.subr.mxu0 0.0
        %753 = vmatpush1.msra.mxu0 0.0
        %754 = vmatprep.subr.mxu0 0.0
        %755 = vmatpush1.msra.mxu0 0.0
        %756 = vmatprep.subr.mxu0 0.0
        %757 = vmatpush1.msra.mxu0 0.0
        %758 = vmatprep.subr.mxu0 0.0
        %759 = vmatpush1.msra.mxu0 0.0
        %760 = vmatprep.subr.mxu0 0.0
        %761 = vmatpush1.msra.mxu0 0.0
        %762 = vmatprep.subr.mxu0 0.0
        %763 = vmatpush1.msra.mxu0 0.0
        %764 = vmatprep.subr.mxu0 0.0
        %765 = vmatpush1.msra.mxu0 0.0
        %766 = vmatprep.subr.mxu0 0.0
        %767 = vmatpush1.msra.mxu0 0.0
        %768 = vmatprep.subr.mxu0 0.0
        %769 = vmatpush1.msra.mxu0 0.0
        %770 = vmatprep.subr.mxu0 0.0
        %771 = vmatpush1.msra.mxu0 0.0
        %772 = vmatprep.subr.mxu0 0.0
        %773 = vmatpush1.msra.mxu0 0.0
        %774 = vmatprep.subr.mxu0 0.0
        %775 = vmatpush1.msra.mxu0 0.0
        %776 = vmatprep.subr.mxu0 0.0
        %777 = vmatpush1.msra.mxu0 0.0
        %778 = vmatprep.subr.mxu0 0.0
        %779 = vmatpush1.msra.mxu0 0.0
        %780 = vmatprep.subr.mxu0 0.0
        %781 = vmatpush1.msra.mxu0 0.0
        %782 = vmatprep.subr.mxu0 0.0
        %783 = vmatpush1.msra.mxu0 0.0
        %784 = vmatprep.subr.mxu0 0.0
        %785 = vmatpush1.msra.mxu0 0.0
        %786 = vmatprep.mubr.f32.mxu0 0.0
        %787 = vmatmul.mubr.f32.gmra.mrb[0].mxu0 %v711
        %v788 = vpop.f32.mrb[0].mxu0
        %v789 = vadd.f32 0.0, %v788
        %v790 = vpop.f32.mrb[0].mxu0
        %791 = vmatprep.mubr.f32.mxu0 0.0
        %792 = vmatmul.mubr.f32.gmra.mrb[0].mxu0 %v714
        %v793 = vpop.f32.mrb[0].mxu0
        %v794 = vadd.f32 0.0, %v793
        %v795 = vpop.f32.mrb[0].mxu0
        %796 = vmatprep.mubr.f32.mxu0 0.0
        %797 = vmatmul.mubr.f32.gmra.mrb[0].mxu0 %v717
        %v798 = vpop.f32.mrb[0].mxu0
        %v799 = vadd.f32 0.0, %v798
        %v800 = vpop.f32.mrb[0].mxu0
        %801 = vmatprep.mubr.f32.mxu0 0.0
        %802 = vmatmul.mubr.f32.gmra.mrb[0].mxu0 %v720
        %v803 = vpop.f32.mrb[0].mxu0
        %v804 = vadd.f32 0.0, %v803
        %v805 = vpop.f32.mrb[0].mxu0
        %806 = vdwg.mxu0
        %s807 = scalar_lea.vmem %s6, 48
        %v808 = vld [vmem:[%s807] sm:$0xff]
        %v809 = vld [vmem:[%s807 + $0x8] sm:$0xff]
        %v810 = vld [vmem:[%s807 + $0x10] sm:$0xff]
        %v811 = vld [vmem:[%s807 + $0x18] sm:$0xff]
        %v812 = vld [vmem:[%s807 + $0x20] sm:$0xff]
        %v813 = vld [vmem:[%s807 + $0x28] sm:$0xff]
        %814 = vmatprep.subr.mxu0 0.0
        %815 = vmatpush1.msra.mxu0 %v808
        %816 = vmatprep.subr.mxu0 0.0
        %817 = vmatpush1.msra.mxu0 %v809
        %818 = vmatprep.subr.mxu0 0.0
        %819 = vmatpush1.msra.mxu0 %v810
        %820 = vmatprep.subr.mxu0 0.0
        %821 = vmatpush1.msra.mxu0 %v811
        %822 = vmatprep.subr.mxu0 0.0
        %823 = vmatpush1.msra.mxu0 %v812
        %824 = vmatprep.subr.mxu0 0.0
        %825 = vmatpush1.msra.mxu0 %v813
        %826 = vmatprep.subr.mxu0 0.0
        %827 = vmatpush1.msra.mxu0 0.0
        %828 = vmatprep.subr.mxu0 0.0
        %829 = vmatpush1.msra.mxu0 0.0
        %830 = vmatprep.subr.mxu0 0.0
        %831 = vmatpush1.msra.mxu0 0.0
        %832 = vmatprep.subr.mxu0 0.0
        %833 = vmatpush1.msra.mxu0 0.0
        %834 = vmatprep.subr.mxu0 0.0
        %835 = vmatpush1.msra.mxu0 0.0
        %836 = vmatprep.subr.mxu0 0.0
        %837 = vmatpush1.msra.mxu0 0.0
        %838 = vmatprep.subr.mxu0 0.0
        %839 = vmatpush1.msra.mxu0 0.0
        %840 = vmatprep.subr.mxu0 0.0
        %841 = vmatpush1.msra.mxu0 0.0
        %842 = vmatprep.subr.mxu0 0.0
        %843 = vmatpush1.msra.mxu0 0.0
        %844 = vmatprep.subr.mxu0 0.0
        %845 = vmatpush1.msra.mxu0 0.0
        %846 = vmatprep.subr.mxu0 0.0
        %847 = vmatpush1.msra.mxu0 0.0
        %848 = vmatprep.subr.mxu0 0.0
        %849 = vmatpush1.msra.mxu0 0.0
        %850 = vmatprep.subr.mxu0 0.0
        %851 = vmatpush1.msra.mxu0 0.0
        %852 = vmatprep.subr.mxu0 0.0
        %853 = vmatpush1.msra.mxu0 0.0
        %854 = vmatprep.subr.mxu0 0.0
        %855 = vmatpush1.msra.mxu0 0.0
        %856 = vmatprep.subr.mxu0 0.0
        %857 = vmatpush1.msra.mxu0 0.0
        %858 = vmatprep.subr.mxu0 0.0
        %859 = vmatpush1.msra.mxu0 0.0
        %860 = vmatprep.subr.mxu0 0.0
        %861 = vmatpush1.msra.mxu0 0.0
        %862 = vmatprep.subr.mxu0 0.0
        %863 = vmatpush1.msra.mxu0 0.0
        %864 = vmatprep.subr.mxu0 0.0
        %865 = vmatpush1.msra.mxu0 0.0
        %866 = vmatprep.subr.mxu0 0.0
        %867 = vmatpush1.msra.mxu0 0.0
        %868 = vmatprep.subr.mxu0 0.0
        %869 = vmatpush1.msra.mxu0 0.0
        %870 = vmatprep.subr.mxu0 0.0
        %871 = vmatpush1.msra.mxu0 0.0
        %872 = vmatprep.subr.mxu0 0.0
        %873 = vmatpush1.msra.mxu0 0.0
        %874 = vmatprep.subr.mxu0 0.0
        %875 = vmatpush1.msra.mxu0 0.0
        %876 = vmatprep.subr.mxu0 0.0
        %877 = vmatpush1.msra.mxu0 0.0
        %878 = vmatprep.mubr.f32.mxu0 0.0
        %879 = vmatmul.mubr.f32.gmra.mrb[0].mxu0 %v711
        %v880 = vpop.f32.mrb[0].mxu0
        %v881 = vadd.f32 0.0, %v880
        %v882 = vpop.f32.mrb[0].mxu0
        %883 = vmatprep.mubr.f32.mxu0 0.0
        %884 = vmatmul.mubr.f32.gmra.mrb[0].mxu0 %v714
        %v885 = vpop.f32.mrb[0].mxu0
        %v886 = vadd.f32 0.0, %v885
        %v887 = vpop.f32.mrb[0].mxu0
        %888 = vmatprep.mubr.f32.mxu0 0.0
        %889 = vmatmul.mubr.f32.gmra.mrb[0].mxu0 %v717
        %v890 = vpop.f32.mrb[0].mxu0
        %v891 = vadd.f32 0.0, %v890
        %v892 = vpop.f32.mrb[0].mxu0
        %893 = vmatprep.mubr.f32.mxu0 0.0
        %894 = vmatmul.mubr.f32.gmra.mrb[0].mxu0 %v720
        %v895 = vpop.f32.mrb[0].mxu0
        %v896 = vadd.f32 0.0, %v895
        %v897 = vpop.f32.mrb[0].mxu0
        %898 = vdwg.mxu0
        %vm899 = vcmask 130048
        %v901 = vsel %vm899, %v696, 0
        %v904 = vsel %vm899, %v789, 0
        %v907 = vsel %vm899, %v794, 0
        %909 = vmatprep.subr.mxu0 0.0
        %910 = vmatpush1.xpose.msra.mxu0 %v904
        %911 = vmatprep.subr.mxu0 0.0
        %912 = vmatpush1.xpose.msra.mxu0 %v907
        %913 = vmatprep.subr.mxu0 0.0
        %914 = vmatpush1.xpose.msra.mxu0 0.0
        %915 = vmatprep.subr.mxu0 0.0
        %916 = vmatpush1.xpose.msra.mxu0 0.0
        %917 = vmatprep.subr.mxu0 0.0
        %918 = vmatpush1.xpose.msra.mxu0 0.0
        %919 = vmatprep.subr.mxu0 0.0
        %920 = vmatpush1.xpose.msra.mxu0 0.0
        %921 = vmatprep.subr.mxu0 0.0
        %922 = vmatpush1.xpose.msra.mxu0 0.0
        %923 = vmatprep.subr.mxu0 0.0
        %924 = vmatpush1.xpose.msra.mxu0 0.0
        %925 = vmatprep.subr.mxu0 0.0
        %926 = vmatpush1.xpose.msra.mxu0 0.0
        %927 = vmatprep.subr.mxu0 0.0
        %928 = vmatpush1.xpose.msra.mxu0 0.0
        %929 = vmatprep.subr.mxu0 0.0
        %930 = vmatpush1.xpose.msra.mxu0 0.0
        %931 = vmatprep.subr.mxu0 0.0
        %932 = vmatpush1.xpose.msra.mxu0 0.0
        %933 = vmatprep.subr.mxu0 0.0
        %934 = vmatpush1.xpose.msra.mxu0 0.0
        %935 = vmatprep.subr.mxu0 0.0
        %936 = vmatpush1.xpose.msra.mxu0 0.0
        %937 = vmatprep.subr.mxu0 0.0
        %938 = vmatpush1.xpose.msra.mxu0 0.0
        %939 = vmatprep.subr.mxu0 0.0
        %940 = vmatpush1.xpose.msra.mxu0 0.0
        %941 = vmatprep.subr.mxu0 0.0
        %942 = vmatpush1.xpose.msra.mxu0 0.0
        %943 = vmatprep.subr.mxu0 0.0
        %944 = vmatpush1.xpose.msra.mxu0 0.0
        %945 = vmatprep.subr.mxu0 0.0
        %946 = vmatpush1.xpose.msra.mxu0 0.0
        %947 = vmatprep.subr.mxu0 0.0
        %948 = vmatpush1.xpose.msra.mxu0 0.0
        %949 = vmatprep.subr.mxu0 0.0
        %950 = vmatpush1.xpose.msra.mxu0 0.0
        %951 = vmatprep.subr.mxu0 0.0
        %952 = vmatpush1.xpose.msra.mxu0 0.0
        %953 = vmatprep.subr.mxu0 0.0
        %954 = vmatpush1.xpose.msra.mxu0 0.0
        %955 = vmatprep.subr.mxu0 0.0
        %956 = vmatpush1.xpose.msra.mxu0 0.0
        %957 = vmatprep.subr.mxu0 0.0
        %958 = vmatpush1.xpose.msra.mxu0 0.0
        %959 = vmatprep.subr.mxu0 0.0
        %960 = vmatpush1.xpose.msra.mxu0 0.0
        %961 = vmatprep.subr.mxu0 0.0
        %962 = vmatpush1.xpose.msra.mxu0 0.0
        %963 = vmatprep.subr.mxu0 0.0
        %964 = vmatpush1.xpose.msra.mxu0 0.0
        %965 = vmatprep.subr.mxu0 0.0
        %966 = vmatpush1.xpose.msra.mxu0 0.0
        %967 = vmatprep.subr.mxu0 0.0
        %968 = vmatpush1.xpose.msra.mxu0 0.0
        %969 = vmatprep.subr.mxu0 0.0
        %970 = vmatpush1.xpose.msra.mxu0 0.0
        %971 = vmatprep.subr.mxu0 0.0
        %972 = vmatpush1.xpose.msra.mxu0 0.0
        %973 = vmatprep.mubr.f32.mxu0 0.0
        %974 = vmatmul.mubr.f32.gmra.mrb[0].mxu0 %v901
        %v975 = vpop.f32.mrb[0].mxu0
        %v976 = vadd.f32 0.0, %v975
        %v977 = vpop.f32.mrb[0].mxu0
        %978 = vdwg.mxu0
        %v980 = vsel %vm899, %v701, 0
        %v983 = vsel %vm899, %v799, 0
        %v986 = vsel %vm899, %v804, 0
        %988 = vmatprep.subr.mxu0 0.0
        %989 = vmatpush1.xpose.msra.mxu0 %v983
        %990 = vmatprep.subr.mxu0 0.0
        %991 = vmatpush1.xpose.msra.mxu0 %v986
        %992 = vmatprep.subr.mxu0 0.0
        %993 = vmatpush1.xpose.msra.mxu0 0.0
        %994 = vmatprep.subr.mxu0 0.0
        %995 = vmatpush1.xpose.msra.mxu0 0.0
        %996 = vmatprep.subr.mxu0 0.0
        %997 = vmatpush1.xpose.msra.mxu0 0.0
        %998 = vmatprep.subr.mxu0 0.0
        %999 = vmatpush1.xpose.msra.mxu0 0.0
        %1000 = vmatprep.subr.mxu0 0.0
        %1001 = vmatpush1.xpose.msra.mxu0 0.0
        %1002 = vmatprep.subr.mxu0 0.0
        %1003 = vmatpush1.xpose.msra.mxu0 0.0
        %1004 = vmatprep.subr.mxu0 0.0
        %1005 = vmatpush1.xpose.msra.mxu0 0.0
        %1006 = vmatprep.subr.mxu0 0.0
        %1007 = vmatpush1.xpose.msra.mxu0 0.0
        %1008 = vmatprep.subr.mxu0 0.0
        %1009 = vmatpush1.xpose.msra.mxu0 0.0
        %1010 = vmatprep.subr.mxu0 0.0
        %1011 = vmatpush1.xpose.msra.mxu0 0.0
        %1012 = vmatprep.subr.mxu0 0.0
        %1013 = vmatpush1.xpose.msra.mxu0 0.0
        %1014 = vmatprep.subr.mxu0 0.0
        %1015 = vmatpush1.xpose.msra.mxu0 0.0
        %1016 = vmatprep.subr.mxu0 0.0
        %1017 = vmatpush1.xpose.msra.mxu0 0.0
        %1018 = vmatprep.subr.mxu0 0.0
        %1019 = vmatpush1.xpose.msra.mxu0 0.0
        %1020 = vmatprep.subr.mxu0 0.0
        %1021 = vmatpush1.xpose.msra.mxu0 0.0
        %1022 = vmatprep.subr.mxu0 0.0
        %1023 = vmatpush1.xpose.msra.mxu0 0.0
        %1024 = vmatprep.subr.mxu0 0.0
        %1025 = vmatpush1.xpose.msra.mxu0 0.0
        %1026 = vmatprep.subr.mxu0 0.0
        %1027 = vmatpush1.xpose.msra.mxu0 0.0
        %1028 = vmatprep.subr.mxu0 0.0
        %1029 = vmatpush1.xpose.msra.mxu0 0.0
        %1030 = vmatprep.subr.mxu0 0.0
        %1031 = vmatpush1.xpose.msra.mxu0 0.0
        %1032 = vmatprep.subr.mxu0 0.0
        %1033 = vmatpush1.xpose.msra.mxu0 0.0
        %1034 = vmatprep.subr.mxu0 0.0
        %1035 = vmatpush1.xpose.msra.mxu0 0.0
        %1036 = vmatprep.subr.mxu0 0.0
        %1037 = vmatpush1.xpose.msra.mxu0 0.0
        %1038 = vmatprep.subr.mxu0 0.0
        %1039 = vmatpush1.xpose.msra.mxu0 0.0
        %1040 = vmatprep.subr.mxu0 0.0
        %1041 = vmatpush1.xpose.msra.mxu0 0.0
        %1042 = vmatprep.subr.mxu0 0.0
        %1043 = vmatpush1.xpose.msra.mxu0 0.0
        %1044 = vmatprep.subr.mxu0 0.0
        %1045 = vmatpush1.xpose.msra.mxu0 0.0
        %1046 = vmatprep.subr.mxu0 0.0
        %1047 = vmatpush1.xpose.msra.mxu0 0.0
        %1048 = vmatprep.subr.mxu0 0.0
        %1049 = vmatpush1.xpose.msra.mxu0 0.0
        %1050 = vmatprep.subr.mxu0 0.0
        %1051 = vmatpush1.xpose.msra.mxu0 0.0
        %1052 = vmatprep.mubr.f32.mxu0 0.0
        %1053 = vmatmul.mubr.f32.gmra.mrb[0].mxu0 %v980
        %v1054 = vpop.f32.mrb[0].mxu0
        %v1055 = vadd.f32 0.0, %v1054
        %v1056 = vpop.f32.mrb[0].mxu0
        %1057 = vdwg.mxu0
        %v1058 = vmul.f32 %v976, 0.25
        %v1059 = vmul.f32 %v1055, 0.25
        %v1060 = vsel %vm899, %v1058, -inf
        %1061 = vmax.xlane.f32.xlu0 %v1060
        %v1062 = vpop.xlane.xlu0 %1061
        %v1063 = vsel %vm899, %v1059, -inf
        %1064 = vmax.xlane.f32.xlu0 %v1063
        %v1065 = vpop.xlane.xlu0 %1064
        %v1066 = vsub.f32 %v1058, %v1062
        %v1067 = vsub.f32 %v1059, %v1065
        %v1068 = vmul.f32 %v1066, 1.442695
        %v1069 = vpow.pop %v1068
        %v1070 = vmul.f32 %v1067, 1.442695
        %v1071 = vpow.pop %v1070
        %v1072 = vsel %vm899, %v1069, 0.0
        %1073 = vadd.xlane.f32.xlu0 %v1072
        %v1074 = vpop.xlane.xlu0 %1073
        %v1075 = vsel %vm899, %v1071, 0.0
        %1076 = vadd.xlane.f32.xlu0 %v1075
        %v1077 = vpop.xlane.xlu0 %1076
        %v1078 = vrcp.pop %v1074
        %v1079 = vmul.f32 %v1069, %v1078
        %v1080 = vrcp.pop %v1077
        %v1081 = vmul.f32 %v1071, %v1080
        %v1083 = vsel %vm899, %v1079, 0
        %1085 = vmatprep.subr.mxu0 0.0
        %1086 = vmatpush1.msra.mxu0 %v881
        %1087 = vmatprep.subr.mxu0 0.0
        %1088 = vmatpush1.msra.mxu0 %v886
        %1089 = vmatprep.subr.mxu0 0.0
        %1090 = vmatpush1.msra.mxu0 0.0
        %1091 = vmatprep.subr.mxu0 0.0
        %1092 = vmatpush1.msra.mxu0 0.0
        %1093 = vmatprep.subr.mxu0 0.0
        %1094 = vmatpush1.msra.mxu0 0.0
        %1095 = vmatprep.subr.mxu0 0.0
        %1096 = vmatpush1.msra.mxu0 0.0
        %1097 = vmatprep.subr.mxu0 0.0
        %1098 = vmatpush1.msra.mxu0 0.0
        %1099 = vmatprep.subr.mxu0 0.0
        %1100 = vmatpush1.msra.mxu0 0.0
        %1101 = vmatprep.subr.mxu0 0.0
        %1102 = vmatpush1.msra.mxu0 0.0
        %1103 = vmatprep.subr.mxu0 0.0
        %1104 = vmatpush1.msra.mxu0 0.0
        %1105 = vmatprep.subr.mxu0 0.0
        %1106 = vmatpush1.msra.mxu0 0.0
        %1107 = vmatprep.subr.mxu0 0.0
        %1108 = vmatpush1.msra.mxu0 0.0
        %1109 = vmatprep.subr.mxu0 0.0
        %1110 = vmatpush1.msra.mxu0 0.0
        %1111 = vmatprep.subr.mxu0 0.0
        %1112 = vmatpush1.msra.mxu0 0.0
        %1113 = vmatprep.subr.mxu0 0.0
        %1114 = vmatpush1.msra.mxu0 0.0
        %1115 = vmatprep.subr.mxu0 0.0
        %1116 = vmatpush1.msra.mxu0 0.0
        %1117 = vmatprep.subr.mxu0 0.0
        %1118 = vmatpush1.msra.mxu0 0.0
        %1119 = vmatprep.subr.mxu0 0.0
        %1120 = vmatpush1.msra.mxu0 0.0
        %1121 = vmatprep.subr.mxu0 0.0
        %1122 = vmatpush1.msra.mxu0 0.0
        %1123 = vmatprep.subr.mxu0 0.0
        %1124 = vmatpush1.msra.mxu0 0.0
        %1125 = vmatprep.subr.mxu0 0.0
        %1126 = vmatpush1.msra.mxu0 0.0
        %1127 = vmatprep.subr.mxu0 0.0
        %1128 = vmatpush1.msra.mxu0 0.0
        %1129 = vmatprep.subr.mxu0 0.0
        %1130 = vmatpush1.msra.mxu0 0.0
        %1131 = vmatprep.subr.mxu0 0.0
        %1132 = vmatpush1.msra.mxu0 0.0
        %1133 = vmatprep.subr.mxu0 0.0
        %1134 = vmatpush1.msra.mxu0 0.0
        %1135 = vmatprep.subr.mxu0 0.0
        %1136 = vmatpush1.msra.mxu0 0.0
        %1137 = vmatprep.subr.mxu0 0.0
        %1138 = vmatpush1.msra.mxu0 0.0
        %1139 = vmatprep.subr.mxu0 0.0
        %1140 = vmatpush1.msra.mxu0 0.0
        %1141 = vmatprep.subr.mxu0 0.0
        %1142 = vmatpush1.msra.mxu0 0.0
        %1143 = vmatprep.subr.mxu0 0.0
        %1144 = vmatpush1.msra.mxu0 0.0
        %1145 = vmatprep.subr.mxu0 0.0
        %1146 = vmatpush1.msra.mxu0 0.0
        %1147 = vmatprep.subr.mxu0 0.0
        %1148 = vmatpush1.msra.mxu0 0.0
        %1149 = vmatprep.mubr.f32.mxu0 0.0
        %1150 = vmatmul.mubr.f32.gmra.mrb[0].mxu0 %v1083
        %v1151 = vpop.f32.mrb[0].mxu0
        %v1152 = vadd.f32 0.0, %v1151
        %v1153 = vpop.f32.mrb[0].mxu0
        %1154 = vdwg.mxu0
        %v1156 = vsel %vm899, %v1081, 0
        %1158 = vmatprep.subr.mxu0 0.0
        %1159 = vmatpush1.msra.mxu0 %v891
        %1160 = vmatprep.subr.mxu0 0.0
        %1161 = vmatpush1.msra.mxu0 %v896
        %1162 = vmatprep.subr.mxu0 0.0
        %1163 = vmatpush1.msra.mxu0 0.0
        %1164 = vmatprep.subr.mxu0 0.0
        %1165 = vmatpush1.msra.mxu0 0.0
        %1166 = vmatprep.subr.mxu0 0.0
        %1167 = vmatpush1.msra.mxu0 0.0
        %1168 = vmatprep.subr.mxu0 0.0
        %1169 = vmatpush1.msra.mxu0 0.0
        %1170 = vmatprep.subr.mxu0 0.0
        %1171 = vmatpush1.msra.mxu0 0.0
        %1172 = vmatprep.subr.mxu0 0.0
        %1173 = vmatpush1.msra.mxu0 0.0
        %1174 = vmatprep.subr.mxu0 0.0
        %1175 = vmatpush1.msra.mxu0 0.0
        %1176 = vmatprep.subr.mxu0 0.0
        %1177 = vmatpush1.msra.mxu0 0.0
        %1178 = vmatprep.subr.mxu0 0.0
        %1179 = vmatpush1.msra.mxu0 0.0
        %1180 = vmatprep.subr.mxu0 0.0
        %1181 = vmatpush1.msra.mxu0 0.0
        %1182 = vmatprep.subr.mxu0 0.0
        %1183 = vmatpush1.msra.mxu0 0.0
        %1184 = vmatprep.subr.mxu0 0.0
        %1185 = vmatpush1.msra.mxu0 0.0
        %1186 = vmatprep.subr.mxu0 0.0
        %1187 = vmatpush1.msra.mxu0 0.0
        %1188 = vmatprep.subr.mxu0 0.0
        %1189 = vmatpush1.msra.mxu0 0.0
        %1190 = vmatprep.subr.mxu0 0.0
        %1191 = vmatpush1.msra.mxu0 0.0
        %1192 = vmatprep.subr.mxu0 0.0
        %1193 = vmatpush1.msra.mxu0 0.0
        %1194 = vmatprep.subr.mxu0 0.0
        %1195 = vmatpush1.msra.mxu0 0.0
        %1196 = vmatprep.subr.mxu0 0.0
        %1197 = vmatpush1.msra.mxu0 0.0
        %1198 = vmatprep.subr.mxu0 0.0
        %1199 = vmatpush1.msra.mxu0 0.0
        %1200 = vmatprep.subr.mxu0 0.0
        %1201 = vmatpush1.msra.mxu0 0.0
        %1202 = vmatprep.subr.mxu0 0.0
        %1203 = vmatpush1.msra.mxu0 0.0
        %1204 = vmatprep.subr.mxu0 0.0
        %1205 = vmatpush1.msra.mxu0 0.0
        %1206 = vmatprep.subr.mxu0 0.0
        %1207 = vmatpush1.msra.mxu0 0.0
        %1208 = vmatprep.subr.mxu0 0.0
        %1209 = vmatpush1.msra.mxu0 0.0
        %1210 = vmatprep.subr.mxu0 0.0
        %1211 = vmatpush1.msra.mxu0 0.0
        %1212 = vmatprep.subr.mxu0 0.0
        %1213 = vmatpush1.msra.mxu0 0.0
        %1214 = vmatprep.subr.mxu0 0.0
        %1215 = vmatpush1.msra.mxu0 0.0
        %1216 = vmatprep.subr.mxu0 0.0
        %1217 = vmatpush1.msra.mxu0 0.0
        %1218 = vmatprep.subr.mxu0 0.0
        %1219 = vmatpush1.msra.mxu0 0.0
        %1220 = vmatprep.subr.mxu0 0.0
        %1221 = vmatpush1.msra.mxu0 0.0
        %1222 = vmatprep.mubr.f32.mxu0 0.0
        %1223 = vmatmul.mubr.f32.gmra.mrb[0].mxu0 %v1156
        %v1224 = vpop.f32.mrb[0].mxu0
        %v1225 = vadd.f32 0.0, %v1224
        %v1226 = vpop.f32.mrb[0].mxu0
        %1227 = vdwg.mxu0
        %v1228 = vld [vmem:[%s7] sm:$0xff]
        %v1229 = vld [vmem:[%s7 + $0x8] sm:$0xff]
        %v1231 = vsel %vm899, %v1152, 0
        %v1234 = vsel %vm899, %v1225, 0
        %1236 = vmatprep.subr.mxu0 0.0
        %1237 = vmatpush1.msra.mxu0 %v1228
        %1238 = vmatprep.subr.mxu0 0.0
        %1239 = vmatpush1.msra.mxu0 %v1229
        %1240 = vmatprep.subr.mxu0 0.0
        %1241 = vmatpush1.msra.mxu0 0.0
        %1242 = vmatprep.subr.mxu0 0.0
        %1243 = vmatpush1.msra.mxu0 0.0
        %1244 = vmatprep.subr.mxu0 0.0
        %1245 = vmatpush1.msra.mxu0 0.0
        %1246 = vmatprep.subr.mxu0 0.0
        %1247 = vmatpush1.msra.mxu0 0.0
        %1248 = vmatprep.subr.mxu0 0.0
        %1249 = vmatpush1.msra.mxu0 0.0
        %1250 = vmatprep.subr.mxu0 0.0
        %1251 = vmatpush1.msra.mxu0 0.0
        %1252 = vmatprep.subr.mxu0 0.0
        %1253 = vmatpush1.msra.mxu0 0.0
        %1254 = vmatprep.subr.mxu0 0.0
        %1255 = vmatpush1.msra.mxu0 0.0
        %1256 = vmatprep.subr.mxu0 0.0
        %1257 = vmatpush1.msra.mxu0 0.0
        %1258 = vmatprep.subr.mxu0 0.0
        %1259 = vmatpush1.msra.mxu0 0.0
        %1260 = vmatprep.subr.mxu0 0.0
        %1261 = vmatpush1.msra.mxu0 0.0
        %1262 = vmatprep.subr.mxu0 0.0
        %1263 = vmatpush1.msra.mxu0 0.0
        %1264 = vmatprep.subr.mxu0 0.0
        %1265 = vmatpush1.msra.mxu0 0.0
        %1266 = vmatprep.subr.mxu0 0.0
        %1267 = vmatpush1.msra.mxu0 0.0
        %1268 = vmatprep.subr.mxu0 0.0
        %1269 = vmatpush1.msra.mxu0 0.0
        %1270 = vmatprep.subr.mxu0 0.0
        %1271 = vmatpush1.msra.mxu0 0.0
        %1272 = vmatprep.subr.mxu0 0.0
        %1273 = vmatpush1.msra.mxu0 0.0
        %1274 = vmatprep.subr.mxu0 0.0
        %1275 = vmatpush1.msra.mxu0 0.0
        %1276 = vmatprep.subr.mxu0 0.0
        %1277 = vmatpush1.msra.mxu0 0.0
        %1278 = vmatprep.subr.mxu0 0.0
        %1279 = vmatpush1.msra.mxu0 0.0
        %1280 = vmatprep.subr.mxu0 0.0
        %1281 = vmatpush1.msra.mxu0 0.0
        %1282 = vmatprep.subr.mxu0 0.0
        %1283 = vmatpush1.msra.mxu0 0.0
        %1284 = vmatprep.subr.mxu0 0.0
        %1285 = vmatpush1.msra.mxu0 0.0
        %1286 = vmatprep.subr.mxu0 0.0
        %1287 = vmatpush1.msra.mxu0 0.0
        %1288 = vmatprep.subr.mxu0 0.0
        %1289 = vmatpush1.msra.mxu0 0.0
        %1290 = vmatprep.subr.mxu0 0.0
        %1291 = vmatpush1.msra.mxu0 0.0
        %1292 = vmatprep.subr.mxu0 0.0
        %1293 = vmatpush1.msra.mxu0 0.0
        %1294 = vmatprep.subr.mxu0 0.0
        %1295 = vmatpush1.msra.mxu0 0.0
        %1296 = vmatprep.subr.mxu0 0.0
        %1297 = vmatpush1.msra.mxu0 0.0
        %1298 = vmatprep.subr.mxu0 0.0
        %1299 = vmatpush1.msra.mxu0 0.0
        %1300 = vmatprep.mubr.f32.mxu0 0.0
        %1301 = vmatmul.mubr.f32.gmra.mrb[0].mxu0 %v1231
        %v1302 = vpop.f32.mrb[0].mxu0
        %v1303 = vadd.f32 0.0, %v1302
        %v1304 = vpop.f32.mrb[0].mxu0
        %1305 = vmatprep.mubr.f32.mxu0 0.0
        %1306 = vmatmul.mubr.f32.gmra.mrb[0].mxu0 %v1234
        %v1307 = vpop.f32.mrb[0].mxu0
        %v1308 = vadd.f32 0.0, %v1307
        %v1309 = vpop.f32.mrb[0].mxu0
        %1310 = vdwg.mxu0
        %v1311 = vadd.f32 %v618, %v1303
        %v1312 = vadd.f32 %v618, %v1308
        %v1313 = vadd.f32 %v1311, %v494
        %v1314 = vadd.f32 %v1312, %v495
        %v1315 = vld [vmem:[%s2 + $0x3] sm:$0x1]
        %v1316 = vld [vmem:[%s2 + $0x4] sm:$0x1]
        %v1317 = vsel %vm502, %v1313, 0.0
        %1318 = vadd.xlane.f32.xlu0 %v1317
        %v1319 = vpop.xlane.xlu0 %1318
        %v1320 = vsel %vm502, %v1314, 0.0
        %1321 = vadd.xlane.f32.xlu0 %v1320
        %v1322 = vpop.xlane.xlu0 %1321
        %v1323 = vmul.f32 %v1319, %v509
        %v1324 = vmul.f32 %v1322, %v509
        %v1325 = vsub.f32 %v1313, %v1323
        %v1326 = vsub.f32 %v1314, %v1324
        %v1327 = vmul.f32 %v1325, %v1325
        %v1328 = vmul.f32 %v1326, %v1326
        %v1329 = vsel %vm502, %v1327, 0.0
        %1330 = vadd.xlane.f32.xlu0 %v1329
        %v1331 = vpop.xlane.xlu0 %1330
        %v1332 = vsel %vm502, %v1328, 0.0
        %1333 = vadd.xlane.f32.xlu0 %v1332
        %v1334 = vpop.xlane.xlu0 %1333
        %v1335 = vmul.f32 %v1331, %v509
        %v1336 = vmul.f32 %v1334, %v509
        %v1337 = vadd.f32 %v1335, 1e-05
        %v1338 = vadd.f32 %v1336, 1e-05
        %v1339 = vrsqrt.pop %v1337
        %v1340 = vrsqrt.pop %v1338
        %v1341 = vmul.f32 %v1325, %v1339
        %v1342 = vmul.f32 %v1326, %v1340
        %v1343 = vlaneseq
        %v1344 = vshrl.u32 %v1343, 7
        %v1345 = vsub.s32 0, %v1344
        %v1346 = vrot.slane %v1315, %v1345
        %v1347 = vmul.f32 %v1341, %v1346
        %v1348 = vmul.f32 %v1342, %v1346
        %v1349 = vlaneseq
        %v1350 = vshrl.u32 %v1349, 7
        %v1351 = vsub.s32 0, %v1350
        %v1352 = vrot.slane %v1316, %v1351
        %v1353 = vadd.f32 %v1347, %v1352
        %v1354 = vadd.f32 %v1348, %v1352
        %v1355 = vld [vmem:[%s8] sm:$0xff]
        %v1356 = vld [vmem:[%s8 + $0x8] sm:$0xff]
        %v1357 = vld [vmem:[%s8 + $0x10] sm:$0xff]
        %v1358 = vld [vmem:[%s8 + $0x18] sm:$0xff]
        %v1359 = vld [vmem:[%s8 + $0x20] sm:$0xff]
        %v1360 = vld [vmem:[%s8 + $0x28] sm:$0xff]
        %v1361 = vld [vmem:[%s8 + $0x30] sm:$0xff]
        %v1362 = vld [vmem:[%s8 + $0x38] sm:$0xff]
        %v1363 = vld [vmem:[%s4] ss:$2 sm:$0x3]
        %v1364 = vld [vmem:[%s9] sm:$0xff]
        %v1365 = vld [vmem:[%s9 + $0x8] sm:$0xff]
        %v1366 = vld [vmem:[%s9 + $0x10] sm:$0xff]
        %v1367 = vld [vmem:[%s9 + $0x18] sm:$0xff]
        %v1368 = vld [vmem:[%s9 + $0x20] sm:$0xff]
        %v1369 = vld [vmem:[%s9 + $0x28] sm:$0xff]
        %v1370 = vld [vmem:[%s9 + $0x30] sm:$0xff]
        %v1371 = vld [vmem:[%s9 + $0x38] sm:$0xff]
        %v1372 = vld [vmem:[%s9 + $0x40] sm:$0xff]
        %v1373 = vld [vmem:[%s9 + $0x48] sm:$0xff]
        %v1374 = vld [vmem:[%s9 + $0x50] sm:$0xff]
        %v1375 = vld [vmem:[%s9 + $0x58] sm:$0xff]
        %v1376 = vld [vmem:[%s9 + $0x60] sm:$0xff]
        %v1377 = vld [vmem:[%s9 + $0x68] sm:$0xff]
        %v1378 = vld [vmem:[%s9 + $0x70] sm:$0xff]
        %v1379 = vld [vmem:[%s9 + $0x78] sm:$0xff]
        %v1380 = vld [vmem:[%s2 + $0x5] sm:$0x1]
        %v1382 = vlaneseq
        %v1383 = vshrl.u32 %v1382, 7
        %v1384 = vsub.s32 0, %v1383
        %v1385 = vrot.slane %v1363, %v1384
        %v1386 = vlaneseq
        %v1387 = vshrl.u32 %v1386, 7
        %v1388 = vsub.s32 1, %v1387
        %v1389 = vrot.slane %v1363, %v1388
        %v1393 = vsel %vm502, %v1353, 0
        %v1396 = vsel %vm502, %v1354, 0
        %1398 = vmatprep.subr.mxu0 %v1356
        %1399 = vmatpush1.msra.mxu0 %v1355
        %1400 = vmatprep.subr.mxu0 %v1358
        %1401 = vmatpush1.msra.mxu0 %v1357
        %1402 = vmatprep.subr.mxu0 %v1360
        %1403 = vmatpush1.msra.mxu0 %v1359
        %1404 = vmatprep.subr.mxu0 %v1362
        %1405 = vmatpush1.msra.mxu0 %v1361
        %1406 = vmatprep.subr.mxu0 0.0
        %1407 = vmatpush1.msra.mxu0 0.0
        %1408 = vmatprep.subr.mxu0 0.0
        %1409 = vmatpush1.msra.mxu0 0.0
        %1410 = vmatprep.subr.mxu0 0.0
        %1411 = vmatpush1.msra.mxu0 0.0
        %1412 = vmatprep.subr.mxu0 0.0
        %1413 = vmatpush1.msra.mxu0 0.0
        %1414 = vmatprep.subr.mxu0 0.0
        %1415 = vmatpush1.msra.mxu0 0.0
        %1416 = vmatprep.subr.mxu0 0.0
        %1417 = vmatpush1.msra.mxu0 0.0
        %1418 = vmatprep.subr.mxu0 0.0
        %1419 = vmatpush1.msra.mxu0 0.0
        %1420 = vmatprep.subr.mxu0 0.0
        %1421 = vmatpush1.msra.mxu0 0.0
        %1422 = vmatprep.subr.mxu0 0.0
        %1423 = vmatpush1.msra.mxu0 0.0
        %1424 = vmatprep.subr.mxu0 0.0
        %1425 = vmatpush1.msra.mxu0 0.0
        %1426 = vmatprep.subr.mxu0 0.0
        %1427 = vmatpush1.msra.mxu0 0.0
        %1428 = vmatprep.subr.mxu0 0.0
        %1429 = vmatpush1.msra.mxu0 0.0
        %1430 = vmatprep.subr.mxu0 0.0
        %1431 = vmatpush1.msra.mxu0 0.0
        %1432 = vmatprep.subr.mxu0 0.0
        %1433 = vmatpush1.msra.mxu0 0.0
        %1434 = vmatprep.subr.mxu0 0.0
        %1435 = vmatpush1.msra.mxu0 0.0
        %1436 = vmatprep.subr.mxu0 0.0
        %1437 = vmatpush1.msra.mxu0 0.0
        %1438 = vmatprep.subr.mxu0 0.0
        %1439 = vmatpush1.msra.mxu0 0.0
        %1440 = vmatprep.subr.mxu0 0.0
        %1441 = vmatpush1.msra.mxu0 0.0
        %1442 = vmatprep.subr.mxu0 0.0
        %1443 = vmatpush1.msra.mxu0 0.0
        %1444 = vmatprep.subr.mxu0 0.0
        %1445 = vmatpush1.msra.mxu0 0.0
        %1446 = vmatprep.subr.mxu0 0.0
        %1447 = vmatpush1.msra.mxu0 0.0
        %1448 = vmatprep.subr.mxu0 0.0
        %1449 = vmatpush1.msra.mxu0 0.0
        %1450 = vmatprep.subr.mxu0 0.0
        %1451 = vmatpush1.msra.mxu0 0.0
        %1452 = vmatprep.subr.mxu0 0.0
        %1453 = vmatpush1.msra.mxu0 0.0
        %1454 = vmatprep.subr.mxu0 0.0
        %1455 = vmatpush1.msra.mxu0 0.0
        %1456 = vmatprep.subr.mxu0 0.0
        %1457 = vmatpush1.msra.mxu0 0.0
        %1458 = vmatprep.subr.mxu0 0.0
        %1459 = vmatpush1.msra.mxu0 0.0
        %1460 = vmatprep.subr.mxu0 0.0
        %1461 = vmatpush1.msra.mxu0 0.0
        %1462 = vmatprep.mubr.f32.mxu0 0.0
        %1463 = vmatmul.mubr.f32.gmra.mrb[0].mxu0 %v1393
        %v1464 = vpop.f32.mrb[0].mxu0
        %v1465 = vadd.f32 %v1385, %v1464
        %v1466 = vpop.f32.mrb[0].mxu0
        %v1467 = vadd.f32 %v1389, %v1466
        %1468 = vmatprep.mubr.f32.mxu0 0.0
        %1469 = vmatmul.mubr.f32.gmra.mrb[0].mxu0 %v1396
        %v1470 = vpop.f32.mrb[0].mxu0
        %v1471 = vadd.f32 %v1385, %v1470
        %v1472 = vpop.f32.mrb[0].mxu0
        %v1473 = vadd.f32 %v1389, %v1472
        %1474 = vdwg.mxu0
        %v1475 = vmul.f32 %v1467, 0.5
        %v1476 = vmul.f32 %v1473, 0.5
        %v1477 = vmul.f32 %v1467, 0.70710677
        %v1478 = vmul.f32 %v1473, 0.70710677
        %v1479 = verf.f32.pop %v1477
        %v1480 = verf.f32.pop %v1478
        %v1481 = vadd.f32 %v1479, 1.0
        %v1482 = vadd.f32 %v1480, 1.0
        %v1483 = vmul.f32 %v1475, %v1481
        %v1484 = vmul.f32 %v1476, %v1482
        %v1485 = vmul.f32 %v1465, %v1483
        %v1486 = vmul.f32 %v1471, %v1484
        %v1487 = vlaneseq
        %v1488 = vshrl.u32 %v1487, 7
        %v1489 = vsub.s32 0, %v1488
        %v1490 = vrot.slane %v1380, %v1489
        %1491 = vmatprep.subr.mxu0 0.0
        %1492 = vmatpush1.msra.mxu0 %v1364
        %1493 = vmatprep.subr.mxu0 0.0
        %1494 = vmatpush1.msra.mxu0 %v1365
        %1495 = vmatprep.subr.mxu0 0.0
        %1496 = vmatpush1.msra.mxu0 %v1366
        %1497 = vmatprep.subr.mxu0 0.0
        %1498 = vmatpush1.msra.mxu0 %v1367
        %1499 = vmatprep.subr.mxu0 0.0
        %1500 = vmatpush1.msra.mxu0 %v1368
        %1501 = vmatprep.subr.mxu0 0.0
        %1502 = vmatpush1.msra.mxu0 %v1369
        %1503 = vmatprep.subr.mxu0 0.0
        %1504 = vmatpush1.msra.mxu0 %v1370
        %1505 = vmatprep.subr.mxu0 0.0
        %1506 = vmatpush1.msra.mxu0 %v1371
        %1507 = vmatprep.subr.mxu0 0.0
        %1508 = vmatpush1.msra.mxu0 %v1372
        %1509 = vmatprep.subr.mxu0 0.0
        %1510 = vmatpush1.msra.mxu0 %v1373
        %1511 = vmatprep.subr.mxu0 0.0
        %1512 = vmatpush1.msra.mxu0 %v1374
        %1513 = vmatprep.subr.mxu0 0.0
        %1514 = vmatpush1.msra.mxu0 %v1375
        %1515 = vmatprep.subr.mxu0 0.0
        %1516 = vmatpush1.msra.mxu0 %v1376
        %1517 = vmatprep.subr.mxu0 0.0
        %1518 = vmatpush1.msra.mxu0 %v1377
        %1519 = vmatprep.subr.mxu0 0.0
        %1520 = vmatpush1.msra.mxu0 %v1378
        %1521 = vmatprep.subr.mxu0 0.0
        %1522 = vmatpush1.msra.mxu0 %v1379
        %1523 = vmatprep.subr.mxu0 0.0
        %1524 = vmatpush1.msra.mxu0 0.0
        %1525 = vmatprep.subr.mxu0 0.0
        %1526 = vmatpush1.msra.mxu0 0.0
        %1527 = vmatprep.subr.mxu0 0.0
        %1528 = vmatpush1.msra.mxu0 0.0
        %1529 = vmatprep.subr.mxu0 0.0
        %1530 = vmatpush1.msra.mxu0 0.0
        %1531 = vmatprep.subr.mxu0 0.0
        %1532 = vmatpush1.msra.mxu0 0.0
        %1533 = vmatprep.subr.mxu0 0.0
        %1534 = vmatpush1.msra.mxu0 0.0
        %1535 = vmatprep.subr.mxu0 0.0
        %1536 = vmatpush1.msra.mxu0 0.0
        %1537 = vmatprep.subr.mxu0 0.0
        %1538 = vmatpush1.msra.mxu0 0.0
        %1539 = vmatprep.subr.mxu0 0.0
        %1540 = vmatpush1.msra.mxu0 0.0
        %1541 = vmatprep.subr.mxu0 0.0
        %1542 = vmatpush1.msra.mxu0 0.0
        %1543 = vmatprep.subr.mxu0 0.0
        %1544 = vmatpush1.msra.mxu0 0.0
        %1545 = vmatprep.subr.mxu0 0.0
        %1546 = vmatpush1.msra.mxu0 0.0
        %1547 = vmatprep.subr.mxu0 0.0
        %1548 = vmatpush1.msra.mxu0 0.0
        %1549 = vmatprep.subr.mxu0 0.0
        %1550 = vmatpush1.msra.mxu0 0.0
        %1551 = vmatprep.subr.mxu0 0.0
        %1552 = vmatpush1.msra.mxu0 0.0
        %1553 = vmatprep.subr.mxu0 0.0
        %1554 = vmatpush1.msra.mxu0 0.0
        %1555 = vmatprep.mubr.f32.mxu0 0.0
        %1556 = vmatmul.mubr.f32.gmra.mrb[0].mxu0 %v1485
        %v1557 = vpop.f32.mrb[0].mxu0
        %v1558 = vadd.f32 %v1490, %v1557
        %v1559 = vpop.f32.mrb[0].mxu0
        %1560 = vmatprep.mubr.f32.mxu0 0.0
        %1561 = vmatmul.mubr.f32.gmra.mrb[0].mxu0 %v1486
        %v1562 = vpop.f32.mrb[0].mxu0
        %v1563 = vadd.f32 %v1490, %v1562
        %v1564 = vpop.f32.mrb[0].mxu0
        %1565 = vdwg.mxu0
        %v1566 = vadd.f32 %v1558, %v1313
        %v1567 = vadd.f32 %v1563, %v1314
        %v1568 = vld [vmem:[%s2 + $0x6] sm:$0x1]
        %v1569 = vld [vmem:[%s2 + $0x7] sm:$0x1]
        %v1570 = vsel %vm502, %v1566, 0.0
        %1571 = vadd.xlane.f32.xlu0 %v1570
        %v1572 = vpop.xlane.xlu0 %1571
        %v1573 = vsel %vm502, %v1567, 0.0
        %1574 = vadd.xlane.f32.xlu0 %v1573
        %v1575 = vpop.xlane.xlu0 %1574
        %v1576 = vmul.f32 %v1572, %v509
        %v1577 = vmul.f32 %v1575, %v509
        %v1578 = vsub.f32 %v1566, %v1576
        %v1579 = vsub.f32 %v1567, %v1577
        %v1580 = vmul.f32 %v1578, %v1578
        %v1581 = vmul.f32 %v1579, %v1579
        %v1582 = vsel %vm502, %v1580, 0.0
        %1583 = vadd.xlane.f32.xlu0 %v1582
        %v1584 = vpop.xlane.xlu0 %1583
        %v1585 = vsel %vm502, %v1581, 0.0
        %1586 = vadd.xlane.f32.xlu0 %v1585
        %v1587 = vpop.xlane.xlu0 %1586
        %v1588 = vmul.f32 %v1584, %v509
        %v1589 = vmul.f32 %v1587, %v509
        %v1590 = vadd.f32 %v1588, 1e-05
        %v1591 = vadd.f32 %v1589, 1e-05
        %v1592 = vrsqrt.pop %v1590
        %v1593 = vrsqrt.pop %v1591
        %v1594 = vmul.f32 %v1578, %v1592
        %v1595 = vmul.f32 %v1579, %v1593
        %v1596 = vlaneseq
        %v1597 = vshrl.u32 %v1596, 7
        %v1598 = vsub.s32 0, %v1597
        %v1599 = vrot.slane %v1568, %v1598
        %v1600 = vmul.f32 %v1594, %v1599
        %v1601 = vmul.f32 %v1595, %v1599
        %v1602 = vlaneseq
        %v1603 = vshrl.u32 %v1602, 7
        %v1604 = vsub.s32 0, %v1603
        %v1605 = vrot.slane %v1569, %v1604
        %v1606 = vadd.f32 %v1600, %v1605
        %v1607 = vadd.f32 %v1601, %v1605
        %v1608 = vld [vmem:[%s2 + $0x8] sm:$0x1]
        %v1609 = vlaneseq
        %v1610 = vshrl.u32 %v1609, 7
        %v1611 = vsub.s32 0, %v1610
        %v1612 = vrot.slane %v1608, %v1611
        %v1613 = vld [vmem:[%s10] sm:$0xff]
        %v1614 = vld [vmem:[%s10 + $0x8] sm:$0xff]
        %v1615 = vld [vmem:[%s10 + $0x10] sm:$0xff]
        %v1616 = vld [vmem:[%s10 + $0x18] sm:$0xff]
        %v1618 = vsel %vm502, %v1606, 0
        %v1621 = vsel %vm502, %v1607, 0
        %1623 = vmatprep.subr.mxu0 0.0
        %1624 = vmatpush1.msra.mxu0 %v1613
        %1625 = vmatprep.subr.mxu0 0.0
        %1626 = vmatpush1.msra.mxu0 %v1614
        %1627 = vmatprep.subr.mxu0 0.0
        %1628 = vmatpush1.msra.mxu0 %v1615
        %1629 = vmatprep.subr.mxu0 0.0
        %1630 = vmatpush1.msra.mxu0 %v1616
        %1631 = vmatprep.subr.mxu0 0.0
        %1632 = vmatpush1.msra.mxu0 0.0
        %1633 = vmatprep.subr.mxu0 0.0
        %1634 = vmatpush1.msra.mxu0 0.0
        %1635 = vmatprep.subr.mxu0 0.0
        %1636 = vmatpush1.msra.mxu0 0.0
        %1637 = vmatprep.subr.mxu0 0.0
        %1638 = vmatpush1.msra.mxu0 0.0
        %1639 = vmatprep.subr.mxu0 0.0
        %1640 = vmatpush1.msra.mxu0 0.0
        %1641 = vmatprep.subr.mxu0 0.0
        %1642 = vmatpush1.msra.mxu0 0.0
        %1643 = vmatprep.subr.mxu0 0.0
        %1644 = vmatpush1.msra.mxu0 0.0
        %1645 = vmatprep.subr.mxu0 0.0
        %1646 = vmatpush1.msra.mxu0 0.0
        %1647 = vmatprep.subr.mxu0 0.0
        %1648 = vmatpush1.msra.mxu0 0.0
        %1649 = vmatprep.subr.mxu0 0.0
        %1650 = vmatpush1.msra.mxu0 0.0
        %1651 = vmatprep.subr.mxu0 0.0
        %1652 = vmatpush1.msra.mxu0 0.0
        %1653 = vmatprep.subr.mxu0 0.0
        %1654 = vmatpush1.msra.mxu0 0.0
        %1655 = vmatprep.subr.mxu0 0.0
        %1656 = vmatpush1.msra.mxu0 0.0
        %1657 = vmatprep.subr.mxu0 0.0
        %1658 = vmatpush1.msra.mxu0 0.0
        %1659 = vmatprep.subr.mxu0 0.0
        %1660 = vmatpush1.msra.mxu0 0.0
        %1661 = vmatprep.subr.mxu0 0.0
        %1662 = vmatpush1.msra.mxu0 0.0
        %1663 = vmatprep.subr.mxu0 0.0
        %1664 = vmatpush1.msra.mxu0 0.0
        %1665 = vmatprep.subr.mxu0 0.0
        %1666 = vmatpush1.msra.mxu0 0.0
        %1667 = vmatprep.subr.mxu0 0.0
        %1668 = vmatpush1.msra.mxu0 0.0
        %1669 = vmatprep.subr.mxu0 0.0
        %1670 = vmatpush1.msra.mxu0 0.0
        %1671 = vmatprep.subr.mxu0 0.0
        %1672 = vmatpush1.msra.mxu0 0.0
        %1673 = vmatprep.subr.mxu0 0.0
        %1674 = vmatpush1.msra.mxu0 0.0
        %1675 = vmatprep.subr.mxu0 0.0
        %1676 = vmatpush1.msra.mxu0 0.0
        %1677 = vmatprep.subr.mxu0 0.0
        %1678 = vmatpush1.msra.mxu0 0.0
        %1679 = vmatprep.subr.mxu0 0.0
        %1680 = vmatpush1.msra.mxu0 0.0
        %1681 = vmatprep.subr.mxu0 0.0
        %1682 = vmatpush1.msra.mxu0 0.0
        %1683 = vmatprep.subr.mxu0 0.0
        %1684 = vmatpush1.msra.mxu0 0.0
        %1685 = vmatprep.subr.mxu0 0.0
        %1686 = vmatpush1.msra.mxu0 0.0
        %1687 = vmatprep.mubr.f32.mxu0 0.0
        %1688 = vmatmul.mubr.f32.gmra.mrb[0].mxu0 %v1618
        %v1689 = vpop.f32.mrb[0].mxu0
        %v1690 = vadd.f32 0.0, %v1689
        %v1691 = vpop.f32.mrb[0].mxu0
        %1692 = vmatprep.mubr.f32.mxu0 0.0
        %1693 = vmatmul.mubr.f32.gmra.mrb[0].mxu0 %v1621
        %v1694 = vpop.f32.mrb[0].mxu0
        %v1695 = vadd.f32 0.0, %v1694
        %v1696 = vpop.f32.mrb[0].mxu0
        %1697 = vdwg.mxu0
        %s1698 = scalar_lea.vmem %s10, 128
        %v1699 = vld [vmem:[%s1698] sm:$0xff]
        %v1700 = vld [vmem:[%s1698 + $0x8] sm:$0xff]
        %v1701 = vld [vmem:[%s1698 + $0x10] sm:$0xff]
        %v1702 = vld [vmem:[%s1698 + $0x18] sm:$0xff]
        %1703 = vmatprep.subr.mxu0 0.0
        %1704 = vmatpush1.msra.mxu0 %v1699
        %1705 = vmatprep.subr.mxu0 0.0
        %1706 = vmatpush1.msra.mxu0 %v1700
        %1707 = vmatprep.subr.mxu0 0.0
        %1708 = vmatpush1.msra.mxu0 %v1701
        %1709 = vmatprep.subr.mxu0 0.0
        %1710 = vmatpush1.msra.mxu0 %v1702
        %1711 = vmatprep.subr.mxu0 0.0
        %1712 = vmatpush1.msra.mxu0 0.0
        %1713 = vmatprep.subr.mxu0 0.0
        %1714 = vmatpush1.msra.mxu0 0.0
        %1715 = vmatprep.subr.mxu0 0.0
        %1716 = vmatpush1.msra.mxu0 0.0
        %1717 = vmatprep.subr.mxu0 0.0
        %1718 = vmatpush1.msra.mxu0 0.0
        %1719 = vmatprep.subr.mxu0 0.0
        %1720 = vmatpush1.msra.mxu0 0.0
        %1721 = vmatprep.subr.mxu0 0.0
        %1722 = vmatpush1.msra.mxu0 0.0
        %1723 = vmatprep.subr.mxu0 0.0
        %1724 = vmatpush1.msra.mxu0 0.0
        %1725 = vmatprep.subr.mxu0 0.0
        %1726 = vmatpush1.msra.mxu0 0.0
        %1727 = vmatprep.subr.mxu0 0.0
        %1728 = vmatpush1.msra.mxu0 0.0
        %1729 = vmatprep.subr.mxu0 0.0
        %1730 = vmatpush1.msra.mxu0 0.0
        %1731 = vmatprep.subr.mxu0 0.0
        %1732 = vmatpush1.msra.mxu0 0.0
        %1733 = vmatprep.subr.mxu0 0.0
        %1734 = vmatpush1.msra.mxu0 0.0
        %1735 = vmatprep.subr.mxu0 0.0
        %1736 = vmatpush1.msra.mxu0 0.0
        %1737 = vmatprep.subr.mxu0 0.0
        %1738 = vmatpush1.msra.mxu0 0.0
        %1739 = vmatprep.subr.mxu0 0.0
        %1740 = vmatpush1.msra.mxu0 0.0
        %1741 = vmatprep.subr.mxu0 0.0
        %1742 = vmatpush1.msra.mxu0 0.0
        %1743 = vmatprep.subr.mxu0 0.0
        %1744 = vmatpush1.msra.mxu0 0.0
        %1745 = vmatprep.subr.mxu0 0.0
        %1746 = vmatpush1.msra.mxu0 0.0
        %1747 = vmatprep.subr.mxu0 0.0
        %1748 = vmatpush1.msra.mxu0 0.0
        %1749 = vmatprep.subr.mxu0 0.0
        %1750 = vmatpush1.msra.mxu0 0.0
        %1751 = vmatprep.subr.mxu0 0.0
        %1752 = vmatpush1.msra.mxu0 0.0
        %1753 = vmatprep.subr.mxu0 0.0
        %1754 = vmatpush1.msra.mxu0 0.0
        %1755 = vmatprep.subr.mxu0 0.0
        %1756 = vmatpush1.msra.mxu0 0.0
        %1757 = vmatprep.subr.mxu0 0.0
        %1758 = vmatpush1.msra.mxu0 0.0
        %1759 = vmatprep.subr.mxu0 0.0
        %1760 = vmatpush1.msra.mxu0 0.0
        %1761 = vmatprep.subr.mxu0 0.0
        %1762 = vmatpush1.msra.mxu0 0.0
        %1763 = vmatprep.subr.mxu0 0.0
        %1764 = vmatpush1.msra.mxu0 0.0
        %1765 = vmatprep.subr.mxu0 0.0
        %1766 = vmatpush1.msra.mxu0 0.0
        %1767 = vmatprep.mubr.f32.mxu0 0.0
        %1768 = vmatmul.mubr.f32.gmra.mrb[0].mxu0 %v1618
        %v1769 = vpop.f32.mrb[0].mxu0
        %v1770 = vadd.f32 0.0, %v1769
        %v1771 = vpop.f32.mrb[0].mxu0
        %1772 = vmatprep.mubr.f32.mxu0 0.0
        %1773 = vmatmul.mubr.f32.gmra.mrb[0].mxu0 %v1621
        %v1774 = vpop.f32.mrb[0].mxu0
        %v1775 = vadd.f32 0.0, %v1774
        %v1776 = vpop.f32.mrb[0].mxu0
        %1777 = vdwg.mxu0
        %s1778 = scalar_lea.vmem %s10, 256
        %v1779 = vld [vmem:[%s1778] sm:$0xff]
        %v1780 = vld [vmem:[%s1778 + $0x8] sm:$0xff]
        %v1781 = vld [vmem:[%s1778 + $0x10] sm:$0xff]
        %v1782 = vld [vmem:[%s1778 + $0x18] sm:$0xff]
        %1783 = vmatprep.subr.mxu0 0.0
        %1784 = vmatpush1.msra.mxu0 %v1779
        %1785 = vmatprep.subr.mxu0 0.0
        %1786 = vmatpush1.msra.mxu0 %v1780
        %1787 = vmatprep.subr.mxu0 0.0
        %1788 = vmatpush1.msra.mxu0 %v1781
        %1789 = vmatprep.subr.mxu0 0.0
        %1790 = vmatpush1.msra.mxu0 %v1782
        %1791 = vmatprep.subr.mxu0 0.0
        %1792 = vmatpush1.msra.mxu0 0.0
        %1793 = vmatprep.subr.mxu0 0.0
        %1794 = vmatpush1.msra.mxu0 0.0
        %1795 = vmatprep.subr.mxu0 0.0
        %1796 = vmatpush1.msra.mxu0 0.0
        %1797 = vmatprep.subr.mxu0 0.0
        %1798 = vmatpush1.msra.mxu0 0.0
        %1799 = vmatprep.subr.mxu0 0.0
        %1800 = vmatpush1.msra.mxu0 0.0
        %1801 = vmatprep.subr.mxu0 0.0
        %1802 = vmatpush1.msra.mxu0 0.0
        %1803 = vmatprep.subr.mxu0 0.0
        %1804 = vmatpush1.msra.mxu0 0.0
        %1805 = vmatprep.subr.mxu0 0.0
        %1806 = vmatpush1.msra.mxu0 0.0
        %1807 = vmatprep.subr.mxu0 0.0
        %1808 = vmatpush1.msra.mxu0 0.0
        %1809 = vmatprep.subr.mxu0 0.0
        %1810 = vmatpush1.msra.mxu0 0.0
        %1811 = vmatprep.subr.mxu0 0.0
        %1812 = vmatpush1.msra.mxu0 0.0
        %1813 = vmatprep.subr.mxu0 0.0
        %1814 = vmatpush1.msra.mxu0 0.0
        %1815 = vmatprep.subr.mxu0 0.0
        %1816 = vmatpush1.msra.mxu0 0.0
        %1817 = vmatprep.subr.mxu0 0.0
        %1818 = vmatpush1.msra.mxu0 0.0
        %1819 = vmatprep.subr.mxu0 0.0
        %1820 = vmatpush1.msra.mxu0 0.0
        %1821 = vmatprep.subr.mxu0 0.0
        %1822 = vmatpush1.msra.mxu0 0.0
        %1823 = vmatprep.subr.mxu0 0.0
        %1824 = vmatpush1.msra.mxu0 0.0
        %1825 = vmatprep.subr.mxu0 0.0
        %1826 = vmatpush1.msra.mxu0 0.0
        %1827 = vmatprep.subr.mxu0 0.0
        %1828 = vmatpush1.msra.mxu0 0.0
        %1829 = vmatprep.subr.mxu0 0.0
        %1830 = vmatpush1.msra.mxu0 0.0
        %1831 = vmatprep.subr.mxu0 0.0
        %1832 = vmatpush1.msra.mxu0 0.0
        %1833 = vmatprep.subr.mxu0 0.0
        %1834 = vmatpush1.msra.mxu0 0.0
        %1835 = vmatprep.subr.mxu0 0.0
        %1836 = vmatpush1.msra.mxu0 0.0
        %1837 = vmatprep.subr.mxu0 0.0
        %1838 = vmatpush1.msra.mxu0 0.0
        %1839 = vmatprep.subr.mxu0 0.0
        %1840 = vmatpush1.msra.mxu0 0.0
        %1841 = vmatprep.subr.mxu0 0.0
        %1842 = vmatpush1.msra.mxu0 0.0
        %1843 = vmatprep.subr.mxu0 0.0
        %1844 = vmatpush1.msra.mxu0 0.0
        %1845 = vmatprep.subr.mxu0 0.0
        %1846 = vmatpush1.msra.mxu0 0.0
        %1847 = vmatprep.mubr.f32.mxu0 0.0
        %1848 = vmatmul.mubr.f32.gmra.mrb[0].mxu0 %v1618
        %v1849 = vpop.f32.mrb[0].mxu0
        %v1850 = vadd.f32 0.0, %v1849
        %v1851 = vpop.f32.mrb[0].mxu0
        %1852 = vmatprep.mubr.f32.mxu0 0.0
        %1853 = vmatmul.mubr.f32.gmra.mrb[0].mxu0 %v1621
        %v1854 = vpop.f32.mrb[0].mxu0
        %v1855 = vadd.f32 0.0, %v1854
        %v1856 = vpop.f32.mrb[0].mxu0
        %1857 = vdwg.mxu0
        %vm1858 = vcmask 64512
        %v1860 = vsel %vm1858, %v1690, 0
        %v1863 = vsel %vm1858, %v1770, 0
        %1865 = vmatprep.subr.mxu0 0.0
        %1866 = vmatpush1.xpose.msra.mxu0 %v1863
        %1867 = vmatprep.subr.mxu0 0.0
        %1868 = vmatpush1.xpose.msra.mxu0 0.0
        %1869 = vmatprep.subr.mxu0 0.0
        %1870 = vmatpush1.xpose.msra.mxu0 0.0
        %1871 = vmatprep.subr.mxu0 0.0
        %1872 = vmatpush1.xpose.msra.mxu0 0.0
        %1873 = vmatprep.subr.mxu0 0.0
        %1874 = vmatpush1.xpose.msra.mxu0 0.0
        %1875 = vmatprep.subr.mxu0 0.0
        %1876 = vmatpush1.xpose.msra.mxu0 0.0
        %1877 = vmatprep.subr.mxu0 0.0
        %1878 = vmatpush1.xpose.msra.mxu0 0.0
        %1879 = vmatprep.subr.mxu0 0.0
        %1880 = vmatpush1.xpose.msra.mxu0 0.0
        %1881 = vmatprep.subr.mxu0 0.0
        %1882 = vmatpush1.xpose.msra.mxu0 0.0
        %1883 = vmatprep.subr.mxu0 0.0
        %1884 = vmatpush1.xpose.msra.mxu0 0.0
        %1885 = vmatprep.subr.mxu0 0.0
        %1886 = vmatpush1.xpose.msra.mxu0 0.0
        %1887 = vmatprep.subr.mxu0 0.0
        %1888 = vmatpush1.xpose.msra.mxu0 0.0
        %1889 = vmatprep.subr.mxu0 0.0
        %1890 = vmatpush1.xpose.msra.mxu0 0.0
        %1891 = vmatprep.subr.mxu0 0.0
        %1892 = vmatpush1.xpose.msra.mxu0 0.0
        %1893 = vmatprep.subr.mxu0 0.0
        %1894 = vmatpush1.xpose.msra.mxu0 0.0
        %1895 = vmatprep.subr.mxu0 0.0
        %1896 = vmatpush1.xpose.msra.mxu0 0.0
        %1897 = vmatprep.subr.mxu0 0.0
        %1898 = vmatpush1.xpose.msra.mxu0 0.0
        %1899 = vmatprep.subr.mxu0 0.0
        %1900 = vmatpush1.xpose.msra.mxu0 0.0
        %1901 = vmatprep.subr.mxu0 0.0
        %1902 = vmatpush1.xpose.msra.mxu0 0.0
        %1903 = vmatprep.subr.mxu0 0.0
        %1904 = vmatpush1.xpose.msra.mxu0 0.0
        %1905 = vmatprep.subr.mxu0 0.0
        %1906 = vmatpush1.xpose.msra.mxu0 0.0
        %1907 = vmatprep.subr.mxu0 0.0
        %1908 = vmatpush1.xpose.msra.mxu0 0.0
        %1909 = vmatprep.subr.mxu0 0.0
        %1910 = vmatpush1.xpose.msra.mxu0 0.0
        %1911 = vmatprep.subr.mxu0 0.0
        %1912 = vmatpush1.xpose.msra.mxu0 0.0
        %1913 = vmatprep.subr.mxu0 0.0
        %1914 = vmatpush1.xpose.msra.mxu0 0.0
        %1915 = vmatprep.subr.mxu0 0.0
        %1916 = vmatpush1.xpose.msra.mxu0 0.0
        %1917 = vmatprep.subr.mxu0 0.0
        %1918 = vmatpush1.xpose.msra.mxu0 0.0
        %1919 = vmatprep.subr.mxu0 0.0
        %1920 = vmatpush1.xpose.msra.mxu0 0.0
        %1921 = vmatprep.subr.mxu0 0.0
        %1922 = vmatpush1.xpose.msra.mxu0 0.0
        %1923 = vmatprep.subr.mxu0 0.0
        %1924 = vmatpush1.xpose.msra.mxu0 0.0
        %1925 = vmatprep.subr.mxu0 0.0
        %1926 = vmatpush1.xpose.msra.mxu0 0.0
        %1927 = vmatprep.subr.mxu0 0.0
        %1928 = vmatpush1.xpose.msra.mxu0 0.0
        %1929 = vmatprep.mubr.f32.mxu0 0.0
        %1930 = vmatmul.mubr.f32.gmra.mrb[0].mxu0 %v1860
        %v1931 = vpop.f32.mrb[0].mxu0
        %v1932 = vadd.f32 0.0, %v1931
        %v1933 = vpop.f32.mrb[0].mxu0
        %1934 = vdwg.mxu0
        %v1936 = vsel %vm1858, %v1695, 0
        %v1939 = vsel %vm1858, %v1775, 0
        %1941 = vmatprep.subr.mxu0 0.0
        %1942 = vmatpush1.xpose.msra.mxu0 %v1939
        %1943 = vmatprep.subr.mxu0 0.0
        %1944 = vmatpush1.xpose.msra.mxu0 0.0
        %1945 = vmatprep.subr.mxu0 0.0
        %1946 = vmatpush1.xpose.msra.mxu0 0.0
        %1947 = vmatprep.subr.mxu0 0.0
        %1948 = vmatpush1.xpose.msra.mxu0 0.0
        %1949 = vmatprep.subr.mxu0 0.0
        %1950 = vmatpush1.xpose.msra.mxu0 0.0
        %1951 = vmatprep.subr.mxu0 0.0
        %1952 = vmatpush1.xpose.msra.mxu0 0.0
        %1953 = vmatprep.subr.mxu0 0.0
        %1954 = vmatpush1.xpose.msra.mxu0 0.0
        %1955 = vmatprep.subr.mxu0 0.0
        %1956 = vmatpush1.xpose.msra.mxu0 0.0
        %1957 = vmatprep.subr.mxu0 0.0
        %1958 = vmatpush1.xpose.msra.mxu0 0.0
        %1959 = vmatprep.subr.mxu0 0.0
        %1960 = vmatpush1.xpose.msra.mxu0 0.0
        %1961 = vmatprep.subr.mxu0 0.0
        %1962 = vmatpush1.xpose.msra.mxu0 0.0
        %1963 = vmatprep.subr.mxu0 0.0
        %1964 = vmatpush1.xpose.msra.mxu0 0.0
        %1965 = vmatprep.subr.mxu0 0.0
        %1966 = vmatpush1.xpose.msra.mxu0 0.0
        %1967 = vmatprep.subr.mxu0 0.0
        %1968 = vmatpush1.xpose.msra.mxu0 0.0
        %1969 = vmatprep.subr.mxu0 0.0
        %1970 = vmatpush1.xpose.msra.mxu0 0.0
        %1971 = vmatprep.subr.mxu0 0.0
        %1972 = vmatpush1.xpose.msra.mxu0 0.0
        %1973 = vmatprep.subr.mxu0 0.0
        %1974 = vmatpush1.xpose.msra.mxu0 0.0
        %1975 = vmatprep.subr.mxu0 0.0
        %1976 = vmatpush1.xpose.msra.mxu0 0.0
        %1977 = vmatprep.subr.mxu0 0.0
        %1978 = vmatpush1.xpose.msra.mxu0 0.0
        %1979 = vmatprep.subr.mxu0 0.0
        %1980 = vmatpush1.xpose.msra.mxu0 0.0
        %1981 = vmatprep.subr.mxu0 0.0
        %1982 = vmatpush1.xpose.msra.mxu0 0.0
        %1983 = vmatprep.subr.mxu0 0.0
        %1984 = vmatpush1.xpose.msra.mxu0 0.0
        %1985 = vmatprep.subr.mxu0 0.0
        %1986 = vmatpush1.xpose.msra.mxu0 0.0
        %1987 = vmatprep.subr.mxu0 0.0
        %1988 = vmatpush1.xpose.msra.mxu0 0.0
        %1989 = vmatprep.subr.mxu0 0.0
        %1990 = vmatpush1.xpose.msra.mxu0 0.0
        %1991 = vmatprep.subr.mxu0 0.0
        %1992 = vmatpush1.xpose.msra.mxu0 0.0
        %1993 = vmatprep.subr.mxu0 0.0
        %1994 = vmatpush1.xpose.msra.mxu0 0.0
        %1995 = vmatprep.subr.mxu0 0.0
        %1996 = vmatpush1.xpose.msra.mxu0 0.0
        %1997 = vmatprep.subr.mxu0 0.0
        %1998 = vmatpush1.xpose.msra.mxu0 0.0
        %1999 = vmatprep.subr.mxu0 0.0
        %2000 = vmatpush1.xpose.msra.mxu0 0.0
        %2001 = vmatprep.subr.mxu0 0.0
        %2002 = vmatpush1.xpose.msra.mxu0 0.0
        %2003 = vmatprep.subr.mxu0 0.0
        %2004 = vmatpush1.xpose.msra.mxu0 0.0
        %2005 = vmatprep.mubr.f32.mxu0 0.0
        %2006 = vmatmul.mubr.f32.gmra.mrb[0].mxu0 %v1936
        %v2007 = vpop.f32.mrb[0].mxu0
        %v2008 = vadd.f32 0.0, %v2007
        %v2009 = vpop.f32.mrb[0].mxu0
        %2010 = vdwg.mxu0
        %v2011 = vmul.f32 %v1932, 0.35355338
        %v2012 = vmul.f32 %v2008, 0.35355338
        %v2013 = vsel %vm1858, %v2011, -inf
        %2014 = vmax.xlane.f32.xlu0 %v2013
        %v2015 = vpop.xlane.xlu0 %2014
        %v2016 = vsel %vm1858, %v2012, -inf
        %2017 = vmax.xlane.f32.xlu0 %v2016
        %v2018 = vpop.xlane.xlu0 %2017
        %v2019 = vsub.f32 %v2011, %v2015
        %v2020 = vsub.f32 %v2012, %v2018
        %v2021 = vmul.f32 %v2019, 1.442695
        %v2022 = vpow.pop %v2021
        %v2023 = vmul.f32 %v2020, 1.442695
        %v2024 = vpow.pop %v2023
        %v2025 = vsel %vm1858, %v2022, 0.0
        %2026 = vadd.xlane.f32.xlu0 %v2025
        %v2027 = vpop.xlane.xlu0 %2026
        %v2028 = vsel %vm1858, %v2024, 0.0
        %2029 = vadd.xlane.f32.xlu0 %v2028
        %v2030 = vpop.xlane.xlu0 %2029
        %v2031 = vrcp.pop %v2027
        %v2032 = vmul.f32 %v2022, %v2031
        %v2033 = vrcp.pop %v2030
        %v2034 = vmul.f32 %v2024, %v2033
        %v2036 = vsel %vm1858, %v2032, 0
        %2038 = vmatprep.subr.mxu0 0.0
        %2039 = vmatpush1.msra.mxu0 %v1850
        %2040 = vmatprep.subr.mxu0 0.0
        %2041 = vmatpush1.msra.mxu0 0.0
        %2042 = vmatprep.subr.mxu0 0.0
        %2043 = vmatpush1.msra.mxu0 0.0
        %2044 = vmatprep.subr.mxu0 0.0
        %2045 = vmatpush1.msra.mxu0 0.0
        %2046 = vmatprep.subr.mxu0 0.0
        %2047 = vmatpush1.msra.mxu0 0.0
        %2048 = vmatprep.subr.mxu0 0.0
        %2049 = vmatpush1.msra.mxu0 0.0
        %2050 = vmatprep.subr.mxu0 0.0
        %2051 = vmatpush1.msra.mxu0 0.0
        %2052 = vmatprep.subr.mxu0 0.0
        %2053 = vmatpush1.msra.mxu0 0.0
        %2054 = vmatprep.subr.mxu0 0.0
        %2055 = vmatpush1.msra.mxu0 0.0
        %2056 = vmatprep.subr.mxu0 0.0
        %2057 = vmatpush1.msra.mxu0 0.0
        %2058 = vmatprep.subr.mxu0 0.0
        %2059 = vmatpush1.msra.mxu0 0.0
        %2060 = vmatprep.subr.mxu0 0.0
        %2061 = vmatpush1.msra.mxu0 0.0
        %2062 = vmatprep.subr.mxu0 0.0
        %2063 = vmatpush1.msra.mxu0 0.0
        %2064 = vmatprep.subr.mxu0 0.0
        %2065 = vmatpush1.msra.mxu0 0.0
        %2066 = vmatprep.subr.mxu0 0.0
        %2067 = vmatpush1.msra.mxu0 0.0
        %2068 = vmatprep.subr.mxu0 0.0
        %2069 = vmatpush1.msra.mxu0 0.0
        %2070 = vmatprep.subr.mxu0 0.0
        %2071 = vmatpush1.msra.mxu0 0.0
        %2072 = vmatprep.subr.mxu0 0.0
        %2073 = vmatpush1.msra.mxu0 0.0
        %2074 = vmatprep.subr.mxu0 0.0
        %2075 = vmatpush1.msra.mxu0 0.0
        %2076 = vmatprep.subr.mxu0 0.0
        %2077 = vmatpush1.msra.mxu0 0.0
        %2078 = vmatprep.subr.mxu0 0.0
        %2079 = vmatpush1.msra.mxu0 0.0
        %2080 = vmatprep.subr.mxu0 0.0
        %2081 = vmatpush1.msra.mxu0 0.0
        %2082 = vmatprep.subr.mxu0 0.0
        %2083 = vmatpush1.msra.mxu0 0.0
        %2084 = vmatprep.subr.mxu0 0.0
        %2085 = vmatpush1.msra.mxu0 0.0
        %2086 = vmatprep.subr.mxu0 0.0
        %2087 = vmatpush1.msra.mxu0 0.0
        %2088 = vmatprep.subr.mxu0 0.0
        %2089 = vmatpush1.msra.mxu0 0.0
        %2090 = vmatprep.subr.mxu0 0.0
        %2091 = vmatpush1.msra.mxu0 0.0
        %2092 = vmatprep.subr.mxu0 0.0
        %2093 = vmatpush1.msra.mxu0 0.0
        %2094 = vmatprep.subr.mxu0 0.0
        %2095 = vmatpush1.msra.mxu0 0.0
        %2096 = vmatprep.subr.mxu0 0.0
        %2097 = vmatpush1.msra.mxu0 0.0
        %2098 = vmatprep.subr.mxu0 0.0
        %2099 = vmatpush1.msra.mxu0 0.0
        %2100 = vmatprep.subr.mxu0 0.0
        %2101 = vmatpush1.msra.mxu0 0.0
        %2102 = vmatprep.mubr.f32.mxu0 0.0
        %2103 = vmatmul.mubr.f32.gmra.mrb[0].mxu0 %v2036
        %v2104 = vpop.f32.mrb[0].mxu0
        %v2105 = vadd.f32 0.0, %v2104
        %v2106 = vpop.f32.mrb[0].mxu0
        %2107 = vdwg.mxu0
        %v2109 = vsel %vm1858, %v2034, 0
        %2111 = vmatprep.subr.mxu0 0.0
        %2112 = vmatpush1.msra.mxu0 %v1855
        %2113 = vmatprep.subr.mxu0 0.0
        %2114 = vmatpush1.msra.mxu0 0.0
        %2115 = vmatprep.subr.mxu0 0.0
        %2116 = vmatpush1.msra.mxu0 0.0
        %2117 = vmatprep.subr.mxu0 0.0
        %2118 = vmatpush1.msra.mxu0 0.0
        %2119 = vmatprep.subr.mxu0 0.0
        %2120 = vmatpush1.msra.mxu0 0.0
        %2121 = vmatprep.subr.mxu0 0.0
        %2122 = vmatpush1.msra.mxu0 0.0
        %2123 = vmatprep.subr.mxu0 0.0
        %2124 = vmatpush1.msra.mxu0 0.0
        %2125 = vmatprep.subr.mxu0 0.0
        %2126 = vmatpush1.msra.mxu0 0.0
        %2127 = vmatprep.subr.mxu0 0.0
        %2128 = vmatpush1.msra.mxu0 0.0
        %2129 = vmatprep.subr.mxu0 0.0
        %2130 = vmatpush1.msra.mxu0 0.0
        %2131 = vmatprep.subr.mxu0 0.0
        %2132 = vmatpush1.msra.mxu0 0.0
        %2133 = vmatprep.subr.mxu0 0.0
        %2134 = vmatpush1.msra.mxu0 0.0
        %2135 = vmatprep.subr.mxu0 0.0
        %2136 = vmatpush1.msra.mxu0 0.0
        %2137 = vmatprep.subr.mxu0 0.0
        %2138 = vmatpush1.msra.mxu0 0.0
        %2139 = vmatprep.subr.mxu0 0.0
        %2140 = vmatpush1.msra.mxu0 0.0
        %2141 = vmatprep.subr.mxu0 0.0
        %2142 = vmatpush1.msra.mxu0 0.0
        %2143 = vmatprep.subr.mxu0 0.0
        %2144 = vmatpush1.msra.mxu0 0.0
        %2145 = vmatprep.subr.mxu0 0.0
        %2146 = vmatpush1.msra.mxu0 0.0
        %2147 = vmatprep.subr.mxu0 0.0
        %2148 = vmatpush1.msra.mxu0 0.0
        %2149 = vmatprep.subr.mxu0 0.0
        %2150 = vmatpush1.msra.mxu0 0.0
        %2151 = vmatprep.subr.mxu0 0.0
        %2152 = vmatpush1.msra.mxu0 0.0
        %2153 = vmatprep.subr.mxu0 0.0
        %2154 = vmatpush1.msra.mxu0 0.0
        %2155 = vmatprep.subr.mxu0 0.0
        %2156 = vmatpush1.msra.mxu0 0.0
        %2157 = vmatprep.subr.mxu0 0.0
        %2158 = vmatpush1.msra.mxu0 0.0
        %2159 = vmatprep.subr.mxu0 0.0
        %2160 = vmatpush1.msra.mxu0 0.0
        %2161 = vmatprep.subr.mxu0 0.0
        %2162 = vmatpush1.msra.mxu0 0.0
        %2163 = vmatprep.subr.mxu0 0.0
        %2164 = vmatpush1.msra.mxu0 0.0
        %2165 = vmatprep.subr.mxu0 0.0
        %2166 = vmatpush1.msra.mxu0 0.0
        %2167 = vmatprep.subr.mxu0 0.0
        %2168 = vmatpush1.msra.mxu0 0.0
        %2169 = vmatprep.subr.mxu0 0.0
        %2170 = vmatpush1.msra.mxu0 0.0
        %2171 = vmatprep.subr.mxu0 0.0
        %2172 = vmatpush1.msra.mxu0 0.0
        %2173 = vmatprep.subr.mxu0 0.0
        %2174 = vmatpush1.msra.mxu0 0.0
        %2175 = vmatprep.mubr.f32.mxu0 0.0
        %2176 = vmatmul.mubr.f32.gmra.mrb[0].mxu0 %v2109
        %v2177 = vpop.f32.mrb[0].mxu0
        %v2178 = vadd.f32 0.0, %v2177
        %v2179 = vpop.f32.mrb[0].mxu0
        %2180 = vdwg.mxu0
        %v2181 = vld [vmem:[%s11] sm:$0xff]
        %v2183 = vsel %vm1858, %v2105, 0
        %v2186 = vsel %vm1858, %v2178, 0
        %2188 = vmatprep.subr.mxu0 0.0
        %2189 = vmatpush1.msra.mxu0 %v2181
        %2190 = vmatprep.subr.mxu0 0.0
        %2191 = vmatpush1.msra.mxu0 0.0
        %2192 = vmatprep.subr.mxu0 0.0
        %2193 = vmatpush1.msra.mxu0 0.0
        %2194 = vmatprep.subr.mxu0 0.0
        %2195 = vmatpush1.msra.mxu0 0.0
        %2196 = vmatprep.subr.mxu0 0.0
        %2197 = vmatpush1.msra.mxu0 0.0
        %2198 = vmatprep.subr.mxu0 0.0
        %2199 = vmatpush1.msra.mxu0 0.0
        %2200 = vmatprep.subr.mxu0 0.0
        %2201 = vmatpush1.msra.mxu0 0.0
        %2202 = vmatprep.subr.mxu0 0.0
        %2203 = vmatpush1.msra.mxu0 0.0
        %2204 = vmatprep.subr.mxu0 0.0
        %2205 = vmatpush1.msra.mxu0 0.0
        %2206 = vmatprep.subr.mxu0 0.0
        %2207 = vmatpush1.msra.mxu0 0.0
        %2208 = vmatprep.subr.mxu0 0.0
        %2209 = vmatpush1.msra.mxu0 0.0
        %2210 = vmatprep.subr.mxu0 0.0
        %2211 = vmatpush1.msra.mxu0 0.0
        %2212 = vmatprep.subr.mxu0 0.0
        %2213 = vmatpush1.msra.mxu0 0.0
        %2214 = vmatprep.subr.mxu0 0.0
        %2215 = vmatpush1.msra.mxu0 0.0
        %2216 = vmatprep.subr.mxu0 0.0
        %2217 = vmatpush1.msra.mxu0 0.0
        %2218 = vmatprep.subr.mxu0 0.0
        %2219 = vmatpush1.msra.mxu0 0.0
        %2220 = vmatprep.subr.mxu0 0.0
        %2221 = vmatpush1.msra.mxu0 0.0
        %2222 = vmatprep.subr.mxu0 0.0
        %2223 = vmatpush1.msra.mxu0 0.0
        %2224 = vmatprep.subr.mxu0 0.0
        %2225 = vmatpush1.msra.mxu0 0.0
        %2226 = vmatprep.subr.mxu0 0.0
        %2227 = vmatpush1.msra.mxu0 0.0
        %2228 = vmatprep.subr.mxu0 0.0
        %2229 = vmatpush1.msra.mxu0 0.0
        %2230 = vmatprep.subr.mxu0 0.0
        %2231 = vmatpush1.msra.mxu0 0.0
        %2232 = vmatprep.subr.mxu0 0.0
        %2233 = vmatpush1.msra.mxu0 0.0
        %2234 = vmatprep.subr.mxu0 0.0
        %2235 = vmatpush1.msra.mxu0 0.0
        %2236 = vmatprep.subr.mxu0 0.0
        %2237 = vmatpush1.msra.mxu0 0.0
        %2238 = vmatprep.subr.mxu0 0.0
        %2239 = vmatpush1.msra.mxu0 0.0
        %2240 = vmatprep.subr.mxu0 0.0
        %2241 = vmatpush1.msra.mxu0 0.0
        %2242 = vmatprep.subr.mxu0 0.0
        %2243 = vmatpush1.msra.mxu0 0.0
        %2244 = vmatprep.subr.mxu0 0.0
        %2245 = vmatpush1.msra.mxu0 0.0
        %2246 = vmatprep.subr.mxu0 0.0
        %2247 = vmatpush1.msra.mxu0 0.0
        %2248 = vmatprep.subr.mxu0 0.0
        %2249 = vmatpush1.msra.mxu0 0.0
        %2250 = vmatprep.subr.mxu0 0.0
        %2251 = vmatpush1.msra.mxu0 0.0
        %2252 = vmatprep.mubr.f32.mxu0 0.0
        %2253 = vmatmul.mubr.f32.gmra.mrb[0].mxu0 %v2183
        %v2254 = vpop.f32.mrb[0].mxu0
        %v2255 = vadd.f32 0.0, %v2254
        %v2256 = vpop.f32.mrb[0].mxu0
        %2257 = vmatprep.mubr.f32.mxu0 0.0
        %2258 = vmatmul.mubr.f32.gmra.mrb[0].mxu0 %v2186
        %v2259 = vpop.f32.mrb[0].mxu0
        %v2260 = vadd.f32 0.0, %v2259
        %v2261 = vpop.f32.mrb[0].mxu0
        %2262 = vdwg.mxu0
        %v2263 = vadd.f32 %v1612, %v2255
        %v2264 = vadd.f32 %v1612, %v2260
        %s2265 = scalar_lea.vmem %s10, 32
        %v2266 = vld [vmem:[%s2265] sm:$0xff]
        %v2267 = vld [vmem:[%s2265 + $0x8] sm:$0xff]
        %v2268 = vld [vmem:[%s2265 + $0x10] sm:$0xff]
        %v2269 = vld [vmem:[%s2265 + $0x18] sm:$0xff]
        %2270 = vmatprep.subr.mxu0 0.0
        %2271 = vmatpush1.msra.mxu0 %v2266
        %2272 = vmatprep.subr.mxu0 0.0
        %2273 = vmatpush1.msra.mxu0 %v2267
        %2274 = vmatprep.subr.mxu0 0.0
        %2275 = vmatpush1.msra.mxu0 %v2268
        %2276 = vmatprep.subr.mxu0 0.0
        %2277 = vmatpush1.msra.mxu0 %v2269
        %2278 = vmatprep.subr.mxu0 0.0
        %2279 = vmatpush1.msra.mxu0 0.0
        %2280 = vmatprep.subr.mxu0 0.0
        %2281 = vmatpush1.msra.mxu0 0.0
        %2282 = vmatprep.subr.mxu0 0.0
        %2283 = vmatpush1.msra.mxu0 0.0
        %2284 = vmatprep.subr.mxu0 0.0
        %2285 = vmatpush1.msra.mxu0 0.0
        %2286 = vmatprep.subr.mxu0 0.0
        %2287 = vmatpush1.msra.mxu0 0.0
        %2288 = vmatprep.subr.mxu0 0.0
        %2289 = vmatpush1.msra.mxu0 0.0
        %2290 = vmatprep.subr.mxu0 0.0
        %2291 = vmatpush1.msra.mxu0 0.0
        %2292 = vmatprep.subr.mxu0 0.0
        %2293 = vmatpush1.msra.mxu0 0.0
        %2294 = vmatprep.subr.mxu0 0.0
        %2295 = vmatpush1.msra.mxu0 0.0
        %2296 = vmatprep.subr.mxu0 0.0
        %2297 = vmatpush1.msra.mxu0 0.0
        %2298 = vmatprep.subr.mxu0 0.0
        %2299 = vmatpush1.msra.mxu0 0.0
        %2300 = vmatprep.subr.mxu0 0.0
        %2301 = vmatpush1.msra.mxu0 0.0
        %2302 = vmatprep.subr.mxu0 0.0
        %2303 = vmatpush1.msra.mxu0 0.0
        %2304 = vmatprep.subr.mxu0 0.0
        %2305 = vmatpush1.msra.mxu0 0.0
        %2306 = vmatprep.subr.mxu0 0.0
        %2307 = vmatpush1.msra.mxu0 0.0
        %2308 = vmatprep.subr.mxu0 0.0
        %2309 = vmatpush1.msra.mxu0 0.0
        %2310 = vmatprep.subr.mxu0 0.0
        %2311 = vmatpush1.msra.mxu0 0.0
        %2312 = vmatprep.subr.mxu0 0.0
        %2313 = vmatpush1.msra.mxu0 0.0
        %2314 = vmatprep.subr.mxu0 0.0
        %2315 = vmatpush1.msra.mxu0 0.0
        %2316 = vmatprep.subr.mxu0 0.0
        %2317 = vmatpush1.msra.mxu0 0.0
        %2318 = vmatprep.subr.mxu0 0.0
        %2319 = vmatpush1.msra.mxu0 0.0
        %2320 = vmatprep.subr.mxu0 0.0
        %2321 = vmatpush1.msra.mxu0 0.0
        %2322 = vmatprep.subr.mxu0 0.0
        %2323 = vmatpush1.msra.mxu0 0.0
        %2324 = vmatprep.subr.mxu0 0.0
        %2325 = vmatpush1.msra.mxu0 0.0
        %2326 = vmatprep.subr.mxu0 0.0
        %2327 = vmatpush1.msra.mxu0 0.0
        %2328 = vmatprep.subr.mxu0 0.0
        %2329 = vmatpush1.msra.mxu0 0.0
        %2330 = vmatprep.subr.mxu0 0.0
        %2331 = vmatpush1.msra.mxu0 0.0
        %2332 = vmatprep.subr.mxu0 0.0
        %2333 = vmatpush1.msra.mxu0 0.0
        %2334 = vmatprep.mubr.f32.mxu0 0.0
        %2335 = vmatmul.mubr.f32.gmra.mrb[0].mxu0 %v1618
        %v2336 = vpop.f32.mrb[0].mxu0
        %v2337 = vadd.f32 0.0, %v2336
        %v2338 = vpop.f32.mrb[0].mxu0
        %2339 = vmatprep.mubr.f32.mxu0 0.0
        %2340 = vmatmul.mubr.f32.gmra.mrb[0].mxu0 %v1621
        %v2341 = vpop.f32.mrb[0].mxu0
        %v2342 = vadd.f32 0.0, %v2341
        %v2343 = vpop.f32.mrb[0].mxu0
        %2344 = vdwg.mxu0
        %s2345 = scalar_lea.vmem %s10, 160
        %v2346 = vld [vmem:[%s2345] sm:$0xff]
        %v2347 = vld [vmem:[%s2345 + $0x8] sm:$0xff]
        %v2348 = vld [vmem:[%s2345 + $0x10] sm:$0xff]
        %v2349 = vld [vmem:[%s2345 + $0x18] sm:$0xff]
        %2350 = vmatprep.subr.mxu0 0.0
        %2351 = vmatpush1.msra.mxu0 %v2346
        %2352 = vmatprep.subr.mxu0 0.0
        %2353 = vmatpush1.msra.mxu0 %v2347
        %2354 = vmatprep.subr.mxu0 0.0
        %2355 = vmatpush1.msra.mxu0 %v2348
        %2356 = vmatprep.subr.mxu0 0.0
        %2357 = vmatpush1.msra.mxu0 %v2349
        %2358 = vmatprep.subr.mxu0 0.0
        %2359 = vmatpush1.msra.mxu0 0.0
        %2360 = vmatprep.subr.mxu0 0.0
        %2361 = vmatpush1.msra.mxu0 0.0
        %2362 = vmatprep.subr.mxu0 0.0
        %2363 = vmatpush1.msra.mxu0 0.0
        %2364 = vmatprep.subr.mxu0 0.0
        %2365 = vmatpush1.msra.mxu0 0.0
        %2366 = vmatprep.subr.mxu0 0.0
        %2367 = vmatpush1.msra.mxu0 0.0
        %2368 = vmatprep.subr.mxu0 0.0
        %2369 = vmatpush1.msra.mxu0 0.0
        %2370 = vmatprep.subr.mxu0 0.0
        %2371 = vmatpush1.msra.mxu0 0.0
        %2372 = vmatprep.subr.mxu0 0.0
        %2373 = vmatpush1.msra.mxu0 0.0
        %2374 = vmatprep.subr.mxu0 0.0
        %2375 = vmatpush1.msra.mxu0 0.0
        %2376 = vmatprep.subr.mxu0 0.0
        %2377 = vmatpush1.msra.mxu0 0.0
        %2378 = vmatprep.subr.mxu0 0.0
        %2379 = vmatpush1.msra.mxu0 0.0
        %2380 = vmatprep.subr.mxu0 0.0
        %2381 = vmatpush1.msra.mxu0 0.0
        %2382 = vmatprep.subr.mxu0 0.0
        %2383 = vmatpush1.msra.mxu0 0.0
        %2384 = vmatprep.subr.mxu0 0.0
        %2385 = vmatpush1.msra.mxu0 0.0
        %2386 = vmatprep.subr.mxu0 0.0
        %2387 = vmatpush1.msra.mxu0 0.0
        %2388 = vmatprep.subr.mxu0 0.0
        %2389 = vmatpush1.msra.mxu0 0.0
        %2390 = vmatprep.subr.mxu0 0.0
        %2391 = vmatpush1.msra.mxu0 0.0
        %2392 = vmatprep.subr.mxu0 0.0
        %2393 = vmatpush1.msra.mxu0 0.0
        %2394 = vmatprep.subr.mxu0 0.0
        %2395 = vmatpush1.msra.mxu0 0.0
        %2396 = vmatprep.subr.mxu0 0.0
        %2397 = vmatpush1.msra.mxu0 0.0
        %2398 = vmatprep.subr.mxu0 0.0
        %2399 = vmatpush1.msra.mxu0 0.0
        %2400 = vmatprep.subr.mxu0 0.0
        %2401 = vmatpush1.msra.mxu0 0.0
        %2402 = vmatprep.subr.mxu0 0.0
        %2403 = vmatpush1.msra.mxu0 0.0
        %2404 = vmatprep.subr.mxu0 0.0
        %2405 = vmatpush1.msra.mxu0 0.0
        %2406 = vmatprep.subr.mxu0 0.0
        %2407 = vmatpush1.msra.mxu0 0.0
        %2408 = vmatprep.subr.mxu0 0.0
        %2409 = vmatpush1.msra.mxu0 0.0
        %2410 = vmatprep.subr.mxu0 0.0
        %2411 = vmatpush1.msra.mxu0 0.0
        %2412 = vmatprep.subr.mxu0 0.0
        %2413 = vmatpush1.msra.mxu0 0.0
        %2414 = vmatprep.mubr.f32.mxu0 0.0
        %2415 = vmatmul.mubr.f32.gmra.mrb[0].mxu0 %v1618
        %v2416 = vpop.f32.mrb[0].mxu0
        %v2417 = vadd.f32 0.0, %v2416
        %v2418 = vpop.f32.mrb[0].mxu0
        %2419 = vmatprep.mubr.f32.mxu0 0.0
        %2420 = vmatmul.mubr.f32.gmra.mrb[0].mxu0 %v1621
        %v2421 = vpop.f32.mrb[0].mxu0
        %v2422 = vadd.f32 0.0, %v2421
        %v2423 = vpop.f32.mrb[0].mxu0
        %2424 = vdwg.mxu0
        %s2425 = scalar_lea.vmem %s10, 288
        %v2426 = vld [vmem:[%s2425] sm:$0xff]
        %v2427 = vld [vmem:[%s2425 + $0x8] sm:$0xff]
        %v2428 = vld [vmem:[%s2425 + $0x10] sm:$0xff]
        %v2429 = vld [vmem:[%s2425 + $0x18] sm:$0xff]
        %2430 = vmatprep.subr.mxu0 0.0
        %2431 = vmatpush1.msra.mxu0 %v2426
        %2432 = vmatprep.subr.mxu0 0.0
        %2433 = vmatpush1.msra.mxu0 %v2427
        %2434 = vmatprep.subr.mxu0 0.0
        %2435 = vmatpush1.msra.mxu0 %v2428
        %2436 = vmatprep.subr.mxu0 0.0
        %2437 = vmatpush1.msra.mxu0 %v2429
        %2438 = vmatprep.subr.mxu0 0.0
        %2439 = vmatpush1.msra.mxu0 0.0
        %2440 = vmatprep.subr.mxu0 0.0
        %2441 = vmatpush1.msra.mxu0 0.0
        %2442 = vmatprep.subr.mxu0 0.0
        %2443 = vmatpush1.msra.mxu0 0.0
        %2444 = vmatprep.subr.mxu0 0.0
        %2445 = vmatpush1.msra.mxu0 0.0
        %2446 = vmatprep.subr.mxu0 0.0
        %2447 = vmatpush1.msra.mxu0 0.0
        %2448 = vmatprep.subr.mxu0 0.0
        %2449 = vmatpush1.msra.mxu0 0.0
        %2450 = vmatprep.subr.mxu0 0.0
        %2451 = vmatpush1.msra.mxu0 0.0
        %2452 = vmatprep.subr.mxu0 0.0
        %2453 = vmatpush1.msra.mxu0 0.0
        %2454 = vmatprep.subr.mxu0 0.0
        %2455 = vmatpush1.msra.mxu0 0.0
        %2456 = vmatprep.subr.mxu0 0.0
        %2457 = vmatpush1.msra.mxu0 0.0
        %2458 = vmatprep.subr.mxu0 0.0
        %2459 = vmatpush1.msra.mxu0 0.0
        %2460 = vmatprep.subr.mxu0 0.0
        %2461 = vmatpush1.msra.mxu0 0.0
        %2462 = vmatprep.subr.mxu0 0.0
        %2463 = vmatpush1.msra.mxu0 0.0
        %2464 = vmatprep.subr.mxu0 0.0
        %2465 = vmatpush1.msra.mxu0 0.0
        %2466 = vmatprep.subr.mxu0 0.0
        %2467 = vmatpush1.msra.mxu0 0.0
        %2468 = vmatprep.subr.mxu0 0.0
        %2469 = vmatpush1.msra.mxu0 0.0
        %2470 = vmatprep.subr.mxu0 0.0
        %2471 = vmatpush1.msra.mxu0 0.0
        %2472 = vmatprep.subr.mxu0 0.0
        %2473 = vmatpush1.msra.mxu0 0.0
        %2474 = vmatprep.subr.mxu0 0.0
        %2475 = vmatpush1.msra.mxu0 0.0
        %2476 = vmatprep.subr.mxu0 0.0
        %2477 = vmatpush1.msra.mxu0 0.0
        %2478 = vmatprep.subr.mxu0 0.0
        %2479 = vmatpush1.msra.mxu0 0.0
        %2480 = vmatprep.subr.mxu0 0.0
        %2481 = vmatpush1.msra.mxu0 0.0
        %2482 = vmatprep.subr.mxu0 0.0
        %2483 = vmatpush1.msra.mxu0 0.0
        %2484 = vmatprep.subr.mxu0 0.0
        %2485 = vmatpush1.msra.mxu0 0.0
        %2486 = vmatprep.subr.mxu0 0.0
        %2487 = vmatpush1.msra.mxu0 0.0
        %2488 = vmatprep.subr.mxu0 0.0
        %2489 = vmatpush1.msra.mxu0 0.0
        %2490 = vmatprep.subr.mxu0 0.0
        %2491 = vmatpush1.msra.mxu0 0.0
        %2492 = vmatprep.subr.mxu0 0.0
        %2493 = vmatpush1.msra.mxu0 0.0
        %2494 = vmatprep.mubr.f32.mxu0 0.0
        %2495 = vmatmul.mubr.f32.gmra.mrb[0].mxu0 %v1618
        %v2496 = vpop.f32.mrb[0].mxu0
        %v2497 = vadd.f32 0.0, %v2496
        %v2498 = vpop.f32.mrb[0].mxu0
        %2499 = vmatprep.mubr.f32.mxu0 0.0
        %2500 = vmatmul.mubr.f32.gmra.mrb[0].mxu0 %v1621
        %v2501 = vpop.f32.mrb[0].mxu0
        %v2502 = vadd.f32 0.0, %v2501
        %v2503 = vpop.f32.mrb[0].mxu0
        %2504 = vdwg.mxu0
        %v2506 = vsel %vm1858, %v2337, 0
        %v2509 = vsel %vm1858, %v2417, 0
        %2511 = vmatprep.subr.mxu0 0.0
        %2512 = vmatpush1.xpose.msra.mxu0 %v2509
        %2513 = vmatprep.subr.mxu0 0.0
        %2514 = vmatpush1.xpose.msra.mxu0 0.0
        %2515 = vmatprep.subr.mxu0 0.0
        %2516 = vmatpush1.xpose.msra.mxu0 0.0
        %2517 = vmatprep.subr.mxu0 0.0
        %2518 = vmatpush1.xpose.msra.mxu0 0.0
        %2519 = vmatprep.subr.mxu0 0.0
        %2520 = vmatpush1.xpose.msra.mxu0 0.0
        %2521 = vmatprep.subr.mxu0 0.0
        %2522 = vmatpush1.xpose.msra.mxu0 0.0
        %2523 = vmatprep.subr.mxu0 0.0
        %2524 = vmatpush1.xpose.msra.mxu0 0.0
        %2525 = vmatprep.subr.mxu0 0.0
        %2526 = vmatpush1.xpose.msra.mxu0 0.0
        %2527 = vmatprep.subr.mxu0 0.0
        %2528 = vmatpush1.xpose.msra.mxu0 0.0
        %2529 = vmatprep.subr.mxu0 0.0
        %2530 = vmatpush1.xpose.msra.mxu0 0.0
        %2531 = vmatprep.subr.mxu0 0.0
        %2532 = vmatpush1.xpose.msra.mxu0 0.0
        %2533 = vmatprep.subr.mxu0 0.0
        %2534 = vmatpush1.xpose.msra.mxu0 0.0
        %2535 = vmatprep.subr.mxu0 0.0
        %2536 = vmatpush1.xpose.msra.mxu0 0.0
        %2537 = vmatprep.subr.mxu0 0.0
        %2538 = vmatpush1.xpose.msra.mxu0 0.0
        %2539 = vmatprep.subr.mxu0 0.0
        %2540 = vmatpush1.xpose.msra.mxu0 0.0
        %2541 = vmatprep.subr.mxu0 0.0
        %2542 = vmatpush1.xpose.msra.mxu0 0.0
        %2543 = vmatprep.subr.mxu0 0.0
        %2544 = vmatpush1.xpose.msra.mxu0 0.0
        %2545 = vmatprep.subr.mxu0 0.0
        %2546 = vmatpush1.xpose.msra.mxu0 0.0
        %2547 = vmatprep.subr.mxu0 0.0
        %2548 = vmatpush1.xpose.msra.mxu0 0.0
        %2549 = vmatprep.subr.mxu0 0.0
        %2550 = vmatpush1.xpose.msra.mxu0 0.0
        %2551 = vmatprep.subr.mxu0 0.0
        %2552 = vmatpush1.xpose.msra.mxu0 0.0
        %2553 = vmatprep.subr.mxu0 0.0
        %2554 = vmatpush1.xpose.msra.mxu0 0.0
        %2555 = vmatprep.subr.mxu0 0.0
        %2556 = vmatpush1.xpose.msra.mxu0 0.0
        %2557 = vmatprep.subr.mxu0 0.0
        %2558 = vmatpush1.xpose.msra.mxu0 0.0
        %2559 = vmatprep.subr.mxu0 0.0
        %2560 = vmatpush1.xpose.msra.mxu0 0.0
        %2561 = vmatprep.subr.mxu0 0.0
        %2562 = vmatpush1.xpose.msra.mxu0 0.0
        %2563 = vmatprep.subr.mxu0 0.0
        %2564 = vmatpush1.xpose.msra.mxu0 0.0
        %2565 = vmatprep.subr.mxu0 0.0
        %2566 = vmatpush1.xpose.msra.mxu0 0.0
        %2567 = vmatprep.subr.mxu0 0.0
        %2568 = vmatpush1.xpose.msra.mxu0 0.0
        %2569 = vmatprep.subr.mxu0 0.0
        %2570 = vmatpush1.xpose.msra.mxu0 0.0
        %2571 = vmatprep.subr.mxu0 0.0
        %2572 = vmatpush1.xpose.msra.mxu0 0.0
        %2573 = vmatprep.subr.mxu0 0.0
        %2574 = vmatpush1.xpose.msra.mxu0 0.0
        %2575 = vmatprep.mubr.f32.mxu0 0.0
        %2576 = vmatmul.mubr.f32.gmra.mrb[0].mxu0 %v2506
        %v2577 = vpop.f32.mrb[0].mxu0
        %v2578 = vadd.f32 0.0, %v2577
        %v2579 = vpop.f32.mrb[0].mxu0
        %2580 = vdwg.mxu0
        %v2582 = vsel %vm1858, %v2342, 0
        %v2585 = vsel %vm1858, %v2422, 0
        %2587 = vmatprep.subr.mxu0 0.0
        %2588 = vmatpush1.xpose.msra.mxu0 %v2585
        %2589 = vmatprep.subr.mxu0 0.0
        %2590 = vmatpush1.xpose.msra.mxu0 0.0
        %2591 = vmatprep.subr.mxu0 0.0
        %2592 = vmatpush1.xpose.msra.mxu0 0.0
        %2593 = vmatprep.subr.mxu0 0.0
        %2594 = vmatpush1.xpose.msra.mxu0 0.0
        %2595 = vmatprep.subr.mxu0 0.0
        %2596 = vmatpush1.xpose.msra.mxu0 0.0
        %2597 = vmatprep.subr.mxu0 0.0
        %2598 = vmatpush1.xpose.msra.mxu0 0.0
        %2599 = vmatprep.subr.mxu0 0.0
        %2600 = vmatpush1.xpose.msra.mxu0 0.0
        %2601 = vmatprep.subr.mxu0 0.0
        %2602 = vmatpush1.xpose.msra.mxu0 0.0
        %2603 = vmatprep.subr.mxu0 0.0
        %2604 = vmatpush1.xpose.msra.mxu0 0.0
        %2605 = vmatprep.subr.mxu0 0.0
        %2606 = vmatpush1.xpose.msra.mxu0 0.0
        %2607 = vmatprep.subr.mxu0 0.0
        %2608 = vmatpush1.xpose.msra.mxu0 0.0
        %2609 = vmatprep.subr.mxu0 0.0
        %2610 = vmatpush1.xpose.msra.mxu0 0.0
        %2611 = vmatprep.subr.mxu0 0.0
        %2612 = vmatpush1.xpose.msra.mxu0 0.0
        %2613 = vmatprep.subr.mxu0 0.0
        %2614 = vmatpush1.xpose.msra.mxu0 0.0
        %2615 = vmatprep.subr.mxu0 0.0
        %2616 = vmatpush1.xpose.msra.mxu0 0.0
        %2617 = vmatprep.subr.mxu0 0.0
        %2618 = vmatpush1.xpose.msra.mxu0 0.0
        %2619 = vmatprep.subr.mxu0 0.0
        %2620 = vmatpush1.xpose.msra.mxu0 0.0
        %2621 = vmatprep.subr.mxu0 0.0
        %2622 = vmatpush1.xpose.msra.mxu0 0.0
        %2623 = vmatprep.subr.mxu0 0.0
        %2624 = vmatpush1.xpose.msra.mxu0 0.0
        %2625 = vmatprep.subr.mxu0 0.0
        %2626 = vmatpush1.xpose.msra.mxu0 0.0
        %2627 = vmatprep.subr.mxu0 0.0
        %2628 = vmatpush1.xpose.msra.mxu0 0.0
        %2629 = vmatprep.subr.mxu0 0.0
        %2630 = vmatpush1.xpose.msra.mxu0 0.0
        %2631 = vmatprep.subr.mxu0 0.0
        %2632 = vmatpush1.xpose.msra.mxu0 0.0
        %2633 = vmatprep.subr.mxu0 0.0
        %2634 = vmatpush1.xpose.msra.mxu0 0.0
        %2635 = vmatprep.subr.mxu0 0.0
        %2636 = vmatpush1.xpose.msra.mxu0 0.0
        %2637 = vmatprep.subr.mxu0 0.0
        %2638 = vmatpush1.xpose.msra.mxu0 0.0
        %2639 = vmatprep.subr.mxu0 0.0
        %2640 = vmatpush1.xpose.msra.mxu0 0.0
        %2641 = vmatprep.subr.mxu0 0.0
        %2642 = vmatpush1.xpose.msra.mxu0 0.0
        %2643 = vmatprep.subr.mxu0 0.0
        %2644 = vmatpush1.xpose.msra.mxu0 0.0
        %2645 = vmatprep.subr.mxu0 0.0
        %2646 = vmatpush1.xpose.msra.mxu0 0.0
        %2647 = vmatprep.subr.mxu0 0.0
        %2648 = vmatpush1.xpose.msra.mxu0 0.0
        %2649 = vmatprep.subr.mxu0 0.0
        %2650 = vmatpush1.xpose.msra.mxu0 0.0
        %2651 = vmatprep.mubr.f32.mxu0 0.0
        %2652 = vmatmul.mubr.f32.gmra.mrb[0].mxu0 %v2582
        %v2653 = vpop.f32.mrb[0].mxu0
        %v2654 = vadd.f32 0.0, %v2653
        %v2655 = vpop.f32.mrb[0].mxu0
        %2656 = vdwg.mxu0
        %v2657 = vmul.f32 %v2578, 0.35355338
        %v2658 = vmul.f32 %v2654, 0.35355338
        %v2659 = vsel %vm1858, %v2657, -inf
        %2660 = vmax.xlane.f32.xlu0 %v2659
        %v2661 = vpop.xlane.xlu0 %2660
        %v2662 = vsel %vm1858, %v2658, -inf
        %2663 = vmax.xlane.f32.xlu0 %v2662
        %v2664 = vpop.xlane.xlu0 %2663
        %v2665 = vsub.f32 %v2657, %v2661
        %v2666 = vsub.f32 %v2658, %v2664
        %v2667 = vmul.f32 %v2665, 1.442695
        %v2668 = vpow.pop %v2667
        %v2669 = vmul.f32 %v2666, 1.442695
        %v2670 = vpow.pop %v2669
        %v2671 = vsel %vm1858, %v2668, 0.0
        %2672 = vadd.xlane.f32.xlu0 %v2671
        %v2673 = vpop.xlane.xlu0 %2672
        %v2674 = vsel %vm1858, %v2670, 0.0
        %2675 = vadd.xlane.f32.xlu0 %v2674
        %v2676 = vpop.xlane.xlu0 %2675
        %v2677 = vrcp.pop %v2673
        %v2678 = vmul.f32 %v2668, %v2677
        %v2679 = vrcp.pop %v2676
        %v2680 = vmul.f32 %v2670, %v2679
        %v2682 = vsel %vm1858, %v2678, 0
        %2684 = vmatprep.subr.mxu0 0.0
        %2685 = vmatpush1.msra.mxu0 %v2497
        %2686 = vmatprep.subr.mxu0 0.0
        %2687 = vmatpush1.msra.mxu0 0.0
        %2688 = vmatprep.subr.mxu0 0.0
        %2689 = vmatpush1.msra.mxu0 0.0
        %2690 = vmatprep.subr.mxu0 0.0
        %2691 = vmatpush1.msra.mxu0 0.0
        %2692 = vmatprep.subr.mxu0 0.0
        %2693 = vmatpush1.msra.mxu0 0.0
        %2694 = vmatprep.subr.mxu0 0.0
        %2695 = vmatpush1.msra.mxu0 0.0
        %2696 = vmatprep.subr.mxu0 0.0
        %2697 = vmatpush1.msra.mxu0 0.0
        %2698 = vmatprep.subr.mxu0 0.0
        %2699 = vmatpush1.msra.mxu0 0.0
        %2700 = vmatprep.subr.mxu0 0.0
        %2701 = vmatpush1.msra.mxu0 0.0
        %2702 = vmatprep.subr.mxu0 0.0
        %2703 = vmatpush1.msra.mxu0 0.0
        %2704 = vmatprep.subr.mxu0 0.0
        %2705 = vmatpush1.msra.mxu0 0.0
        %2706 = vmatprep.subr.mxu0 0.0
        %2707 = vmatpush1.msra.mxu0 0.0
        %2708 = vmatprep.subr.mxu0 0.0
        %2709 = vmatpush1.msra.mxu0 0.0
        %2710 = vmatprep.subr.mxu0 0.0
        %2711 = vmatpush1.msra.mxu0 0.0
        %2712 = vmatprep.subr.mxu0 0.0
        %2713 = vmatpush1.msra.mxu0 0.0
        %2714 = vmatprep.subr.mxu0 0.0
        %2715 = vmatpush1.msra.mxu0 0.0
        %2716 = vmatprep.subr.mxu0 0.0
        %2717 = vmatpush1.msra.mxu0 0.0
        %2718 = vmatprep.subr.mxu0 0.0
        %2719 = vmatpush1.msra.mxu0 0.0
        %2720 = vmatprep.subr.mxu0 0.0
        %2721 = vmatpush1.msra.mxu0 0.0
        %2722 = vmatprep.subr.mxu0 0.0
        %2723 = vmatpush1.msra.mxu0 0.0
        %2724 = vmatprep.subr.mxu0 0.0
        %2725 = vmatpush1.msra.mxu0 0.0
        %2726 = vmatprep.subr.mxu0 0.0
        %2727 = vmatpush1.msra.mxu0 0.0
        %2728 = vmatprep.subr.mxu0 0.0
        %2729 = vmatpush1.msra.mxu0 0.0
        %2730 = vmatprep.subr.mxu0 0.0
        %2731 = vmatpush1.msra.mxu0 0.0
        %2732 = vmatprep.subr.mxu0 0.0
        %2733 = vmatpush1.msra.mxu0 0.0
        %2734 = vmatprep.subr.mxu0 0.0
        %2735 = vmatpush1.msra.mxu0 0.0
        %2736 = vmatprep.subr.mxu0 0.0
        %2737 = vmatpush1.msra.mxu0 0.0
        %2738 = vmatprep.subr.mxu0 0.0
        %2739 = vmatpush1.msra.mxu0 0.0
        %2740 = vmatprep.subr.mxu0 0.0
        %2741 = vmatpush1.msra.mxu0 0.0
        %2742 = vmatprep.subr.mxu0 0.0
        %2743 = vmatpush1.msra.mxu0 0.0
        %2744 = vmatprep.subr.mxu0 0.0
        %2745 = vmatpush1.msra.mxu0 0.0
        %2746 = vmatprep.subr.mxu0 0.0
        %2747 = vmatpush1.msra.mxu0 0.0
        %2748 = vmatprep.mubr.f32.mxu0 0.0
        %2749 = vmatmul.mubr.f32.gmra.mrb[0].mxu0 %v2682
        %v2750 = vpop.f32.mrb[0].mxu0
        %v2751 = vadd.f32 0.0, %v2750
        %v2752 = vpop.f32.mrb[0].mxu0
        %2753 = vdwg.mxu0
        %v2755 = vsel %vm1858, %v2680, 0
        %2757 = vmatprep.subr.mxu0 0.0
        %2758 = vmatpush1.msra.mxu0 %v2502
        %2759 = vmatprep.subr.mxu0 0.0
        %2760 = vmatpush1.msra.mxu0 0.0
        %2761 = vmatprep.subr.mxu0 0.0
        %2762 = vmatpush1.msra.mxu0 0.0
        %2763 = vmatprep.subr.mxu0 0.0
        %2764 = vmatpush1.msra.mxu0 0.0
        %2765 = vmatprep.subr.mxu0 0.0
        %2766 = vmatpush1.msra.mxu0 0.0
        %2767 = vmatprep.subr.mxu0 0.0
        %2768 = vmatpush1.msra.mxu0 0.0
        %2769 = vmatprep.subr.mxu0 0.0
        %2770 = vmatpush1.msra.mxu0 0.0
        %2771 = vmatprep.subr.mxu0 0.0
        %2772 = vmatpush1.msra.mxu0 0.0
        %2773 = vmatprep.subr.mxu0 0.0
        %2774 = vmatpush1.msra.mxu0 0.0
        %2775 = vmatprep.subr.mxu0 0.0
        %2776 = vmatpush1.msra.mxu0 0.0
        %2777 = vmatprep.subr.mxu0 0.0
        %2778 = vmatpush1.msra.mxu0 0.0
        %2779 = vmatprep.subr.mxu0 0.0
        %2780 = vmatpush1.msra.mxu0 0.0
        %2781 = vmatprep.subr.mxu0 0.0
        %2782 = vmatpush1.msra.mxu0 0.0
        %2783 = vmatprep.subr.mxu0 0.0
        %2784 = vmatpush1.msra.mxu0 0.0
        %2785 = vmatprep.subr.mxu0 0.0
        %2786 = vmatpush1.msra.mxu0 0.0
        %2787 = vmatprep.subr.mxu0 0.0
        %2788 = vmatpush1.msra.mxu0 0.0
        %2789 = vmatprep.subr.mxu0 0.0
        %2790 = vmatpush1.msra.mxu0 0.0
        %2791 = vmatprep.subr.mxu0 0.0
        %2792 = vmatpush1.msra.mxu0 0.0
        %2793 = vmatprep.subr.mxu0 0.0
        %2794 = vmatpush1.msra.mxu0 0.0
        %2795 = vmatprep.subr.mxu0 0.0
        %2796 = vmatpush1.msra.mxu0 0.0
        %2797 = vmatprep.subr.mxu0 0.0
        %2798 = vmatpush1.msra.mxu0 0.0
        %2799 = vmatprep.subr.mxu0 0.0
        %2800 = vmatpush1.msra.mxu0 0.0
        %2801 = vmatprep.subr.mxu0 0.0
        %2802 = vmatpush1.msra.mxu0 0.0
        %2803 = vmatprep.subr.mxu0 0.0
        %2804 = vmatpush1.msra.mxu0 0.0
        %2805 = vmatprep.subr.mxu0 0.0
        %2806 = vmatpush1.msra.mxu0 0.0
        %2807 = vmatprep.subr.mxu0 0.0
        %2808 = vmatpush1.msra.mxu0 0.0
        %2809 = vmatprep.subr.mxu0 0.0
        %2810 = vmatpush1.msra.mxu0 0.0
        %2811 = vmatprep.subr.mxu0 0.0
        %2812 = vmatpush1.msra.mxu0 0.0
        %2813 = vmatprep.subr.mxu0 0.0
        %2814 = vmatpush1.msra.mxu0 0.0
        %2815 = vmatprep.subr.mxu0 0.0
        %2816 = vmatpush1.msra.mxu0 0.0
        %2817 = vmatprep.subr.mxu0 0.0
        %2818 = vmatpush1.msra.mxu0 0.0
        %2819 = vmatprep.subr.mxu0 0.0
        %2820 = vmatpush1.msra.mxu0 0.0
        %2821 = vmatprep.mubr.f32.mxu0 0.0
        %2822 = vmatmul.mubr.f32.gmra.mrb[0].mxu0 %v2755
        %v2823 = vpop.f32.mrb[0].mxu0
        %v2824 = vadd.f32 0.0, %v2823
        %v2825 = vpop.f32.mrb[0].mxu0
        %2826 = vdwg.mxu0
        %s2827 = scalar_lea.vmem %s11, 8
        %v2828 = vld [vmem:[%s2827] sm:$0xff]
        %v2830 = vsel %vm1858, %v2751, 0
        %v2833 = vsel %vm1858, %v2824, 0
        %2835 = vmatprep.subr.mxu0 0.0
        %2836 = vmatpush1.msra.mxu0 %v2828
        %2837 = vmatprep.subr.mxu0 0.0
        %2838 = vmatpush1.msra.mxu0 0.0
        %2839 = vmatprep.subr.mxu0 0.0
        %2840 = vmatpush1.msra.mxu0 0.0
        %2841 = vmatprep.subr.mxu0 0.0
        %2842 = vmatpush1.msra.mxu0 0.0
        %2843 = vmatprep.subr.mxu0 0.0
        %2844 = vmatpush1.msra.mxu0 0.0
        %2845 = vmatprep.subr.mxu0 0.0
        %2846 = vmatpush1.msra.mxu0 0.0
        %2847 = vmatprep.subr.mxu0 0.0
        %2848 = vmatpush1.msra.mxu0 0.0
        %2849 = vmatprep.subr.mxu0 0.0
        %2850 = vmatpush1.msra.mxu0 0.0
        %2851 = vmatprep.subr.mxu0 0.0
        %2852 = vmatpush1.msra.mxu0 0.0
        %2853 = vmatprep.subr.mxu0 0.0
        %2854 = vmatpush1.msra.mxu0 0.0
        %2855 = vmatprep.subr.mxu0 0.0
        %2856 = vmatpush1.msra.mxu0 0.0
        %2857 = vmatprep.subr.mxu0 0.0
        %2858 = vmatpush1.msra.mxu0 0.0
        %2859 = vmatprep.subr.mxu0 0.0
        %2860 = vmatpush1.msra.mxu0 0.0
        %2861 = vmatprep.subr.mxu0 0.0
        %2862 = vmatpush1.msra.mxu0 0.0
        %2863 = vmatprep.subr.mxu0 0.0
        %2864 = vmatpush1.msra.mxu0 0.0
        %2865 = vmatprep.subr.mxu0 0.0
        %2866 = vmatpush1.msra.mxu0 0.0
        %2867 = vmatprep.subr.mxu0 0.0
        %2868 = vmatpush1.msra.mxu0 0.0
        %2869 = vmatprep.subr.mxu0 0.0
        %2870 = vmatpush1.msra.mxu0 0.0
        %2871 = vmatprep.subr.mxu0 0.0
        %2872 = vmatpush1.msra.mxu0 0.0
        %2873 = vmatprep.subr.mxu0 0.0
        %2874 = vmatpush1.msra.mxu0 0.0
        %2875 = vmatprep.subr.mxu0 0.0
        %2876 = vmatpush1.msra.mxu0 0.0
        %2877 = vmatprep.subr.mxu0 0.0
        %2878 = vmatpush1.msra.mxu0 0.0
        %2879 = vmatprep.subr.mxu0 0.0
        %2880 = vmatpush1.msra.mxu0 0.0
        %2881 = vmatprep.subr.mxu0 0.0
        %2882 = vmatpush1.msra.mxu0 0.0
        %2883 = vmatprep.subr.mxu0 0.0
        %2884 = vmatpush1.msra.mxu0 0.0
        %2885 = vmatprep.subr.mxu0 0.0
        %2886 = vmatpush1.msra.mxu0 0.0
        %2887 = vmatprep.subr.mxu0 0.0
        %2888 = vmatpush1.msra.mxu0 0.0
        %2889 = vmatprep.subr.mxu0 0.0
        %2890 = vmatpush1.msra.mxu0 0.0
        %2891 = vmatprep.subr.mxu0 0.0
        %2892 = vmatpush1.msra.mxu0 0.0
        %2893 = vmatprep.subr.mxu0 0.0
        %2894 = vmatpush1.msra.mxu0 0.0
        %2895 = vmatprep.subr.mxu0 0.0
        %2896 = vmatpush1.msra.mxu0 0.0
        %2897 = vmatprep.subr.mxu0 0.0
        %2898 = vmatpush1.msra.mxu0 0.0
        %2899 = vmatprep.mubr.f32.mxu0 0.0
        %2900 = vmatmul.mubr.f32.gmra.mrb[0].mxu0 %v2830
        %v2901 = vpop.f32.mrb[0].mxu0
        %v2902 = vadd.f32 0.0, %v2901
        %v2903 = vpop.f32.mrb[0].mxu0
        %2904 = vmatprep.mubr.f32.mxu0 0.0
        %2905 = vmatmul.mubr.f32.gmra.mrb[0].mxu0 %v2833
        %v2906 = vpop.f32.mrb[0].mxu0
        %v2907 = vadd.f32 0.0, %v2906
        %v2908 = vpop.f32.mrb[0].mxu0
        %2909 = vdwg.mxu0
        %v2910 = vadd.f32 %v2263, %v2902
        %v2911 = vadd.f32 %v2264, %v2907
        %s2912 = scalar_lea.vmem %s10, 64
        %v2913 = vld [vmem:[%s2912] sm:$0xff]
        %v2914 = vld [vmem:[%s2912 + $0x8] sm:$0xff]
        %v2915 = vld [vmem:[%s2912 + $0x10] sm:$0xff]
        %v2916 = vld [vmem:[%s2912 + $0x18] sm:$0xff]
        %2917 = vmatprep.subr.mxu0 0.0
        %2918 = vmatpush1.msra.mxu0 %v2913
        %2919 = vmatprep.subr.mxu0 0.0
        %2920 = vmatpush1.msra.mxu0 %v2914
        %2921 = vmatprep.subr.mxu0 0.0
        %2922 = vmatpush1.msra.mxu0 %v2915
        %2923 = vmatprep.subr.mxu0 0.0
        %2924 = vmatpush1.msra.mxu0 %v2916
        %2925 = vmatprep.subr.mxu0 0.0
        %2926 = vmatpush1.msra.mxu0 0.0
        %2927 = vmatprep.subr.mxu0 0.0
        %2928 = vmatpush1.msra.mxu0 0.0
        %2929 = vmatprep.subr.mxu0 0.0
        %2930 = vmatpush1.msra.mxu0 0.0
        %2931 = vmatprep.subr.mxu0 0.0
        %2932 = vmatpush1.msra.mxu0 0.0
        %2933 = vmatprep.subr.mxu0 0.0
        %2934 = vmatpush1.msra.mxu0 0.0
        %2935 = vmatprep.subr.mxu0 0.0
        %2936 = vmatpush1.msra.mxu0 0.0
        %2937 = vmatprep.subr.mxu0 0.0
        %2938 = vmatpush1.msra.mxu0 0.0
        %2939 = vmatprep.subr.mxu0 0.0
        %2940 = vmatpush1.msra.mxu0 0.0
        %2941 = vmatprep.subr.mxu0 0.0
        %2942 = vmatpush1.msra.mxu0 0.0
        %2943 = vmatprep.subr.mxu0 0.0
        %2944 = vmatpush1.msra.mxu0 0.0
        %2945 = vmatprep.subr.mxu0 0.0
        %2946 = vmatpush1.msra.mxu0 0.0
        %2947 = vmatprep.subr.mxu0 0.0
        %2948 = vmatpush1.msra.mxu0 0.0
        %2949 = vmatprep.subr.mxu0 0.0
        %2950 = vmatpush1.msra.mxu0 0.0
        %2951 = vmatprep.subr.mxu0 0.0
        %2952 = vmatpush1.msra.mxu0 0.0
        %2953 = vmatprep.subr.mxu0 0.0
        %2954 = vmatpush1.msra.mxu0 0.0
        %2955 = vmatprep.subr.mxu0 0.0
        %2956 = vmatpush1.msra.mxu0 0.0
        %2957 = vmatprep.subr.mxu0 0.0
        %2958 = vmatpush1.msra.mxu0 0.0
        %2959 = vmatprep.subr.mxu0 0.0
        %2960 = vmatpush1.msra.mxu0 0.0
        %2961 = vmatprep.subr.mxu0 0.0
        %2962 = vmatpush1.msra.mxu0 0.0
        %2963 = vmatprep.subr.mxu0 0.0
        %2964 = vmatpush1.msra.mxu0 0.0
        %2965 = vmatprep.subr.mxu0 0.0
        %2966 = vmatpush1.msra.mxu0 0.0
        %2967 = vmatprep.subr.mxu0 0.0
        %2968 = vmatpush1.msra.mxu0 0.0
        %2969 = vmatprep.subr.mxu0 0.0
        %2970 = vmatpush1.msra.mxu0 0.0
        %2971 = vmatprep.subr.mxu0 0.0
        %2972 = vmatpush1.msra.mxu0 0.0
        %2973 = vmatprep.subr.mxu0 0.0
        %2974 = vmatpush1.msra.mxu0 0.0
        %2975 = vmatprep.subr.mxu0 0.0
        %2976 = vmatpush1.msra.mxu0 0.0
        %2977 = vmatprep.subr.mxu0 0.0
        %2978 = vmatpush1.msra.mxu0 0.0
        %2979 = vmatprep.subr.mxu0 0.0
        %2980 = vmatpush1.msra.mxu0 0.0
        %2981 = vmatprep.mubr.f32.mxu0 0.0
        %2982 = vmatmul.mubr.f32.gmra.mrb[0].mxu0 %v1618
        %v2983 = vpop.f32.mrb[0].mxu0
        %v2984 = vadd.f32 0.0, %v2983
        %v2985 = vpop.f32.mrb[0].mxu0
        %2986 = vmatprep.mubr.f32.mxu0 0.0
        %2987 = vmatmul.mubr.f32.gmra.mrb[0].mxu0 %v1621
        %v2988 = vpop.f32.mrb[0].mxu0
        %v2989 = vadd.f32 0.0, %v2988
        %v2990 = vpop.f32.mrb[0].mxu0
        %2991 = vdwg.mxu0
        %s2992 = scalar_lea.vmem %s10, 192
        %v2993 = vld [vmem:[%s2992] sm:$0xff]
        %v2994 = vld [vmem:[%s2992 + $0x8] sm:$0xff]
        %v2995 = vld [vmem:[%s2992 + $0x10] sm:$0xff]
        %v2996 = vld [vmem:[%s2992 + $0x18] sm:$0xff]
        %2997 = vmatprep.subr.mxu0 0.0
        %2998 = vmatpush1.msra.mxu0 %v2993
        %2999 = vmatprep.subr.mxu0 0.0
        %3000 = vmatpush1.msra.mxu0 %v2994
        %3001 = vmatprep.subr.mxu0 0.0
        %3002 = vmatpush1.msra.mxu0 %v2995
        %3003 = vmatprep.subr.mxu0 0.0
        %3004 = vmatpush1.msra.mxu0 %v2996
        %3005 = vmatprep.subr.mxu0 0.0
        %3006 = vmatpush1.msra.mxu0 0.0
        %3007 = vmatprep.subr.mxu0 0.0
        %3008 = vmatpush1.msra.mxu0 0.0
        %3009 = vmatprep.subr.mxu0 0.0
        %3010 = vmatpush1.msra.mxu0 0.0
        %3011 = vmatprep.subr.mxu0 0.0
        %3012 = vmatpush1.msra.mxu0 0.0
        %3013 = vmatprep.subr.mxu0 0.0
        %3014 = vmatpush1.msra.mxu0 0.0
        %3015 = vmatprep.subr.mxu0 0.0
        %3016 = vmatpush1.msra.mxu0 0.0
        %3017 = vmatprep.subr.mxu0 0.0
        %3018 = vmatpush1.msra.mxu0 0.0
        %3019 = vmatprep.subr.mxu0 0.0
        %3020 = vmatpush1.msra.mxu0 0.0
        %3021 = vmatprep.subr.mxu0 0.0
        %3022 = vmatpush1.msra.mxu0 0.0
        %3023 = vmatprep.subr.mxu0 0.0
        %3024 = vmatpush1.msra.mxu0 0.0
        %3025 = vmatprep.subr.mxu0 0.0
        %3026 = vmatpush1.msra.mxu0 0.0
        %3027 = vmatprep.subr.mxu0 0.0
        %3028 = vmatpush1.msra.mxu0 0.0
        %3029 = vmatprep.subr.mxu0 0.0
        %3030 = vmatpush1.msra.mxu0 0.0
        %3031 = vmatprep.subr.mxu0 0.0
        %3032 = vmatpush1.msra.mxu0 0.0
        %3033 = vmatprep.subr.mxu0 0.0
        %3034 = vmatpush1.msra.mxu0 0.0
        %3035 = vmatprep.subr.mxu0 0.0
        %3036 = vmatpush1.msra.mxu0 0.0
        %3037 = vmatprep.subr.mxu0 0.0
        %3038 = vmatpush1.msra.mxu0 0.0
        %3039 = vmatprep.subr.mxu0 0.0
        %3040 = vmatpush1.msra.mxu0 0.0
        %3041 = vmatprep.subr.mxu0 0.0
        %3042 = vmatpush1.msra.mxu0 0.0
        %3043 = vmatprep.subr.mxu0 0.0
        %3044 = vmatpush1.msra.mxu0 0.0
        %3045 = vmatprep.subr.mxu0 0.0
        %3046 = vmatpush1.msra.mxu0 0.0
        %3047 = vmatprep.subr.mxu0 0.0
        %3048 = vmatpush1.msra.mxu0 0.0
        %3049 = vmatprep.subr.mxu0 0.0
        %3050 = vmatpush1.msra.mxu0 0.0
        %3051 = vmatprep.subr.mxu0 0.0
        %3052 = vmatpush1.msra.mxu0 0.0
        %3053 = vmatprep.subr.mxu0 0.0
        %3054 = vmatpush1.msra.mxu0 0.0
        %3055 = vmatprep.subr.mxu0 0.0
        %3056 = vmatpush1.msra.mxu0 0.0
        %3057 = vmatprep.subr.mxu0 0.0
        %3058 = vmatpush1.msra.mxu0 0.0
        %3059 = vmatprep.subr.mxu0 0.0
        %3060 = vmatpush1.msra.mxu0 0.0
        %3061 = vmatprep.mubr.f32.mxu0 0.0
        %3062 = vmatmul.mubr.f32.gmra.mrb[0].mxu0 %v1618
        %v3063 = vpop.f32.mrb[0].mxu0
        %v3064 = vadd.f32 0.0, %v3063
        %v3065 = vpop.f32.mrb[0].mxu0
        %3066 = vmatprep.mubr.f32.mxu0 0.0
        %3067 = vmatmul.mubr.f32.gmra.mrb[0].mxu0 %v1621
        %v3068 = vpop.f32.mrb[0].mxu0
        %v3069 = vadd.f32 0.0, %v3068
        %v3070 = vpop.f32.mrb[0].mxu0
        %3071 = vdwg.mxu0
        %s3072 = scalar_lea.vmem %s10, 320
        %v3073 = vld [vmem:[%s3072] sm:$0xff]
        %v3074 = vld [vmem:[%s3072 + $0x8] sm:$0xff]
        %v3075 = vld [vmem:[%s3072 + $0x10] sm:$0xff]
        %v3076 = vld [vmem:[%s3072 + $0x18] sm:$0xff]
        %3077 = vmatprep.subr.mxu0 0.0
        %3078 = vmatpush1.msra.mxu0 %v3073
        %3079 = vmatprep.subr.mxu0 0.0
        %3080 = vmatpush1.msra.mxu0 %v3074
        %3081 = vmatprep.subr.mxu0 0.0
        %3082 = vmatpush1.msra.mxu0 %v3075
        %3083 = vmatprep.subr.mxu0 0.0
        %3084 = vmatpush1.msra.mxu0 %v3076
        %3085 = vmatprep.subr.mxu0 0.0
        %3086 = vmatpush1.msra.mxu0 0.0
        %3087 = vmatprep.subr.mxu0 0.0
        %3088 = vmatpush1.msra.mxu0 0.0
        %3089 = vmatprep.subr.mxu0 0.0
        %3090 = vmatpush1.msra.mxu0 0.0
        %3091 = vmatprep.subr.mxu0 0.0
        %3092 = vmatpush1.msra.mxu0 0.0
        %3093 = vmatprep.subr.mxu0 0.0
        %3094 = vmatpush1.msra.mxu0 0.0
        %3095 = vmatprep.subr.mxu0 0.0
        %3096 = vmatpush1.msra.mxu0 0.0
        %3097 = vmatprep.subr.mxu0 0.0
        %3098 = vmatpush1.msra.mxu0 0.0
        %3099 = vmatprep.subr.mxu0 0.0
        %3100 = vmatpush1.msra.mxu0 0.0
        %3101 = vmatprep.subr.mxu0 0.0
        %3102 = vmatpush1.msra.mxu0 0.0
        %3103 = vmatprep.subr.mxu0 0.0
        %3104 = vmatpush1.msra.mxu0 0.0
        %3105 = vmatprep.subr.mxu0 0.0
        %3106 = vmatpush1.msra.mxu0 0.0
        %3107 = vmatprep.subr.mxu0 0.0
        %3108 = vmatpush1.msra.mxu0 0.0
        %3109 = vmatprep.subr.mxu0 0.0
        %3110 = vmatpush1.msra.mxu0 0.0
        %3111 = vmatprep.subr.mxu0 0.0
        %3112 = vmatpush1.msra.mxu0 0.0
        %3113 = vmatprep.subr.mxu0 0.0
        %3114 = vmatpush1.msra.mxu0 0.0
        %3115 = vmatprep.subr.mxu0 0.0
        %3116 = vmatpush1.msra.mxu0 0.0
        %3117 = vmatprep.subr.mxu0 0.0
        %3118 = vmatpush1.msra.mxu0 0.0
        %3119 = vmatprep.subr.mxu0 0.0
        %3120 = vmatpush1.msra.mxu0 0.0
        %3121 = vmatprep.subr.mxu0 0.0
        %3122 = vmatpush1.msra.mxu0 0.0
        %3123 = vmatprep.subr.mxu0 0.0
        %3124 = vmatpush1.msra.mxu0 0.0
        %3125 = vmatprep.subr.mxu0 0.0
        %3126 = vmatpush1.msra.mxu0 0.0
        %3127 = vmatprep.subr.mxu0 0.0
        %3128 = vmatpush1.msra.mxu0 0.0
        %3129 = vmatprep.subr.mxu0 0.0
        %3130 = vmatpush1.msra.mxu0 0.0
        %3131 = vmatprep.subr.mxu0 0.0
        %3132 = vmatpush1.msra.mxu0 0.0
        %3133 = vmatprep.subr.mxu0 0.0
        %3134 = vmatpush1.msra.mxu0 0.0
        %3135 = vmatprep.subr.mxu0 0.0
        %3136 = vmatpush1.msra.mxu0 0.0
        %3137 = vmatprep.subr.mxu0 0.0
        %3138 = vmatpush1.msra.mxu0 0.0
        %3139 = vmatprep.subr.mxu0 0.0
        %3140 = vmatpush1.msra.mxu0 0.0
        %3141 = vmatprep.mubr.f32.mxu0 0.0
        %3142 = vmatmul.mubr.f32.gmra.mrb[0].mxu0 %v1618
        %v3143 = vpop.f32.mrb[0].mxu0
        %v3144 = vadd.f32 0.0, %v3143
        %v3145 = vpop.f32.mrb[0].mxu0
        %3146 = vmatprep.mubr.f32.mxu0 0.0
        %3147 = vmatmul.mubr.f32.gmra.mrb[0].mxu0 %v1621
        %v3148 = vpop.f32.mrb[0].mxu0
        %v3149 = vadd.f32 0.0, %v3148
        %v3150 = vpop.f32.mrb[0].mxu0
        %3151 = vdwg.mxu0
        %v3153 = vsel %vm1858, %v2984, 0
        %v3156 = vsel %vm1858, %v3064, 0
        %3158 = vmatprep.subr.mxu0 0.0
        %3159 = vmatpush1.xpose.msra.mxu0 %v3156
        %3160 = vmatprep.subr.mxu0 0.0
        %3161 = vmatpush1.xpose.msra.mxu0 0.0
        %3162 = vmatprep.subr.mxu0 0.0
        %3163 = vmatpush1.xpose.msra.mxu0 0.0
        %3164 = vmatprep.subr.mxu0 0.0
        %3165 = vmatpush1.xpose.msra.mxu0 0.0
        %3166 = vmatprep.subr.mxu0 0.0
        %3167 = vmatpush1.xpose.msra.mxu0 0.0
        %3168 = vmatprep.subr.mxu0 0.0
        %3169 = vmatpush1.xpose.msra.mxu0 0.0
        %3170 = vmatprep.subr.mxu0 0.0
        %3171 = vmatpush1.xpose.msra.mxu0 0.0
        %3172 = vmatprep.subr.mxu0 0.0
        %3173 = vmatpush1.xpose.msra.mxu0 0.0
        %3174 = vmatprep.subr.mxu0 0.0
        %3175 = vmatpush1.xpose.msra.mxu0 0.0
        %3176 = vmatprep.subr.mxu0 0.0
        %3177 = vmatpush1.xpose.msra.mxu0 0.0
        %3178 = vmatprep.subr.mxu0 0.0
        %3179 = vmatpush1.xpose.msra.mxu0 0.0
        %3180 = vmatprep.subr.mxu0 0.0
        %3181 = vmatpush1.xpose.msra.mxu0 0.0
        %3182 = vmatprep.subr.mxu0 0.0
        %3183 = vmatpush1.xpose.msra.mxu0 0.0
        %3184 = vmatprep.subr.mxu0 0.0
        %3185 = vmatpush1.xpose.msra.mxu0 0.0
        %3186 = vmatprep.subr.mxu0 0.0
        %3187 = vmatpush1.xpose.msra.mxu0 0.0
        %3188 = vmatprep.subr.mxu0 0.0
        %3189 = vmatpush1.xpose.msra.mxu0 0.0
        %3190 = vmatprep.subr.mxu0 0.0
        %3191 = vmatpush1.xpose.msra.mxu0 0.0
        %3192 = vmatprep.subr.mxu0 0.0
        %3193 = vmatpush1.xpose.msra.mxu0 0.0
        %3194 = vmatprep.subr.mxu0 0.0
        %3195 = vmatpush1.xpose.msra.mxu0 0.0
        %3196 = vmatprep.subr.mxu0 0.0
        %3197 = vmatpush1.xpose.msra.mxu0 0.0
        %3198 = vmatprep.subr.mxu0 0.0
        %3199 = vmatpush1.xpose.msra.mxu0 0.0
        %3200 = vmatprep.subr.mxu0 0.0
        %3201 = vmatpush1.xpose.msra.mxu0 0.0
        %3202 = vmatprep.subr.mxu0 0.0
        %3203 = vmatpush1.xpose.msra.mxu0 0.0
        %3204 = vmatprep.subr.mxu0 0.0
        %3205 = vmatpush1.xpose.msra.mxu0 0.0
        %3206 = vmatprep.subr.mxu0 0.0
        %3207 = vmatpush1.xpose.msra.mxu0 0.0
        %3208 = vmatprep.subr.mxu0 0.0
        %3209 = vmatpush1.xpose.msra.mxu0 0.0
        %3210 = vmatprep.subr.mxu0 0.0
        %3211 = vmatpush1.xpose.msra.mxu0 0.0
        %3212 = vmatprep.subr.mxu0 0.0
        %3213 = vmatpush1.xpose.msra.mxu0 0.0
        %3214 = vmatprep.subr.mxu0 0.0
        %3215 = vmatpush1.xpose.msra.mxu0 0.0
        %3216 = vmatprep.subr.mxu0 0.0
        %3217 = vmatpush1.xpose.msra.mxu0 0.0
        %3218 = vmatprep.subr.mxu0 0.0
        %3219 = vmatpush1.xpose.msra.mxu0 0.0
        %3220 = vmatprep.subr.mxu0 0.0
        %3221 = vmatpush1.xpose.msra.mxu0 0.0
        %3222 = vmatprep.mubr.f32.mxu0 0.0
        %3223 = vmatmul.mubr.f32.gmra.mrb[0].mxu0 %v3153
        %v3224 = vpop.f32.mrb[0].mxu0
        %v3225 = vadd.f32 0.0, %v3224
        %v3226 = vpop.f32.mrb[0].mxu0
        %3227 = vdwg.mxu0
        %v3229 = vsel %vm1858, %v2989, 0
        %v3232 = vsel %vm1858, %v3069, 0
        %3234 = vmatprep.subr.mxu0 0.0
        %3235 = vmatpush1.xpose.msra.mxu0 %v3232
        %3236 = vmatprep.subr.mxu0 0.0
        %3237 = vmatpush1.xpose.msra.mxu0 0.0
        %3238 = vmatprep.subr.mxu0 0.0
        %3239 = vmatpush1.xpose.msra.mxu0 0.0
        %3240 = vmatprep.subr.mxu0 0.0
        %3241 = vmatpush1.xpose.msra.mxu0 0.0
        %3242 = vmatprep.subr.mxu0 0.0
        %3243 = vmatpush1.xpose.msra.mxu0 0.0
        %3244 = vmatprep.subr.mxu0 0.0
        %3245 = vmatpush1.xpose.msra.mxu0 0.0
        %3246 = vmatprep.subr.mxu0 0.0
        %3247 = vmatpush1.xpose.msra.mxu0 0.0
        %3248 = vmatprep.subr.mxu0 0.0
        %3249 = vmatpush1.xpose.msra.mxu0 0.0
        %3250 = vmatprep.subr.mxu0 0.0
        %3251 = vmatpush1.xpose.msra.mxu0 0.0
        %3252 = vmatprep.subr.mxu0 0.0
        %3253 = vmatpush1.xpose.msra.mxu0 0.0
        %3254 = vmatprep.subr.mxu0 0.0
        %3255 = vmatpush1.xpose.msra.mxu0 0.0
        %3256 = vmatprep.subr.mxu0 0.0
        %3257 = vmatpush1.xpose.msra.mxu0 0.0
        %3258 = vmatprep.subr.mxu0 0.0
        %3259 = vmatpush1.xpose.msra.mxu0 0.0
        %3260 = vmatprep.subr.mxu0 0.0
        %3261 = vmatpush1.xpose.msra.mxu0 0.0
        %3262 = vmatprep.subr.mxu0 0.0
        %3263 = vmatpush1.xpose.msra.mxu0 0.0
        %3264 = vmatprep.subr.mxu0 0.0
        %3265 = vmatpush1.xpose.msra.mxu0 0.0
        %3266 = vmatprep.subr.mxu0 0.0
        %3267 = vmatpush1.xpose.msra.mxu0 0.0
        %3268 = vmatprep.subr.mxu0 0.0
        %3269 = vmatpush1.xpose.msra.mxu0 0.0
        %3270 = vmatprep.subr.mxu0 0.0
        %3271 = vmatpush1.xpose.msra.mxu0 0.0
        %3272 = vmatprep.subr.mxu0 0.0
        %3273 = vmatpush1.xpose.msra.mxu0 0.0
        %3274 = vmatprep.subr.mxu0 0.0
        %3275 = vmatpush1.xpose.msra.mxu0 0.0
        %3276 = vmatprep.subr.mxu0 0.0
        %3277 = vmatpush1.xpose.msra.mxu0 0.0
        %3278 = vmatprep.subr.mxu0 0.0
        %3279 = vmatpush1.xpose.msra.mxu0 0.0
        %3280 = vmatprep.subr.mxu0 0.0
        %3281 = vmatpush1.xpose.msra.mxu0 0.0
        %3282 = vmatprep.subr.mxu0 0.0
        %3283 = vmatpush1.xpose.msra.mxu0 0.0
        %3284 = vmatprep.subr.mxu0 0.0
        %3285 = vmatpush1.xpose.msra.mxu0 0.0
        %3286 = vmatprep.subr.mxu0 0.0
        %3287 = vmatpush1.xpose.msra.mxu0 0.0
        %3288 = vmatprep.subr.mxu0 0.0
        %3289 = vmatpush1.xpose.msra.mxu0 0.0
        %3290 = vmatprep.subr.mxu0 0.0
        %3291 = vmatpush1.xpose.msra.mxu0 0.0
        %3292 = vmatprep.subr.mxu0 0.0
        %3293 = vmatpush1.xpose.msra.mxu0 0.0
        %3294 = vmatprep.subr.mxu0 0.0
        %3295 = vmatpush1.xpose.msra.mxu0 0.0
        %3296 = vmatprep.subr.mxu0 0.0
        %3297 = vmatpush1.xpose.msra.mxu0 0.0
        %3298 = vmatprep.mubr.f32.mxu0 0.0
        %3299 = vmatmul.mubr.f32.gmra.mrb[0].mxu0 %v3229
        %v3300 = vpop.f32.mrb[0].mxu0
        %v3301 = vadd.f32 0.0, %v3300
        %v3302 = vpop.f32.mrb[0].mxu0
        %3303 = vdwg.mxu0
        %v3304 = vmul.f32 %v3225, 0.35355338
        %v3305 = vmul.f32 %v3301, 0.35355338
        %v3306 = vsel %vm1858, %v3304, -inf
        %3307 = vmax.xlane.f32.xlu0 %v3306
        %v3308 = vpop.xlane.xlu0 %3307
        %v3309 = vsel %vm1858, %v3305, -inf
        %3310 = vmax.xlane.f32.xlu0 %v3309
        %v3311 = vpop.xlane.xlu0 %3310
        %v3312 = vsub.f32 %v3304, %v3308
        %v3313 = vsub.f32 %v3305, %v3311
        %v3314 = vmul.f32 %v3312, 1.442695
        %v3315 = vpow.pop %v3314
        %v3316 = vmul.f32 %v3313, 1.442695
        %v3317 = vpow.pop %v3316
        %v3318 = vsel %vm1858, %v3315, 0.0
        %3319 = vadd.xlane.f32.xlu0 %v3318
        %v3320 = vpop.xlane.xlu0 %3319
        %v3321 = vsel %vm1858, %v3317, 0.0
        %3322 = vadd.xlane.f32.xlu0 %v3321
        %v3323 = vpop.xlane.xlu0 %3322
        %v3324 = vrcp.pop %v3320
        %v3325 = vmul.f32 %v3315, %v3324
        %v3326 = vrcp.pop %v3323
        %v3327 = vmul.f32 %v3317, %v3326
        %v3329 = vsel %vm1858, %v3325, 0
        %3331 = vmatprep.subr.mxu0 0.0
        %3332 = vmatpush1.msra.mxu0 %v3144
        %3333 = vmatprep.subr.mxu0 0.0
        %3334 = vmatpush1.msra.mxu0 0.0
        %3335 = vmatprep.subr.mxu0 0.0
        %3336 = vmatpush1.msra.mxu0 0.0
        %3337 = vmatprep.subr.mxu0 0.0
        %3338 = vmatpush1.msra.mxu0 0.0
        %3339 = vmatprep.subr.mxu0 0.0
        %3340 = vmatpush1.msra.mxu0 0.0
        %3341 = vmatprep.subr.mxu0 0.0
        %3342 = vmatpush1.msra.mxu0 0.0
        %3343 = vmatprep.subr.mxu0 0.0
        %3344 = vmatpush1.msra.mxu0 0.0
        %3345 = vmatprep.subr.mxu0 0.0
        %3346 = vmatpush1.msra.mxu0 0.0
        %3347 = vmatprep.subr.mxu0 0.0
        %3348 = vmatpush1.msra.mxu0 0.0
        %3349 = vmatprep.subr.mxu0 0.0
        %3350 = vmatpush1.msra.mxu0 0.0
        %3351 = vmatprep.subr.mxu0 0.0
        %3352 = vmatpush1.msra.mxu0 0.0
        %3353 = vmatprep.subr.mxu0 0.0
        %3354 = vmatpush1.msra.mxu0 0.0
        %3355 = vmatprep.subr.mxu0 0.0
        %3356 = vmatpush1.msra.mxu0 0.0
        %3357 = vmatprep.subr.mxu0 0.0
        %3358 = vmatpush1.msra.mxu0 0.0
        %3359 = vmatprep.subr.mxu0 0.0
        %3360 = vmatpush1.msra.mxu0 0.0
        %3361 = vmatprep.subr.mxu0 0.0
        %3362 = vmatpush1.msra.mxu0 0.0
        %3363 = vmatprep.subr.mxu0 0.0
        %3364 = vmatpush1.msra.mxu0 0.0
        %3365 = vmatprep.subr.mxu0 0.0
        %3366 = vmatpush1.msra.mxu0 0.0
        %3367 = vmatprep.subr.mxu0 0.0
        %3368 = vmatpush1.msra.mxu0 0.0
        %3369 = vmatprep.subr.mxu0 0.0
        %3370 = vmatpush1.msra.mxu0 0.0
        %3371 = vmatprep.subr.mxu0 0.0
        %3372 = vmatpush1.msra.mxu0 0.0
        %3373 = vmatprep.subr.mxu0 0.0
        %3374 = vmatpush1.msra.mxu0 0.0
        %3375 = vmatprep.subr.mxu0 0.0
        %3376 = vmatpush1.msra.mxu0 0.0
        %3377 = vmatprep.subr.mxu0 0.0
        %3378 = vmatpush1.msra.mxu0 0.0
        %3379 = vmatprep.subr.mxu0 0.0
        %3380 = vmatpush1.msra.mxu0 0.0
        %3381 = vmatprep.subr.mxu0 0.0
        %3382 = vmatpush1.msra.mxu0 0.0
        %3383 = vmatprep.subr.mxu0 0.0
        %3384 = vmatpush1.msra.mxu0 0.0
        %3385 = vmatprep.subr.mxu0 0.0
        %3386 = vmatpush1.msra.mxu0 0.0
        %3387 = vmatprep.subr.mxu0 0.0
        %3388 = vmatpush1.msra.mxu0 0.0
        %3389 = vmatprep.subr.mxu0 0.0
        %3390 = vmatpush1.msra.mxu0 0.0
        %3391 = vmatprep.subr.mxu0 0.0
        %3392 = vmatpush1.msra.mxu0 0.0
        %3393 = vmatprep.subr.mxu0 0.0
        %3394 = vmatpush1.msra.mxu0 0.0
        %3395 = vmatprep.mubr.f32.mxu0 0.0
        %3396 = vmatmul.mubr.f32.gmra.mrb[0].mxu0 %v3329
        %v3397 = vpop.f32.mrb[0].mxu0
        %v3398 = vadd.f32 0.0, %v3397
        %v3399 = vpop.f32.mrb[0].mxu0
        %3400 = vdwg.mxu0
        %v3402 = vsel %vm1858, %v3327, 0
        %3404 = vmatprep.subr.mxu0 0.0
        %3405 = vmatpush1.msra.mxu0 %v3149
        %3406 = vmatprep.subr.mxu0 0.0
        %3407 = vmatpush1.msra.mxu0 0.0
        %3408 = vmatprep.subr.mxu0 0.0
        %3409 = vmatpush1.msra.mxu0 0.0
        %3410 = vmatprep.subr.mxu0 0.0
        %3411 = vmatpush1.msra.mxu0 0.0
        %3412 = vmatprep.subr.mxu0 0.0
        %3413 = vmatpush1.msra.mxu0 0.0
        %3414 = vmatprep.subr.mxu0 0.0
        %3415 = vmatpush1.msra.mxu0 0.0
        %3416 = vmatprep.subr.mxu0 0.0
        %3417 = vmatpush1.msra.mxu0 0.0
        %3418 = vmatprep.subr.mxu0 0.0
        %3419 = vmatpush1.msra.mxu0 0.0
        %3420 = vmatprep.subr.mxu0 0.0
        %3421 = vmatpush1.msra.mxu0 0.0
        %3422 = vmatprep.subr.mxu0 0.0
        %3423 = vmatpush1.msra.mxu0 0.0
        %3424 = vmatprep.subr.mxu0 0.0
        %3425 = vmatpush1.msra.mxu0 0.0
        %3426 = vmatprep.subr.mxu0 0.0
        %3427 = vmatpush1.msra.mxu0 0.0
        %3428 = vmatprep.subr.mxu0 0.0
        %3429 = vmatpush1.msra.mxu0 0.0
        %3430 = vmatprep.subr.mxu0 0.0
        %3431 = vmatpush1.msra.mxu0 0.0
        %3432 = vmatprep.subr.mxu0 0.0
        %3433 = vmatpush1.msra.mxu0 0.0
        %3434 = vmatprep.subr.mxu0 0.0
        %3435 = vmatpush1.msra.mxu0 0.0
        %3436 = vmatprep.subr.mxu0 0.0
        %3437 = vmatpush1.msra.mxu0 0.0
        %3438 = vmatprep.subr.mxu0 0.0
        %3439 = vmatpush1.msra.mxu0 0.0
        %3440 = vmatprep.subr.mxu0 0.0
        %3441 = vmatpush1.msra.mxu0 0.0
        %3442 = vmatprep.subr.mxu0 0.0
        %3443 = vmatpush1.msra.mxu0 0.0
        %3444 = vmatprep.subr.mxu0 0.0
        %3445 = vmatpush1.msra.mxu0 0.0
        %3446 = vmatprep.subr.mxu0 0.0
        %3447 = vmatpush1.msra.mxu0 0.0
        %3448 = vmatprep.subr.mxu0 0.0
        %3449 = vmatpush1.msra.mxu0 0.0
        %3450 = vmatprep.subr.mxu0 0.0
        %3451 = vmatpush1.msra.mxu0 0.0
        %3452 = vmatprep.subr.mxu0 0.0
        %3453 = vmatpush1.msra.mxu0 0.0
        %3454 = vmatprep.subr.mxu0 0.0
        %3455 = vmatpush1.msra.mxu0 0.0
        %3456 = vmatprep.subr.mxu0 0.0
        %3457 = vmatpush1.msra.mxu0 0.0
        %3458 = vmatprep.subr.mxu0 0.0
        %3459 = vmatpush1.msra.mxu0 0.0
        %3460 = vmatprep.subr.mxu0 0.0
        %3461 = vmatpush1.msra.mxu0 0.0
        %3462 = vmatprep.subr.mxu0 0.0
        %3463 = vmatpush1.msra.mxu0 0.0
        %3464 = vmatprep.subr.mxu0 0.0
        %3465 = vmatpush1.msra.mxu0 0.0
        %3466 = vmatprep.subr.mxu0 0.0
        %3467 = vmatpush1.msra.mxu0 0.0
        %3468 = vmatprep.mubr.f32.mxu0 0.0
        %3469 = vmatmul.mubr.f32.gmra.mrb[0].mxu0 %v3402
        %v3470 = vpop.f32.mrb[0].mxu0
        %v3471 = vadd.f32 0.0, %v3470
        %v3472 = vpop.f32.mrb[0].mxu0
        %3473 = vdwg.mxu0
        %s3474 = scalar_lea.vmem %s11, 16
        %v3475 = vld [vmem:[%s3474] sm:$0xff]
        %v3477 = vsel %vm1858, %v3398, 0
        %v3480 = vsel %vm1858, %v3471, 0
        %3482 = vmatprep.subr.mxu0 0.0
        %3483 = vmatpush1.msra.mxu0 %v3475
        %3484 = vmatprep.subr.mxu0 0.0
        %3485 = vmatpush1.msra.mxu0 0.0
        %3486 = vmatprep.subr.mxu0 0.0
        %3487 = vmatpush1.msra.mxu0 0.0
        %3488 = vmatprep.subr.mxu0 0.0
        %3489 = vmatpush1.msra.mxu0 0.0
        %3490 = vmatprep.subr.mxu0 0.0
        %3491 = vmatpush1.msra.mxu0 0.0
        %3492 = vmatprep.subr.mxu0 0.0
        %3493 = vmatpush1.msra.mxu0 0.0
        %3494 = vmatprep.subr.mxu0 0.0
        %3495 = vmatpush1.msra.mxu0 0.0
        %3496 = vmatprep.subr.mxu0 0.0
        %3497 = vmatpush1.msra.mxu0 0.0
        %3498 = vmatprep.subr.mxu0 0.0
        %3499 = vmatpush1.msra.mxu0 0.0
        %3500 = vmatprep.subr.mxu0 0.0
        %3501 = vmatpush1.msra.mxu0 0.0
        %3502 = vmatprep.subr.mxu0 0.0
        %3503 = vmatpush1.msra.mxu0 0.0
        %3504 = vmatprep.subr.mxu0 0.0
        %3505 = vmatpush1.msra.mxu0 0.0
        %3506 = vmatprep.subr.mxu0 0.0
        %3507 = vmatpush1.msra.mxu0 0.0
        %3508 = vmatprep.subr.mxu0 0.0
        %3509 = vmatpush1.msra.mxu0 0.0
        %3510 = vmatprep.subr.mxu0 0.0
        %3511 = vmatpush1.msra.mxu0 0.0
        %3512 = vmatprep.subr.mxu0 0.0
        %3513 = vmatpush1.msra.mxu0 0.0
        %3514 = vmatprep.subr.mxu0 0.0
        %3515 = vmatpush1.msra.mxu0 0.0
        %3516 = vmatprep.subr.mxu0 0.0
        %3517 = vmatpush1.msra.mxu0 0.0
        %3518 = vmatprep.subr.mxu0 0.0
        %3519 = vmatpush1.msra.mxu0 0.0
        %3520 = vmatprep.subr.mxu0 0.0
        %3521 = vmatpush1.msra.mxu0 0.0
        %3522 = vmatprep.subr.mxu0 0.0
        %3523 = vmatpush1.msra.mxu0 0.0
        %3524 = vmatprep.subr.mxu0 0.0
        %3525 = vmatpush1.msra.mxu0 0.0
        %3526 = vmatprep.subr.mxu0 0.0
        %3527 = vmatpush1.msra.mxu0 0.0
        %3528 = vmatprep.subr.mxu0 0.0
        %3529 = vmatpush1.msra.mxu0 0.0
        %3530 = vmatprep.subr.mxu0 0.0
        %3531 = vmatpush1.msra.mxu0 0.0
        %3532 = vmatprep.subr.mxu0 0.0
        %3533 = vmatpush1.msra.mxu0 0.0
        %3534 = vmatprep.subr.mxu0 0.0
        %3535 = vmatpush1.msra.mxu0 0.0
        %3536 = vmatprep.subr.mxu0 0.0
        %3537 = vmatpush1.msra.mxu0 0.0
        %3538 = vmatprep.subr.mxu0 0.0
        %3539 = vmatpush1.msra.mxu0 0.0
        %3540 = vmatprep.subr.mxu0 0.0
        %3541 = vmatpush1.msra.mxu0 0.0
        %3542 = vmatprep.subr.mxu0 0.0
        %3543 = vmatpush1.msra.mxu0 0.0
        %3544 = vmatprep.subr.mxu0 0.0
        %3545 = vmatpush1.msra.mxu0 0.0
        %3546 = vmatprep.mubr.f32.mxu0 0.0
        %3547 = vmatmul.mubr.f32.gmra.mrb[0].mxu0 %v3477
        %v3548 = vpop.f32.mrb[0].mxu0
        %v3549 = vadd.f32 0.0, %v3548
        %v3550 = vpop.f32.mrb[0].mxu0
        %3551 = vmatprep.mubr.f32.mxu0 0.0
        %3552 = vmatmul.mubr.f32.gmra.mrb[0].mxu0 %v3480
        %v3553 = vpop.f32.mrb[0].mxu0
        %v3554 = vadd.f32 0.0, %v3553
        %v3555 = vpop.f32.mrb[0].mxu0
        %3556 = vdwg.mxu0
        %v3557 = vadd.f32 %v2910, %v3549
        %v3558 = vadd.f32 %v2911, %v3554
        %s3559 = scalar_lea.vmem %s10, 96
        %v3560 = vld [vmem:[%s3559] sm:$0xff]
        %v3561 = vld [vmem:[%s3559 + $0x8] sm:$0xff]
        %v3562 = vld [vmem:[%s3559 + $0x10] sm:$0xff]
        %v3563 = vld [vmem:[%s3559 + $0x18] sm:$0xff]
        %3564 = vmatprep.subr.mxu0 0.0
        %3565 = vmatpush1.msra.mxu0 %v3560
        %3566 = vmatprep.subr.mxu0 0.0
        %3567 = vmatpush1.msra.mxu0 %v3561
        %3568 = vmatprep.subr.mxu0 0.0
        %3569 = vmatpush1.msra.mxu0 %v3562
        %3570 = vmatprep.subr.mxu0 0.0
        %3571 = vmatpush1.msra.mxu0 %v3563
        %3572 = vmatprep.subr.mxu0 0.0
        %3573 = vmatpush1.msra.mxu0 0.0
        %3574 = vmatprep.subr.mxu0 0.0
        %3575 = vmatpush1.msra.mxu0 0.0
        %3576 = vmatprep.subr.mxu0 0.0
        %3577 = vmatpush1.msra.mxu0 0.0
        %3578 = vmatprep.subr.mxu0 0.0
        %3579 = vmatpush1.msra.mxu0 0.0
        %3580 = vmatprep.subr.mxu0 0.0
        %3581 = vmatpush1.msra.mxu0 0.0
        %3582 = vmatprep.subr.mxu0 0.0
        %3583 = vmatpush1.msra.mxu0 0.0
        %3584 = vmatprep.subr.mxu0 0.0
        %3585 = vmatpush1.msra.mxu0 0.0
        %3586 = vmatprep.subr.mxu0 0.0
        %3587 = vmatpush1.msra.mxu0 0.0
        %3588 = vmatprep.subr.mxu0 0.0
        %3589 = vmatpush1.msra.mxu0 0.0
        %3590 = vmatprep.subr.mxu0 0.0
        %3591 = vmatpush1.msra.mxu0 0.0
        %3592 = vmatprep.subr.mxu0 0.0
        %3593 = vmatpush1.msra.mxu0 0.0
        %3594 = vmatprep.subr.mxu0 0.0
        %3595 = vmatpush1.msra.mxu0 0.0
        %3596 = vmatprep.subr.mxu0 0.0
        %3597 = vmatpush1.msra.mxu0 0.0
        %3598 = vmatprep.subr.mxu0 0.0
        %3599 = vmatpush1.msra.mxu0 0.0
        %3600 = vmatprep.subr.mxu0 0.0
        %3601 = vmatpush1.msra.mxu0 0.0
        %3602 = vmatprep.subr.mxu0 0.0
        %3603 = vmatpush1.msra.mxu0 0.0
        %3604 = vmatprep.subr.mxu0 0.0
        %3605 = vmatpush1.msra.mxu0 0.0
        %3606 = vmatprep.subr.mxu0 0.0
        %3607 = vmatpush1.msra.mxu0 0.0
        %3608 = vmatprep.subr.mxu0 0.0
        %3609 = vmatpush1.msra.mxu0 0.0
        %3610 = vmatprep.subr.mxu0 0.0
        %3611 = vmatpush1.msra.mxu0 0.0
        %3612 = vmatprep.subr.mxu0 0.0
        %3613 = vmatpush1.msra.mxu0 0.0
        %3614 = vmatprep.subr.mxu0 0.0
        %3615 = vmatpush1.msra.mxu0 0.0
        %3616 = vmatprep.subr.mxu0 0.0
        %3617 = vmatpush1.msra.mxu0 0.0
        %3618 = vmatprep.subr.mxu0 0.0
        %3619 = vmatpush1.msra.mxu0 0.0
        %3620 = vmatprep.subr.mxu0 0.0
        %3621 = vmatpush1.msra.mxu0 0.0
        %3622 = vmatprep.subr.mxu0 0.0
        %3623 = vmatpush1.msra.mxu0 0.0
        %3624 = vmatprep.subr.mxu0 0.0
        %3625 = vmatpush1.msra.mxu0 0.0
        %3626 = vmatprep.subr.mxu0 0.0
        %3627 = vmatpush1.msra.mxu0 0.0
        %3628 = vmatprep.mubr.f32.mxu0 0.0
        %3629 = vmatmul.mubr.f32.gmra.mrb[0].mxu0 %v1618
        %v3630 = vpop.f32.mrb[0].mxu0
        %v3631 = vadd.f32 0.0, %v3630
        %v3632 = vpop.f32.mrb[0].mxu0
        %3633 = vmatprep.mubr.f32.mxu0 0.0
        %3634 = vmatmul.mubr.f32.gmra.mrb[0].mxu0 %v1621
        %v3635 = vpop.f32.mrb[0].mxu0
        %v3636 = vadd.f32 0.0, %v3635
        %v3637 = vpop.f32.mrb[0].mxu0
        %3638 = vdwg.mxu0
        %s3639 = scalar_lea.vmem %s10, 224
        %v3640 = vld [vmem:[%s3639] sm:$0xff]
        %v3641 = vld [vmem:[%s3639 + $0x8] sm:$0xff]
        %v3642 = vld [vmem:[%s3639 + $0x10] sm:$0xff]
        %v3643 = vld [vmem:[%s3639 + $0x18] sm:$0xff]
        %3644 = vmatprep.subr.mxu0 0.0
        %3645 = vmatpush1.msra.mxu0 %v3640
        %3646 = vmatprep.subr.mxu0 0.0
        %3647 = vmatpush1.msra.mxu0 %v3641
        %3648 = vmatprep.subr.mxu0 0.0
        %3649 = vmatpush1.msra.mxu0 %v3642
        %3650 = vmatprep.subr.mxu0 0.0
        %3651 = vmatpush1.msra.mxu0 %v3643
        %3652 = vmatprep.subr.mxu0 0.0
        %3653 = vmatpush1.msra.mxu0 0.0
        %3654 = vmatprep.subr.mxu0 0.0
        %3655 = vmatpush1.msra.mxu0 0.0
        %3656 = vmatprep.subr.mxu0 0.0
        %3657 = vmatpush1.msra.mxu0 0.0
        %3658 = vmatprep.subr.mxu0 0.0
        %3659 = vmatpush1.msra.mxu0 0.0
        %3660 = vmatprep.subr.mxu0 0.0
        %3661 = vmatpush1.msra.mxu0 0.0
        %3662 = vmatprep.subr.mxu0 0.0
        %3663 = vmatpush1.msra.mxu0 0.0
        %3664 = vmatprep.subr.mxu0 0.0
        %3665 = vmatpush1.msra.mxu0 0.0
        %3666 = vmatprep.subr.mxu0 0.0
        %3667 = vmatpush1.msra.mxu0 0.0
        %3668 = vmatprep.subr.mxu0 0.0
        %3669 = vmatpush1.msra.mxu0 0.0
        %3670 = vmatprep.subr.mxu0 0.0
        %3671 = vmatpush1.msra.mxu0 0.0
        %3672 = vmatprep.subr.mxu0 0.0
        %3673 = vmatpush1.msra.mxu0 0.0
        %3674 = vmatprep.subr.mxu0 0.0
        %3675 = vmatpush1.msra.mxu0 0.0
        %3676 = vmatprep.subr.mxu0 0.0
        %3677 = vmatpush1.msra.mxu0 0.0
        %3678 = vmatprep.subr.mxu0 0.0
        %3679 = vmatpush1.msra.mxu0 0.0
        %3680 = vmatprep.subr.mxu0 0.0
        %3681 = vmatpush1.msra.mxu0 0.0
        %3682 = vmatprep.subr.mxu0 0.0
        %3683 = vmatpush1.msra.mxu0 0.0
        %3684 = vmatprep.subr.mxu0 0.0
        %3685 = vmatpush1.msra.mxu0 0.0
        %3686 = vmatprep.subr.mxu0 0.0
        %3687 = vmatpush1.msra.mxu0 0.0
        %3688 = vmatprep.subr.mxu0 0.0
        %3689 = vmatpush1.msra.mxu0 0.0
        %3690 = vmatprep.subr.mxu0 0.0
        %3691 = vmatpush1.msra.mxu0 0.0
        %3692 = vmatprep.subr.mxu0 0.0
        %3693 = vmatpush1.msra.mxu0 0.0
        %3694 = vmatprep.subr.mxu0 0.0
        %3695 = vmatpush1.msra.mxu0 0.0
        %3696 = vmatprep.subr.mxu0 0.0
        %3697 = vmatpush1.msra.mxu0 0.0
        %3698 = vmatprep.subr.mxu0 0.0
        %3699 = vmatpush1.msra.mxu0 0.0
        %3700 = vmatprep.subr.mxu0 0.0
        %3701 = vmatpush1.msra.mxu0 0.0
        %3702 = vmatprep.subr.mxu0 0.0
        %3703 = vmatpush1.msra.mxu0 0.0
        %3704 = vmatprep.subr.mxu0 0.0
        %3705 = vmatpush1.msra.mxu0 0.0
        %3706 = vmatprep.subr.mxu0 0.0
        %3707 = vmatpush1.msra.mxu0 0.0
        %3708 = vmatprep.mubr.f32.mxu0 0.0
        %3709 = vmatmul.mubr.f32.gmra.mrb[0].mxu0 %v1618
        %v3710 = vpop.f32.mrb[0].mxu0
        %v3711 = vadd.f32 0.0, %v3710
        %v3712 = vpop.f32.mrb[0].mxu0
        %3713 = vmatprep.mubr.f32.mxu0 0.0
        %3714 = vmatmul.mubr.f32.gmra.mrb[0].mxu0 %v1621
        %v3715 = vpop.f32.mrb[0].mxu0
        %v3716 = vadd.f32 0.0, %v3715
        %v3717 = vpop.f32.mrb[0].mxu0
        %3718 = vdwg.mxu0
        %s3719 = scalar_lea.vmem %s10, 352
        %v3720 = vld [vmem:[%s3719] sm:$0xff]
        %v3721 = vld [vmem:[%s3719 + $0x8] sm:$0xff]
        %v3722 = vld [vmem:[%s3719 + $0x10] sm:$0xff]
        %v3723 = vld [vmem:[%s3719 + $0x18] sm:$0xff]
        %3724 = vmatprep.subr.mxu0 0.0
        %3725 = vmatpush1.msra.mxu0 %v3720
        %3726 = vmatprep.subr.mxu0 0.0
        %3727 = vmatpush1.msra.mxu0 %v3721
        %3728 = vmatprep.subr.mxu0 0.0
        %3729 = vmatpush1.msra.mxu0 %v3722
        %3730 = vmatprep.subr.mxu0 0.0
        %3731 = vmatpush1.msra.mxu0 %v3723
        %3732 = vmatprep.subr.mxu0 0.0
        %3733 = vmatpush1.msra.mxu0 0.0
        %3734 = vmatprep.subr.mxu0 0.0
        %3735 = vmatpush1.msra.mxu0 0.0
        %3736 = vmatprep.subr.mxu0 0.0
        %3737 = vmatpush1.msra.mxu0 0.0
        %3738 = vmatprep.subr.mxu0 0.0
        %3739 = vmatpush1.msra.mxu0 0.0
        %3740 = vmatprep.subr.mxu0 0.0
        %3741 = vmatpush1.msra.mxu0 0.0
        %3742 = vmatprep.subr.mxu0 0.0
        %3743 = vmatpush1.msra.mxu0 0.0
        %3744 = vmatprep.subr.mxu0 0.0
        %3745 = vmatpush1.msra.mxu0 0.0
        %3746 = vmatprep.subr.mxu0 0.0
        %3747 = vmatpush1.msra.mxu0 0.0
        %3748 = vmatprep.subr.mxu0 0.0
        %3749 = vmatpush1.msra.mxu0 0.0
        %3750 = vmatprep.subr.mxu0 0.0
        %3751 = vmatpush1.msra.mxu0 0.0
        %3752 = vmatprep.subr.mxu0 0.0
        %3753 = vmatpush1.msra.mxu0 0.0
        %3754 = vmatprep.subr.mxu0 0.0
        %3755 = vmatpush1.msra.mxu0 0.0
        %3756 = vmatprep.subr.mxu0 0.0
        %3757 = vmatpush1.msra.mxu0 0.0
        %3758 = vmatprep.subr.mxu0 0.0
        %3759 = vmatpush1.msra.mxu0 0.0
        %3760 = vmatprep.subr.mxu0 0.0
        %3761 = vmatpush1.msra.mxu0 0.0
        %3762 = vmatprep.subr.mxu0 0.0
        %3763 = vmatpush1.msra.mxu0 0.0
        %3764 = vmatprep.subr.mxu0 0.0
        %3765 = vmatpush1.msra.mxu0 0.0
        %3766 = vmatprep.subr.mxu0 0.0
        %3767 = vmatpush1.msra.mxu0 0.0
        %3768 = vmatprep.subr.mxu0 0.0
        %3769 = vmatpush1.msra.mxu0 0.0
        %3770 = vmatprep.subr.mxu0 0.0
        %3771 = vmatpush1.msra.mxu0 0.0
        %3772 = vmatprep.subr.mxu0 0.0
        %3773 = vmatpush1.msra.mxu0 0.0
        %3774 = vmatprep.subr.mxu0 0.0
        %3775 = vmatpush1.msra.mxu0 0.0
        %3776 = vmatprep.subr.mxu0 0.0
        %3777 = vmatpush1.msra.mxu0 0.0
        %3778 = vmatprep.subr.mxu0 0.0
        %3779 = vmatpush1.msra.mxu0 0.0
        %3780 = vmatprep.subr.mxu0 0.0
        %3781 = vmatpush1.msra.mxu0 0.0
        %3782 = vmatprep.subr.mxu0 0.0
        %3783 = vmatpush1.msra.mxu0 0.0
        %3784 = vmatprep.subr.mxu0 0.0
        %3785 = vmatpush1.msra.mxu0 0.0
        %3786 = vmatprep.subr.mxu0 0.0
        %3787 = vmatpush1.msra.mxu0 0.0
        %3788 = vmatprep.mubr.f32.mxu0 0.0
        %3789 = vmatmul.mubr.f32.gmra.mrb[0].mxu0 %v1618
        %v3790 = vpop.f32.mrb[0].mxu0
        %v3791 = vadd.f32 0.0, %v3790
        %v3792 = vpop.f32.mrb[0].mxu0
        %3793 = vmatprep.mubr.f32.mxu0 0.0
        %3794 = vmatmul.mubr.f32.gmra.mrb[0].mxu0 %v1621
        %v3795 = vpop.f32.mrb[0].mxu0
        %v3796 = vadd.f32 0.0, %v3795
        %v3797 = vpop.f32.mrb[0].mxu0
        %3798 = vdwg.mxu0
        %v3800 = vsel %vm1858, %v3631, 0
        %v3803 = vsel %vm1858, %v3711, 0
        %3805 = vmatprep.subr.mxu0 0.0
        %3806 = vmatpush1.xpose.msra.mxu0 %v3803
        %3807 = vmatprep.subr.mxu0 0.0
        %3808 = vmatpush1.xpose.msra.mxu0 0.0
        %3809 = vmatprep.subr.mxu0 0.0
        %3810 = vmatpush1.xpose.msra.mxu0 0.0
        %3811 = vmatprep.subr.mxu0 0.0
        %3812 = vmatpush1.xpose.msra.mxu0 0.0
        %3813 = vmatprep.subr.mxu0 0.0
        %3814 = vmatpush1.xpose.msra.mxu0 0.0
        %3815 = vmatprep.subr.mxu0 0.0
        %3816 = vmatpush1.xpose.msra.mxu0 0.0
        %3817 = vmatprep.subr.mxu0 0.0
        %3818 = vmatpush1.xpose.msra.mxu0 0.0
        %3819 = vmatprep.subr.mxu0 0.0
        %3820 = vmatpush1.xpose.msra.mxu0 0.0
        %3821 = vmatprep.subr.mxu0 0.0
        %3822 = vmatpush1.xpose.msra.mxu0 0.0
        %3823 = vmatprep.subr.mxu0 0.0
        %3824 = vmatpush1.xpose.msra.mxu0 0.0
        %3825 = vmatprep.subr.mxu0 0.0
        %3826 = vmatpush1.xpose.msra.mxu0 0.0
        %3827 = vmatprep.subr.mxu0 0.0
        %3828 = vmatpush1.xpose.msra.mxu0 0.0
        %3829 = vmatprep.subr.mxu0 0.0
        %3830 = vmatpush1.xpose.msra.mxu0 0.0
        %3831 = vmatprep.subr.mxu0 0.0
        %3832 = vmatpush1.xpose.msra.mxu0 0.0
        %3833 = vmatprep.subr.mxu0 0.0
        %3834 = vmatpush1.xpose.msra.mxu0 0.0
        %3835 = vmatprep.subr.mxu0 0.0
        %3836 = vmatpush1.xpose.msra.mxu0 0.0
        %3837 = vmatprep.subr.mxu0 0.0
        %3838 = vmatpush1.xpose.msra.mxu0 0.0
        %3839 = vmatprep.subr.mxu0 0.0
        %3840 = vmatpush1.xpose.msra.mxu0 0.0
        %3841 = vmatprep.subr.mxu0 0.0
        %3842 = vmatpush1.xpose.msra.mxu0 0.0
        %3843 = vmatprep.subr.mxu0 0.0
        %3844 = vmatpush1.xpose.msra.mxu0 0.0
        %3845 = vmatprep.subr.mxu0 0.0
        %3846 = vmatpush1.xpose.msra.mxu0 0.0
        %3847 = vmatprep.subr.mxu0 0.0
        %3848 = vmatpush1.xpose.msra.mxu0 0.0
        %3849 = vmatprep.subr.mxu0 0.0
        %3850 = vmatpush1.xpose.msra.mxu0 0.0
        %3851 = vmatprep.subr.mxu0 0.0
        %3852 = vmatpush1.xpose.msra.mxu0 0.0
        %3853 = vmatprep.subr.mxu0 0.0
        %3854 = vmatpush1.xpose.msra.mxu0 0.0
        %3855 = vmatprep.subr.mxu0 0.0
        %3856 = vmatpush1.xpose.msra.mxu0 0.0
        %3857 = vmatprep.subr.mxu0 0.0
        %3858 = vmatpush1.xpose.msra.mxu0 0.0
        %3859 = vmatprep.subr.mxu0 0.0
        %3860 = vmatpush1.xpose.msra.mxu0 0.0
        %3861 = vmatprep.subr.mxu0 0.0
        %3862 = vmatpush1.xpose.msra.mxu0 0.0
        %3863 = vmatprep.subr.mxu0 0.0
        %3864 = vmatpush1.xpose.msra.mxu0 0.0
        %3865 = vmatprep.subr.mxu0 0.0
        %3866 = vmatpush1.xpose.msra.mxu0 0.0
        %3867 = vmatprep.subr.mxu0 0.0
        %3868 = vmatpush1.xpose.msra.mxu0 0.0
        %3869 = vmatprep.mubr.f32.mxu0 0.0
        %3870 = vmatmul.mubr.f32.gmra.mrb[0].mxu0 %v3800
        %v3871 = vpop.f32.mrb[0].mxu0
        %v3872 = vadd.f32 0.0, %v3871
        %v3873 = vpop.f32.mrb[0].mxu0
        %3874 = vdwg.mxu0
        %v3876 = vsel %vm1858, %v3636, 0
        %v3879 = vsel %vm1858, %v3716, 0
        %3881 = vmatprep.subr.mxu0 0.0
        %3882 = vmatpush1.xpose.msra.mxu0 %v3879
        %3883 = vmatprep.subr.mxu0 0.0
        %3884 = vmatpush1.xpose.msra.mxu0 0.0
        %3885 = vmatprep.subr.mxu0 0.0
        %3886 = vmatpush1.xpose.msra.mxu0 0.0
        %3887 = vmatprep.subr.mxu0 0.0
        %3888 = vmatpush1.xpose.msra.mxu0 0.0
        %3889 = vmatprep.subr.mxu0 0.0
        %3890 = vmatpush1.xpose.msra.mxu0 0.0
        %3891 = vmatprep.subr.mxu0 0.0
        %3892 = vmatpush1.xpose.msra.mxu0 0.0
        %3893 = vmatprep.subr.mxu0 0.0
        %3894 = vmatpush1.xpose.msra.mxu0 0.0
        %3895 = vmatprep.subr.mxu0 0.0
        %3896 = vmatpush1.xpose.msra.mxu0 0.0
        %3897 = vmatprep.subr.mxu0 0.0
        %3898 = vmatpush1.xpose.msra.mxu0 0.0
        %3899 = vmatprep.subr.mxu0 0.0
        %3900 = vmatpush1.xpose.msra.mxu0 0.0
        %3901 = vmatprep.subr.mxu0 0.0
        %3902 = vmatpush1.xpose.msra.mxu0 0.0
        %3903 = vmatprep.subr.mxu0 0.0
        %3904 = vmatpush1.xpose.msra.mxu0 0.0
        %3905 = vmatprep.subr.mxu0 0.0
        %3906 = vmatpush1.xpose.msra.mxu0 0.0
        %3907 = vmatprep.subr.mxu0 0.0
        %3908 = vmatpush1.xpose.msra.mxu0 0.0
        %3909 = vmatprep.subr.mxu0 0.0
        %3910 = vmatpush1.xpose.msra.mxu0 0.0
        %3911 = vmatprep.subr.mxu0 0.0
        %3912 = vmatpush1.xpose.msra.mxu0 0.0
        %3913 = vmatprep.subr.mxu0 0.0
        %3914 = vmatpush1.xpose.msra.mxu0 0.0
        %3915 = vmatprep.subr.mxu0 0.0
        %3916 = vmatpush1.xpose.msra.mxu0 0.0
        %3917 = vmatprep.subr.mxu0 0.0
        %3918 = vmatpush1.xpose.msra.mxu0 0.0
        %3919 = vmatprep.subr.mxu0 0.0
        %3920 = vmatpush1.xpose.msra.mxu0 0.0
        %3921 = vmatprep.subr.mxu0 0.0
        %3922 = vmatpush1.xpose.msra.mxu0 0.0
        %3923 = vmatprep.subr.mxu0 0.0
        %3924 = vmatpush1.xpose.msra.mxu0 0.0
        %3925 = vmatprep.subr.mxu0 0.0
        %3926 = vmatpush1.xpose.msra.mxu0 0.0
        %3927 = vmatprep.subr.mxu0 0.0
        %3928 = vmatpush1.xpose.msra.mxu0 0.0
        %3929 = vmatprep.subr.mxu0 0.0
        %3930 = vmatpush1.xpose.msra.mxu0 0.0
        %3931 = vmatprep.subr.mxu0 0.0
        %3932 = vmatpush1.xpose.msra.mxu0 0.0
        %3933 = vmatprep.subr.mxu0 0.0
        %3934 = vmatpush1.xpose.msra.mxu0 0.0
        %3935 = vmatprep.subr.mxu0 0.0
        %3936 = vmatpush1.xpose.msra.mxu0 0.0
        %3937 = vmatprep.subr.mxu0 0.0
        %3938 = vmatpush1.xpose.msra.mxu0 0.0
        %3939 = vmatprep.subr.mxu0 0.0
        %3940 = vmatpush1.xpose.msra.mxu0 0.0
        %3941 = vmatprep.subr.mxu0 0.0
        %3942 = vmatpush1.xpose.msra.mxu0 0.0
        %3943 = vmatprep.subr.mxu0 0.0
        %3944 = vmatpush1.xpose.msra.mxu0 0.0
        %3945 = vmatprep.mubr.f32.mxu0 0.0
        %3946 = vmatmul.mubr.f32.gmra.mrb[0].mxu0 %v3876
        %v3947 = vpop.f32.mrb[0].mxu0
        %v3948 = vadd.f32 0.0, %v3947
        %v3949 = vpop.f32.mrb[0].mxu0
        %3950 = vdwg.mxu0
        %v3951 = vmul.f32 %v3872, 0.35355338
        %v3952 = vmul.f32 %v3948, 0.35355338
        %v3953 = vsel %vm1858, %v3951, -inf
        %3954 = vmax.xlane.f32.xlu0 %v3953
        %v3955 = vpop.xlane.xlu0 %3954
        %v3956 = vsel %vm1858, %v3952, -inf
        %3957 = vmax.xlane.f32.xlu0 %v3956
        %v3958 = vpop.xlane.xlu0 %3957
        %v3959 = vsub.f32 %v3951, %v3955
        %v3960 = vsub.f32 %v3952, %v3958
        %v3961 = vmul.f32 %v3959, 1.442695
        %v3962 = vpow.pop %v3961
        %v3963 = vmul.f32 %v3960, 1.442695
        %v3964 = vpow.pop %v3963
        %v3965 = vsel %vm1858, %v3962, 0.0
        %3966 = vadd.xlane.f32.xlu0 %v3965
        %v3967 = vpop.xlane.xlu0 %3966
        %v3968 = vsel %vm1858, %v3964, 0.0
        %3969 = vadd.xlane.f32.xlu0 %v3968
        %v3970 = vpop.xlane.xlu0 %3969
        %v3971 = vrcp.pop %v3967
        %v3972 = vmul.f32 %v3962, %v3971
        %v3973 = vrcp.pop %v3970
        %v3974 = vmul.f32 %v3964, %v3973
        %v3976 = vsel %vm1858, %v3972, 0
        %3978 = vmatprep.subr.mxu0 0.0
        %3979 = vmatpush1.msra.mxu0 %v3791
        %3980 = vmatprep.subr.mxu0 0.0
        %3981 = vmatpush1.msra.mxu0 0.0
        %3982 = vmatprep.subr.mxu0 0.0
        %3983 = vmatpush1.msra.mxu0 0.0
        %3984 = vmatprep.subr.mxu0 0.0
        %3985 = vmatpush1.msra.mxu0 0.0
        %3986 = vmatprep.subr.mxu0 0.0
        %3987 = vmatpush1.msra.mxu0 0.0
        %3988 = vmatprep.subr.mxu0 0.0
        %3989 = vmatpush1.msra.mxu0 0.0
        %3990 = vmatprep.subr.mxu0 0.0
        %3991 = vmatpush1.msra.mxu0 0.0
        %3992 = vmatprep.subr.mxu0 0.0
        %3993 = vmatpush1.msra.mxu0 0.0
        %3994 = vmatprep.subr.mxu0 0.0
        %3995 = vmatpush1.msra.mxu0 0.0
        %3996 = vmatprep.subr.mxu0 0.0
        %3997 = vmatpush1.msra.mxu0 0.0
        %3998 = vmatprep.subr.mxu0 0.0
        %3999 = vmatpush1.msra.mxu0 0.0
        %4000 = vmatprep.subr.mxu0 0.0
        %4001 = vmatpush1.msra.mxu0 0.0
        %4002 = vmatprep.subr.mxu0 0.0
        %4003 = vmatpush1.msra.mxu0 0.0
        %4004 = vmatprep.subr.mxu0 0.0
        %4005 = vmatpush1.msra.mxu0 0.0
        %4006 = vmatprep.subr.mxu0 0.0
        %4007 = vmatpush1.msra.mxu0 0.0
        %4008 = vmatprep.subr.mxu0 0.0
        %4009 = vmatpush1.msra.mxu0 0.0
        %4010 = vmatprep.subr.mxu0 0.0
        %4011 = vmatpush1.msra.mxu0 0.0
        %4012 = vmatprep.subr.mxu0 0.0
        %4013 = vmatpush1.msra.mxu0 0.0
        %4014 = vmatprep.subr.mxu0 0.0
        %4015 = vmatpush1.msra.mxu0 0.0
        %4016 = vmatprep.subr.mxu0 0.0
        %4017 = vmatpush1.msra.mxu0 0.0
        %4018 = vmatprep.subr.mxu0 0.0
        %4019 = vmatpush1.msra.mxu0 0.0
        %4020 = vmatprep.subr.mxu0 0.0
        %4021 = vmatpush1.msra.mxu0 0.0
        %4022 = vmatprep.subr.mxu0 0.0
        %4023 = vmatpush1.msra.mxu0 0.0
        %4024 = vmatprep.subr.mxu0 0.0
        %4025 = vmatpush1.msra.mxu0 0.0
        %4026 = vmatprep.subr.mxu0 0.0
        %4027 = vmatpush1.msra.mxu0 0.0
        %4028 = vmatprep.subr.mxu0 0.0
        %4029 = vmatpush1.msra.mxu0 0.0
        %4030 = vmatprep.subr.mxu0 0.0
        %4031 = vmatpush1.msra.mxu0 0.0
        %4032 = vmatprep.subr.mxu0 0.0
        %4033 = vmatpush1.msra.mxu0 0.0
        %4034 = vmatprep.subr.mxu0 0.0
        %4035 = vmatpush1.msra.mxu0 0.0
        %4036 = vmatprep.subr.mxu0 0.0
        %4037 = vmatpush1.msra.mxu0 0.0
        %4038 = vmatprep.subr.mxu0 0.0
        %4039 = vmatpush1.msra.mxu0 0.0
        %4040 = vmatprep.subr.mxu0 0.0
        %4041 = vmatpush1.msra.mxu0 0.0
        %4042 = vmatprep.mubr.f32.mxu0 0.0
        %4043 = vmatmul.mubr.f32.gmra.mrb[0].mxu0 %v3976
        %v4044 = vpop.f32.mrb[0].mxu0
        %v4045 = vadd.f32 0.0, %v4044
        %v4046 = vpop.f32.mrb[0].mxu0
        %4047 = vdwg.mxu0
        %v4049 = vsel %vm1858, %v3974, 0
        %4051 = vmatprep.subr.mxu0 0.0
        %4052 = vmatpush1.msra.mxu0 %v3796
        %4053 = vmatprep.subr.mxu0 0.0
        %4054 = vmatpush1.msra.mxu0 0.0
        %4055 = vmatprep.subr.mxu0 0.0
        %4056 = vmatpush1.msra.mxu0 0.0
        %4057 = vmatprep.subr.mxu0 0.0
        %4058 = vmatpush1.msra.mxu0 0.0
        %4059 = vmatprep.subr.mxu0 0.0
        %4060 = vmatpush1.msra.mxu0 0.0
        %4061 = vmatprep.subr.mxu0 0.0
        %4062 = vmatpush1.msra.mxu0 0.0
        %4063 = vmatprep.subr.mxu0 0.0
        %4064 = vmatpush1.msra.mxu0 0.0
        %4065 = vmatprep.subr.mxu0 0.0
        %4066 = vmatpush1.msra.mxu0 0.0
        %4067 = vmatprep.subr.mxu0 0.0
        %4068 = vmatpush1.msra.mxu0 0.0
        %4069 = vmatprep.subr.mxu0 0.0
        %4070 = vmatpush1.msra.mxu0 0.0
        %4071 = vmatprep.subr.mxu0 0.0
        %4072 = vmatpush1.msra.mxu0 0.0
        %4073 = vmatprep.subr.mxu0 0.0
        %4074 = vmatpush1.msra.mxu0 0.0
        %4075 = vmatprep.subr.mxu0 0.0
        %4076 = vmatpush1.msra.mxu0 0.0
        %4077 = vmatprep.subr.mxu0 0.0
        %4078 = vmatpush1.msra.mxu0 0.0
        %4079 = vmatprep.subr.mxu0 0.0
        %4080 = vmatpush1.msra.mxu0 0.0
        %4081 = vmatprep.subr.mxu0 0.0
        %4082 = vmatpush1.msra.mxu0 0.0
        %4083 = vmatprep.subr.mxu0 0.0
        %4084 = vmatpush1.msra.mxu0 0.0
        %4085 = vmatprep.subr.mxu0 0.0
        %4086 = vmatpush1.msra.mxu0 0.0
        %4087 = vmatprep.subr.mxu0 0.0
        %4088 = vmatpush1.msra.mxu0 0.0
        %4089 = vmatprep.subr.mxu0 0.0
        %4090 = vmatpush1.msra.mxu0 0.0
        %4091 = vmatprep.subr.mxu0 0.0
        %4092 = vmatpush1.msra.mxu0 0.0
        %4093 = vmatprep.subr.mxu0 0.0
        %4094 = vmatpush1.msra.mxu0 0.0
        %4095 = vmatprep.subr.mxu0 0.0
        %4096 = vmatpush1.msra.mxu0 0.0
        %4097 = vmatprep.subr.mxu0 0.0
        %4098 = vmatpush1.msra.mxu0 0.0
        %4099 = vmatprep.subr.mxu0 0.0
        %4100 = vmatpush1.msra.mxu0 0.0
        %4101 = vmatprep.subr.mxu0 0.0
        %4102 = vmatpush1.msra.mxu0 0.0
        %4103 = vmatprep.subr.mxu0 0.0
        %4104 = vmatpush1.msra.mxu0 0.0
        %4105 = vmatprep.subr.mxu0 0.0
        %4106 = vmatpush1.msra.mxu0 0.0
        %4107 = vmatprep.subr.mxu0 0.0
        %4108 = vmatpush1.msra.mxu0 0.0
        %4109 = vmatprep.subr.mxu0 0.0
        %4110 = vmatpush1.msra.mxu0 0.0
        %4111 = vmatprep.subr.mxu0 0.0
        %4112 = vmatpush1.msra.mxu0 0.0
        %4113 = vmatprep.subr.mxu0 0.0
        %4114 = vmatpush1.msra.mxu0 0.0
        %4115 = vmatprep.mubr.f32.mxu0 0.0
        %4116 = vmatmul.mubr.f32.gmra.mrb[0].mxu0 %v4049
        %v4117 = vpop.f32.mrb[0].mxu0
        %v4118 = vadd.f32 0.0, %v4117
        %v4119 = vpop.f32.mrb[0].mxu0
        %4120 = vdwg.mxu0
        %s4121 = scalar_lea.vmem %s11, 24
        %v4122 = vld [vmem:[%s4121] sm:$0xff]
        %v4124 = vsel %vm1858, %v4045, 0
        %v4127 = vsel %vm1858, %v4118, 0
        %4129 = vmatprep.subr.mxu0 0.0
        %4130 = vmatpush1.msra.mxu0 %v4122
        %4131 = vmatprep.subr.mxu0 0.0
        %4132 = vmatpush1.msra.mxu0 0.0
        %4133 = vmatprep.subr.mxu0 0.0
        %4134 = vmatpush1.msra.mxu0 0.0
        %4135 = vmatprep.subr.mxu0 0.0
        %4136 = vmatpush1.msra.mxu0 0.0
        %4137 = vmatprep.subr.mxu0 0.0
        %4138 = vmatpush1.msra.mxu0 0.0
        %4139 = vmatprep.subr.mxu0 0.0
        %4140 = vmatpush1.msra.mxu0 0.0
        %4141 = vmatprep.subr.mxu0 0.0
        %4142 = vmatpush1.msra.mxu0 0.0
        %4143 = vmatprep.subr.mxu0 0.0
        %4144 = vmatpush1.msra.mxu0 0.0
        %4145 = vmatprep.subr.mxu0 0.0
        %4146 = vmatpush1.msra.mxu0 0.0
        %4147 = vmatprep.subr.mxu0 0.0
        %4148 = vmatpush1.msra.mxu0 0.0
        %4149 = vmatprep.subr.mxu0 0.0
        %4150 = vmatpush1.msra.mxu0 0.0
        %4151 = vmatprep.subr.mxu0 0.0
        %4152 = vmatpush1.msra.mxu0 0.0
        %4153 = vmatprep.subr.mxu0 0.0
        %4154 = vmatpush1.msra.mxu0 0.0
        %4155 = vmatprep.subr.mxu0 0.0
        %4156 = vmatpush1.msra.mxu0 0.0
        %4157 = vmatprep.subr.mxu0 0.0
        %4158 = vmatpush1.msra.mxu0 0.0
        %4159 = vmatprep.subr.mxu0 0.0
        %4160 = vmatpush1.msra.mxu0 0.0
        %4161 = vmatprep.subr.mxu0 0.0
        %4162 = vmatpush1.msra.mxu0 0.0
        %4163 = vmatprep.subr.mxu0 0.0
        %4164 = vmatpush1.msra.mxu0 0.0
        %4165 = vmatprep.subr.mxu0 0.0
        %4166 = vmatpush1.msra.mxu0 0.0
        %4167 = vmatprep.subr.mxu0 0.0
        %4168 = vmatpush1.msra.mxu0 0.0
        %4169 = vmatprep.subr.mxu0 0.0
        %4170 = vmatpush1.msra.mxu0 0.0
        %4171 = vmatprep.subr.mxu0 0.0
        %4172 = vmatpush1.msra.mxu0 0.0
        %4173 = vmatprep.subr.mxu0 0.0
        %4174 = vmatpush1.msra.mxu0 0.0
        %4175 = vmatprep.subr.mxu0 0.0
        %4176 = vmatpush1.msra.mxu0 0.0
        %4177 = vmatprep.subr.mxu0 0.0
        %4178 = vmatpush1.msra.mxu0 0.0
        %4179 = vmatprep.subr.mxu0 0.0
        %4180 = vmatpush1.msra.mxu0 0.0
        %4181 = vmatprep.subr.mxu0 0.0
        %4182 = vmatpush1.msra.mxu0 0.0
        %4183 = vmatprep.subr.mxu0 0.0
        %4184 = vmatpush1.msra.mxu0 0.0
        %4185 = vmatprep.subr.mxu0 0.0
        %4186 = vmatpush1.msra.mxu0 0.0
        %4187 = vmatprep.subr.mxu0 0.0
        %4188 = vmatpush1.msra.mxu0 0.0
        %4189 = vmatprep.subr.mxu0 0.0
        %4190 = vmatpush1.msra.mxu0 0.0
        %4191 = vmatprep.subr.mxu0 0.0
        %4192 = vmatpush1.msra.mxu0 0.0
        %4193 = vmatprep.mubr.f32.mxu0 0.0
        %4194 = vmatmul.mubr.f32.gmra.mrb[0].mxu0 %v4124
        %v4195 = vpop.f32.mrb[0].mxu0
        %v4196 = vadd.f32 0.0, %v4195
        %v4197 = vpop.f32.mrb[0].mxu0
        %4198 = vmatprep.mubr.f32.mxu0 0.0
        %4199 = vmatmul.mubr.f32.gmra.mrb[0].mxu0 %v4127
        %v4200 = vpop.f32.mrb[0].mxu0
        %v4201 = vadd.f32 0.0, %v4200
        %v4202 = vpop.f32.mrb[0].mxu0
        %4203 = vdwg.mxu0
        %v4204 = vadd.f32 %v3557, %v4196
        %v4205 = vadd.f32 %v3558, %v4201
        %v4206 = vadd.f32 %v4204, %v1566
        %v4207 = vadd.f32 %v4205, %v1567
        %v4208 = vld [vmem:[%s2 + $0x9] sm:$0x1]
        %v4209 = vld [vmem:[%s2 + $0xa] sm:$0x1]
        %v4210 = vsel %vm502, %v4206, 0.0
        %4211 = vadd.xlane.f32.xlu0 %v4210
        %v4212 = vpop.xlane.xlu0 %4211
        %v4213 = vsel %vm502, %v4207, 0.0
        %4214 = vadd.xlane.f32.xlu0 %v4213
        %v4215 = vpop.xlane.xlu0 %4214
        %v4216 = vmul.f32 %v4212, %v509
        %v4217 = vmul.f32 %v4215, %v509
        %v4218 = vsub.f32 %v4206, %v4216
        %v4219 = vsub.f32 %v4207, %v4217
        %v4220 = vmul.f32 %v4218, %v4218
        %v4221 = vmul.f32 %v4219, %v4219
        %v4222 = vsel %vm502, %v4220, 0.0
        %4223 = vadd.xlane.f32.xlu0 %v4222
        %v4224 = vpop.xlane.xlu0 %4223
        %v4225 = vsel %vm502, %v4221, 0.0
        %4226 = vadd.xlane.f32.xlu0 %v4225
        %v4227 = vpop.xlane.xlu0 %4226
        %v4228 = vmul.f32 %v4224, %v509
        %v4229 = vmul.f32 %v4227, %v509
        %v4230 = vadd.f32 %v4228, 1e-05
        %v4231 = vadd.f32 %v4229, 1e-05
        %v4232 = vrsqrt.pop %v4230
        %v4233 = vrsqrt.pop %v4231
        %v4234 = vmul.f32 %v4218, %v4232
        %v4235 = vmul.f32 %v4219, %v4233
        %v4236 = vlaneseq
        %v4237 = vshrl.u32 %v4236, 7
        %v4238 = vsub.s32 0, %v4237
        %v4239 = vrot.slane %v4208, %v4238
        %v4240 = vmul.f32 %v4234, %v4239
        %v4241 = vmul.f32 %v4235, %v4239
        %v4242 = vlaneseq
        %v4243 = vshrl.u32 %v4242, 7
        %v4244 = vsub.s32 0, %v4243
        %v4245 = vrot.slane %v4209, %v4244
        %v4246 = vadd.f32 %v4240, %v4245
        %v4247 = vadd.f32 %v4241, %v4245
        %v4248 = vld [vmem:[%s12] sm:$0xff]
        %v4249 = vld [vmem:[%s12 + $0x8] sm:$0xff]
        %v4250 = vld [vmem:[%s12 + $0x10] sm:$0xff]
        %v4251 = vld [vmem:[%s12 + $0x18] sm:$0xff]
        %v4252 = vld [vmem:[%s12 + $0x20] sm:$0xff]
        %v4253 = vld [vmem:[%s12 + $0x28] sm:$0xff]
        %v4254 = vld [vmem:[%s12 + $0x30] sm:$0xff]
        %v4255 = vld [vmem:[%s12 + $0x38] sm:$0xff]
        %s4256 = scalar_lea.vmem %s4, 1
        %v4257 = vld [vmem:[%s4256] ss:$2 sm:$0x3]
        %v4258 = vld [vmem:[%s13] sm:$0xff]
        %v4259 = vld [vmem:[%s13 + $0x8] sm:$0xff]
        %v4260 = vld [vmem:[%s13 + $0x10] sm:$0xff]
        %v4261 = vld [vmem:[%s13 + $0x18] sm:$0xff]
        %v4262 = vld [vmem:[%s13 + $0x20] sm:$0xff]
        %v4263 = vld [vmem:[%s13 + $0x28] sm:$0xff]
        %v4264 = vld [vmem:[%s13 + $0x30] sm:$0xff]
        %v4265 = vld [vmem:[%s13 + $0x38] sm:$0xff]
        %v4266 = vld [vmem:[%s13 + $0x40] sm:$0xff]
        %v4267 = vld [vmem:[%s13 + $0x48] sm:$0xff]
        %v4268 = vld [vmem:[%s13 + $0x50] sm:$0xff]
        %v4269 = vld [vmem:[%s13 + $0x58] sm:$0xff]
        %v4270 = vld [vmem:[%s13 + $0x60] sm:$0xff]
        %v4271 = vld [vmem:[%s13 + $0x68] sm:$0xff]
        %v4272 = vld [vmem:[%s13 + $0x70] sm:$0xff]
        %v4273 = vld [vmem:[%s13 + $0x78] sm:$0xff]
        %v4274 = vld [vmem:[%s2 + $0xb] sm:$0x1]
        %v4276 = vlaneseq
        %v4277 = vshrl.u32 %v4276, 7
        %v4278 = vsub.s32 0, %v4277
        %v4279 = vrot.slane %v4257, %v4278
        %v4280 = vlaneseq
        %v4281 = vshrl.u32 %v4280, 7
        %v4282 = vsub.s32 1, %v4281
        %v4283 = vrot.slane %v4257, %v4282
        %v4287 = vsel %vm502, %v4246, 0
        %v4290 = vsel %vm502, %v4247, 0
        %4292 = vmatprep.subr.mxu0 %v4249
        %4293 = vmatpush1.msra.mxu0 %v4248
        %4294 = vmatprep.subr.mxu0 %v4251
        %4295 = vmatpush1.msra.mxu0 %v4250
        %4296 = vmatprep.subr.mxu0 %v4253
        %4297 = vmatpush1.msra.mxu0 %v4252
        %4298 = vmatprep.subr.mxu0 %v4255
        %4299 = vmatpush1.msra.mxu0 %v4254
        %4300 = vmatprep.subr.mxu0 0.0
        %4301 = vmatpush1.msra.mxu0 0.0
        %4302 = vmatprep.subr.mxu0 0.0
        %4303 = vmatpush1.msra.mxu0 0.0
        %4304 = vmatprep.subr.mxu0 0.0
        %4305 = vmatpush1.msra.mxu0 0.0
        %4306 = vmatprep.subr.mxu0 0.0
        %4307 = vmatpush1.msra.mxu0 0.0
        %4308 = vmatprep.subr.mxu0 0.0
        %4309 = vmatpush1.msra.mxu0 0.0
        %4310 = vmatprep.subr.mxu0 0.0
        %4311 = vmatpush1.msra.mxu0 0.0
        %4312 = vmatprep.subr.mxu0 0.0
        %4313 = vmatpush1.msra.mxu0 0.0
        %4314 = vmatprep.subr.mxu0 0.0
        %4315 = vmatpush1.msra.mxu0 0.0
        %4316 = vmatprep.subr.mxu0 0.0
        %4317 = vmatpush1.msra.mxu0 0.0
        %4318 = vmatprep.subr.mxu0 0.0
        %4319 = vmatpush1.msra.mxu0 0.0
        %4320 = vmatprep.subr.mxu0 0.0
        %4321 = vmatpush1.msra.mxu0 0.0
        %4322 = vmatprep.subr.mxu0 0.0
        %4323 = vmatpush1.msra.mxu0 0.0
        %4324 = vmatprep.subr.mxu0 0.0
        %4325 = vmatpush1.msra.mxu0 0.0
        %4326 = vmatprep.subr.mxu0 0.0
        %4327 = vmatpush1.msra.mxu0 0.0
        %4328 = vmatprep.subr.mxu0 0.0
        %4329 = vmatpush1.msra.mxu0 0.0
        %4330 = vmatprep.subr.mxu0 0.0
        %4331 = vmatpush1.msra.mxu0 0.0
        %4332 = vmatprep.subr.mxu0 0.0
        %4333 = vmatpush1.msra.mxu0 0.0
        %4334 = vmatprep.subr.mxu0 0.0
        %4335 = vmatpush1.msra.mxu0 0.0
        %4336 = vmatprep.subr.mxu0 0.0
        %4337 = vmatpush1.msra.mxu0 0.0
        %4338 = vmatprep.subr.mxu0 0.0
        %4339 = vmatpush1.msra.mxu0 0.0
        %4340 = vmatprep.subr.mxu0 0.0
        %4341 = vmatpush1.msra.mxu0 0.0
        %4342 = vmatprep.subr.mxu0 0.0
        %4343 = vmatpush1.msra.mxu0 0.0
        %4344 = vmatprep.subr.mxu0 0.0
        %4345 = vmatpush1.msra.mxu0 0.0
        %4346 = vmatprep.subr.mxu0 0.0
        %4347 = vmatpush1.msra.mxu0 0.0
        %4348 = vmatprep.subr.mxu0 0.0
        %4349 = vmatpush1.msra.mxu0 0.0
        %4350 = vmatprep.subr.mxu0 0.0
        %4351 = vmatpush1.msra.mxu0 0.0
        %4352 = vmatprep.subr.mxu0 0.0
        %4353 = vmatpush1.msra.mxu0 0.0
        %4354 = vmatprep.subr.mxu0 0.0
        %4355 = vmatpush1.msra.mxu0 0.0
        %4356 = vmatprep.mubr.f32.mxu0 0.0
        %4357 = vmatmul.mubr.f32.gmra.mrb[0].mxu0 %v4287
        %v4358 = vpop.f32.mrb[0].mxu0
        %v4359 = vadd.f32 %v4279, %v4358
        %v4360 = vpop.f32.mrb[0].mxu0
        %v4361 = vadd.f32 %v4283, %v4360
        %4362 = vmatprep.mubr.f32.mxu0 0.0
        %4363 = vmatmul.mubr.f32.gmra.mrb[0].mxu0 %v4290
        %v4364 = vpop.f32.mrb[0].mxu0
        %v4365 = vadd.f32 %v4279, %v4364
        %v4366 = vpop.f32.mrb[0].mxu0
        %v4367 = vadd.f32 %v4283, %v4366
        %4368 = vdwg.mxu0
        %v4369 = vmul.f32 %v4361, 0.5
        %v4370 = vmul.f32 %v4367, 0.5
        %v4371 = vmul.f32 %v4361, 0.70710677
        %v4372 = vmul.f32 %v4367, 0.70710677
        %v4373 = verf.f32.pop %v4371
        %v4374 = verf.f32.pop %v4372
        %v4375 = vadd.f32 %v4373, 1.0
        %v4376 = vadd.f32 %v4374, 1.0
        %v4377 = vmul.f32 %v4369, %v4375
        %v4378 = vmul.f32 %v4370, %v4376
        %v4379 = vmul.f32 %v4359, %v4377
        %v4380 = vmul.f32 %v4365, %v4378
        %v4381 = vlaneseq
        %v4382 = vshrl.u32 %v4381, 7
        %v4383 = vsub.s32 0, %v4382
        %v4384 = vrot.slane %v4274, %v4383
        %4385 = vmatprep.subr.mxu0 0.0
        %4386 = vmatpush1.msra.mxu0 %v4258
        %4387 = vmatprep.subr.mxu0 0.0
        %4388 = vmatpush1.msra.mxu0 %v4259
        %4389 = vmatprep.subr.mxu0 0.0
        %4390 = vmatpush1.msra.mxu0 %v4260
        %4391 = vmatprep.subr.mxu0 0.0
        %4392 = vmatpush1.msra.mxu0 %v4261
        %4393 = vmatprep.subr.mxu0 0.0
        %4394 = vmatpush1.msra.mxu0 %v4262
        %4395 = vmatprep.subr.mxu0 0.0
        %4396 = vmatpush1.msra.mxu0 %v4263
        %4397 = vmatprep.subr.mxu0 0.0
        %4398 = vmatpush1.msra.mxu0 %v4264
        %4399 = vmatprep.subr.mxu0 0.0
        %4400 = vmatpush1.msra.mxu0 %v4265
        %4401 = vmatprep.subr.mxu0 0.0
        %4402 = vmatpush1.msra.mxu0 %v4266
        %4403 = vmatprep.subr.mxu0 0.0
        %4404 = vmatpush1.msra.mxu0 %v4267
        %4405 = vmatprep.subr.mxu0 0.0
        %4406 = vmatpush1.msra.mxu0 %v4268
        %4407 = vmatprep.subr.mxu0 0.0
        %4408 = vmatpush1.msra.mxu0 %v4269
        %4409 = vmatprep.subr.mxu0 0.0
        %4410 = vmatpush1.msra.mxu0 %v4270
        %4411 = vmatprep.subr.mxu0 0.0
        %4412 = vmatpush1.msra.mxu0 %v4271
        %4413 = vmatprep.subr.mxu0 0.0
        %4414 = vmatpush1.msra.mxu0 %v4272
        %4415 = vmatprep.subr.mxu0 0.0
        %4416 = vmatpush1.msra.mxu0 %v4273
        %4417 = vmatprep.subr.mxu0 0.0
        %4418 = vmatpush1.msra.mxu0 0.0
        %4419 = vmatprep.subr.mxu0 0.0
        %4420 = vmatpush1.msra.mxu0 0.0
        %4421 = vmatprep.subr.mxu0 0.0
        %4422 = vmatpush1.msra.mxu0 0.0
        %4423 = vmatprep.subr.mxu0 0.0
        %4424 = vmatpush1.msra.mxu0 0.0
        %4425 = vmatprep.subr.mxu0 0.0
        %4426 = vmatpush1.msra.mxu0 0.0
        %4427 = vmatprep.subr.mxu0 0.0
        %4428 = vmatpush1.msra.mxu0 0.0
        %4429 = vmatprep.subr.mxu0 0.0
        %4430 = vmatpush1.msra.mxu0 0.0
        %4431 = vmatprep.subr.mxu0 0.0
        %4432 = vmatpush1.msra.mxu0 0.0
        %4433 = vmatprep.subr.mxu0 0.0
        %4434 = vmatpush1.msra.mxu0 0.0
        %4435 = vmatprep.subr.mxu0 0.0
        %4436 = vmatpush1.msra.mxu0 0.0
        %4437 = vmatprep.subr.mxu0 0.0
        %4438 = vmatpush1.msra.mxu0 0.0
        %4439 = vmatprep.subr.mxu0 0.0
        %4440 = vmatpush1.msra.mxu0 0.0
        %4441 = vmatprep.subr.mxu0 0.0
        %4442 = vmatpush1.msra.mxu0 0.0
        %4443 = vmatprep.subr.mxu0 0.0
        %4444 = vmatpush1.msra.mxu0 0.0
        %4445 = vmatprep.subr.mxu0 0.0
        %4446 = vmatpush1.msra.mxu0 0.0
        %4447 = vmatprep.subr.mxu0 0.0
        %4448 = vmatpush1.msra.mxu0 0.0
        %4449 = vmatprep.mubr.f32.mxu0 0.0
        %4450 = vmatmul.mubr.f32.gmra.mrb[0].mxu0 %v4379
        %v4451 = vpop.f32.mrb[0].mxu0
        %v4452 = vadd.f32 %v4384, %v4451
        %v4453 = vpop.f32.mrb[0].mxu0
        %4454 = vmatprep.mubr.f32.mxu0 0.0
        %4455 = vmatmul.mubr.f32.gmra.mrb[0].mxu0 %v4380
        %v4456 = vpop.f32.mrb[0].mxu0
        %v4457 = vadd.f32 %v4384, %v4456
        %v4458 = vpop.f32.mrb[0].mxu0
        %4459 = vdwg.mxu0
        %v4460 = vadd.f32 %v4452, %v4206
        %v4461 = vadd.f32 %v4457, %v4207
        %4462 = vst.msk [vmem:[%s479] sm:$0xff] %vm502, %v4460
        %4463 = vst.msk [vmem:[%s479 + $0x8] sm:$0xff] %vm502, %v4461
        %s4464 = sand.u32 %s340, 1
        %s4465 = scalar_lea.sflag [#allocation3], %s4464
        %s4466 = sand.u32 %s340, 1
        %s4467 = smul.addr %s4466, 16
        %s4468 = scalar_lea.vmem [#allocation2], %s4467
        // Predicated region
        $region77: #{codebook_attention_forward.1} parent=75 // pred_check
          %p4469 = pneg %p350
        $region78: #{codebook_attention_forward.1} parent=75 // pred_check_branch
          %4471 = sbr.rel (%p4469) target = $region80
        $region79: #{codebook_attention_forward.1} parent=75 // pred_region
          %s4472 = smul.u32 2, %s28
          %s4474 = ssub.s32 256, 256
          %4475 = vsyncadd %s4465, %s4474
          %s4476 = smul.addr %s4472, 128
          %s4477 = scalar_lea.hbm %s14, %s4476
          %s4478 = sshll.u32 %s4468, 4
          %s4479 = int_to_ptr.vmem [resolvable:$true] %s4478
          %4484 = dma.vmem_to_hbm [thread:$0]  %s4479, 256, %s4477, %s4465, 128, 128, 8
        $region80: #{codebook_attention_forward.1} parent=75 // pred_fallthru
          _
      $region76: #{codebook_attention_forward.1} parent=5 // pred_fallthru
        _
      %p4485 = scmp.le.s32.totalorder 2, %s23
      // Predicated region
      $region81: #{codebook_attention_forward.1} parent=5 // pred_check
        %p4486 = pneg %p4485
      $region82: #{codebook_attention_forward.1} parent=5 // pred_check_branch
        %4488 = sbr.rel (%p4486) target = $region84
      $region83: #{codebook_attention_forward.1} parent=5 // pred_region
        %s4489 = ssub.s32 %s23, 2
        // Predicated region
        $region85: #{codebook_attention_forward.1} parent=83 // pred_check
          %p4490 = pneg %p356
        $region86: #{codebook_attention_forward.1} parent=83 // pred_check_branch
          %4492 = sbr.rel (%p4490) target = $region88
        $region87: #{codebook_attention_forward.1} parent=83 // pred_region
          %s4493 = sand.u32 %s341, 1
          %s4494 = scalar_lea.sflag [#allocation3], %s4493
          %s4495 = sand.u32 %s341, 1
          %s4496 = smul.addr %s4495, 16
          %s4497 = scalar_lea.vmem [#allocation2], %s4496
          %4498 = dma.done %s4494, 256
        $region88: #{codebook_attention_forward.1} parent=83 // pred_fallthru
          _
      $region84: #{codebook_attention_forward.1} parent=5 // pred_fallthru
        _
    $region6: #{codebook_attention_forward.1} parent=1 // loop_footer
      %s27 = sadd.s32 1, %s23
    $region7: #{codebook_attention_forward.1} parent=1 // loop_footer_branch
      %22 = sbr.rel target = $region3
    $region8: #{codebook_attention_forward.1} parent=1 // loop_exit
      _
    %4499 = vsyncpa [#allocation3], 1
    %s4500 = scalar_lea.sflag [#allocation3], 1
    %4501 = vsyncpa %s4500, 1

</llo_original>
